<compile_context>
chip_gen: v6e
topology: v6e:2x2x1
jax: 0.10.0
libtpu: 0.0.40
codegen_flags: <defaults>
</compile_context>

<pallas_src>
from functools import partial

import jax
import jax.numpy as jnp
from jax.experimental import pallas as pl
from jax.experimental.pallas import tpu as pltpu


# ----------------------------------------------------------------------------
# Fused kernel: maxpool(2) -> conv3x3+BN+ReLU -> conv3x3+BN+ReLU
# ----------------------------------------------------------------------------
def _down_fused_kernel(x6_ref, w1_ref, w2t_ref, g1_ref, bt1_ref,
                       g2_ref, bt2_ref, o_ref, xp1_ref, xp2_ref,
                       *, N, Hh, Wh, eps):
    f32 = jnp.float32
    M = N * Hh * Wh

    # ---- stage 0: 2x2 / stride-2 max pool --------------------------------
    # x6_ref: (N, Hh, 2, Wh, 2, Cin); window offsets are plain (non-lane) taps.
    x6 = x6_ref[...].astype(f32)
    pooled = jnp.maximum(
        jnp.maximum(x6[:, :, 0, :, 0, :], x6[:, :, 0, :, 1, :]),
        jnp.maximum(x6[:, :, 1, :, 0, :], x6[:, :, 1, :, 1, :]),
    )                                                   # (N, Hh, Wh, Cin)

    def make_padded(xp_ref, interior):
        # zero halo of 1 around (H, W), built in VMEM scratch (no HBM pad copy)
        xp_ref[...] = jnp.zeros_like(xp_ref)
        xp_ref[:, 1:Hh + 1, 1:Wh + 1, :] = interior
        return xp_ref[...]

    def batch_stats(y, axis):
        # one-pass train-mode BN statistics (biased variance), per channel
        inv = 1.0 / M
        mean = jnp.sum(y, axis=axis, keepdims=True) * inv
        ex2 = jnp.sum(y * y, axis=axis, keepdims=True) * inv
        return mean, ex2 - mean * mean

    # ---- stage 1: conv3x3(pad=1) + BN(train) + ReLU  (channels-last) ------
    # conv bias omitted: train-mode BN mean subtraction cancels it exactly.
    xp1 = make_padded(xp1_ref, pooled)                  # (N, Hh+2, Wh+2, Cin)
    w1 = w1_ref[...].astype(f32)                        # (3, 3, Cin, Cmid)
    Cin, Cmid = w1.shape[2], w1.shape[3]
    y1 = jnp.zeros((M, Cmid), f32)
    for kh in range(3):
        for kw in range(3):
            tap = xp1[:, kh:kh + Hh, kw:kw + Wh, :].reshape(M, Cin)
            y1 = y1 + jnp.dot(tap, w1[kh, kw], preferred_element_type=f32)
    mean1, var1 = batch_stats(y1, axis=0)
    h1 = (y1 - mean1) * jax.lax.rsqrt(var1 + eps)
    h1 = jnp.maximum(h1 * g1_ref[...] + bt1_ref[...], 0.0)   # (M, Cmid)

    # ---- stage 2: conv3x3(pad=1) + BN(train) + ReLU, emitted as (Cout, M) --
    # so the HBM output store is lane-dense (M = N*Hh*Wh is a multiple of 128).
    xp2 = make_padded(xp2_ref, h1.reshape(N, Hh, Wh, Cmid))  # (N, Hh+2, Wh+2, Cmid)
    w2t = w2t_ref[...].astype(f32)                      # (3, 3, Cout, Cmid)
    Cout = w2t.shape[2]
    y2 = jnp.zeros((Cout, M), f32)
    for kh in range(3):
        for kw in range(3):
            tap = xp2[:, kh:kh + Hh, kw:kw + Wh, :].reshape(M, Cmid)
            # rhs consumed transposed by the MXU (same dim-numbers as q @ k.T)
            y2 = y2 + jax.lax.dot_general(
                w2t[kh, kw], tap, (((1,), (1,)), ((), ())),
                preferred_element_type=f32)
    mean2, var2 = batch_stats(y2, axis=1)
    h2 = (y2 - mean2) * jax.lax.rsqrt(var2 + eps)
    h2 = jnp.maximum(h2 * g2_ref[...] + bt2_ref[...], 0.0)   # (Cout, M)
    o_ref[...] = h2.astype(o_ref.dtype)


# ----------------------------------------------------------------------------
# Down forward (NCHW in / NCHW out, like the PyTorch module)
# ----------------------------------------------------------------------------
def down_forward(x_nchw, params, eps=1e-5):
    N, Cin, H, W = x_nchw.shape
    assert H % 2 == 0 and W % 2 == 0
    Hh, Wh = H // 2, W // 2
    M = N * Hh * Wh
    Cmid = params["w1"].shape[-1]
    Cout = params["w2"].shape[-1]

    # Boundary layout glue (16 KiB input / 4 KiB output): expose the 2x2 pool
    # window as two unit-extent dims and put channels on the lane axis.
    x6 = jnp.transpose(x_nchw, (0, 2, 3, 1)).reshape(N, Hh, 2, Wh, 2, Cin)
    # layer-2 weights pre-transposed per tap -> (3, 3, Cout, Cmid) so the kernel
    # can emit a lane-dense (Cout, M) output directly.
    w2t = jnp.transpose(params["w2"], (0, 1, 3, 2))

    vmem = pl.BlockSpec(memory_space=pltpu.MemorySpace.VMEM)
    # Whole problem (< 1 MiB) is VMEM resident -> single ungridded call.
    # For large N*H*W: tile the spatial axis over a grid ("parallel") with
    # partial BN sum/sumsq scratch and a pl.when finalize step.
    out = pl.pallas_call(
        partial(_down_fused_kernel, N=N, Hh=Hh, Wh=Wh, eps=eps),
        out_shape=jax.ShapeDtypeStruct((Cout, M), jnp.float32),
        in_specs=[vmem] * 7,
        out_specs=vmem,
        scratch_shapes=[
            pltpu.VMEM((N, Hh + 2, Wh + 2, Cin), jnp.float32),
            pltpu.VMEM((N, Hh + 2, Wh + 2, Cmid), jnp.float32),
        ],
        compiler_params=pltpu.CompilerParams(vmem_limit_bytes=32 * 1024 * 1024),
    )(x6, params["w1"], w2t,
      params["g1"].reshape(1, Cmid), params["beta1"].reshape(1, Cmid),
      params["g2"].reshape(Cout, 1), params["beta2"].reshape(Cout, 1))

    # (Cout, N*Hh*Wh) -> NCHW
    return jnp.transpose(out.reshape(Cout, N, Hh, Wh), (1, 0, 2, 3))


# ----------------------------------------------------------------------------
# Pure-JAX reference (sanity check; includes the conv bias)
# ----------------------------------------------------------------------------
def _ref_conv_bn_relu(x, w, b, g, beta, eps=1e-5):
    y = jax.lax.conv_general_dilated(
        x, w, (1, 1), "SAME",
        dimension_numbers=("NHWC", "HWIO", "NHWC"),
        precision=jax.lax.Precision.HIGHEST)
    y = y + b
    mean = y.mean(axis=(0, 1, 2), keepdims=True)
    var = ((y - mean) ** 2).mean(axis=(0, 1, 2), keepdims=True)
    y = (y - mean) * jax.lax.rsqrt(var + eps) * g + beta
    return jnp.maximum(y, 0.0)


def _ref_down(x_nchw, p):
    x = jnp.transpose(x_nchw, (0, 2, 3, 1))
    N, H, W, C = x.shape
    x = jnp.max(x.reshape(N, H // 2, 2, W // 2, 2, C), axis=(2, 4))
    x = _ref_conv_bn_relu(x, p["w1"], p["b1"], p["g1"], p["beta1"])
    x = _ref_conv_bn_relu(x, p["w2"], p["b2"], p["g2"], p["beta2"])
    return jnp.transpose(x, (0, 3, 1, 2))


# ----------------------------------------------------------------------------
# Deterministic parameter init (shapes per Down(in_channels=4, out_channels=8))
# ----------------------------------------------------------------------------
def init_params(key, cin, cout):
    k1, k2, k3, k4 = jax.random.split(key, 4)
    bound1 = 1.0 / (cin * 9) ** 0.5
    bound2 = 1.0 / (cout * 9) ** 0.5
    return {
        # conv weights stored HWIO (PyTorch OIHW -> HWIO)
        "w1": jax.random.uniform(k1, (3, 3, cin, cout), jnp.float32, -bound1, bound1),
        "b1": jax.random.uniform(k2, (cout,), jnp.float32, -bound1, bound1),
        "g1": jnp.ones((cout,), jnp.float32),
        "beta1": jnp.zeros((cout,), jnp.float32),
        "w2": jax.random.uniform(k3, (3, 3, cout, cout), jnp.float32, -bound2, bound2),
        "b2": jax.random.uniform(k4, (cout,), jnp.float32, -bound2, bound2),
        "g2": jnp.ones((cout,), jnp.float32),
        "beta2": jnp.zeros((cout,), jnp.float32),
    }


if __name__ == "__main__":
    N, Cin, H, W = 2, 4, 16, 16
    Cout = 8

    key = jax.random.PRNGKey(0)
    kx, kp = jax.random.split(key)
    x = jax.random.normal(kx, (N, Cin, H, W), jnp.float32)
    params = init_params(kp, Cin, Cout)

    fwd = jax.jit(down_forward)
    out = jax.block_until_ready(fwd(x, params))
    assert out.shape == (N, Cout, H // 2, W // 2), out.shape

    ref = jax.block_until_ready(_ref_down(x, params))
    max_err = float(jnp.max(jnp.abs(out - ref)))
    assert jnp.allclose(out, ref, rtol=1e-2, atol=1e-2), max_err

    print("KERNEL_OK")
</pallas_src>

<mosaic_0001>
module attributes {stable_mosaic.version = 11 : i64} {
  func.func @_down_fused_kernel(%arg0: memref<2x8x2x8x2x4xf32, #tpu.memory_space<vmem>>, %arg1: memref<3x3x4x8xf32, #tpu.memory_space<vmem>>, %arg2: memref<3x3x8x8xf32, #tpu.memory_space<vmem>>, %arg3: memref<1x8xf32, #tpu.memory_space<vmem>>, %arg4: memref<1x8xf32, #tpu.memory_space<vmem>>, %arg5: memref<8x1xf32, #tpu.memory_space<vmem>>, %arg6: memref<8x1xf32, #tpu.memory_space<vmem>>, %arg7: memref<8x128xf32, #tpu.memory_space<vmem>>, %arg8: memref<2x10x10x4xf32, #tpu.memory_space<vmem>>, %arg9: memref<2x10x10x8xf32, #tpu.memory_space<vmem>>) attributes {dimension_semantics = [], scalar_prefetch = 0 : i64, scratch_operands = 2 : i64, tpu.core_type = #tpu.core_type<tc>} {
    %c0 = arith.constant 0 : index
    %c0_0 = arith.constant 0 : index
    %c0_1 = arith.constant 0 : index
    %c0_2 = arith.constant 0 : index
    %c0_3 = arith.constant 0 : index
    %c0_4 = arith.constant 0 : index
    %0 = vector.load %arg0[%c0, %c0_0, %c0_1, %c0_2, %c0_3, %c0_4] : memref<2x8x2x8x2x4xf32, #tpu.memory_space<vmem>>, vector<2x8x2x8x2x4xf32>
    %1 = vector.extract_strided_slice %0 {offsets = [0, 0, 0, 0, 0, 0], sizes = [2, 8, 1, 8, 1, 4], strides = [1, 1, 1, 1, 1, 1]} : vector<2x8x2x8x2x4xf32> to vector<2x8x1x8x1x4xf32>
    %2 = vector.shape_cast %1 : vector<2x8x1x8x1x4xf32> to vector<2x8x8x4xf32>
    %3 = vector.extract_strided_slice %0 {offsets = [0, 0, 0, 0, 1, 0], sizes = [2, 8, 1, 8, 1, 4], strides = [1, 1, 1, 1, 1, 1]} : vector<2x8x2x8x2x4xf32> to vector<2x8x1x8x1x4xf32>
    %4 = vector.shape_cast %3 : vector<2x8x1x8x1x4xf32> to vector<2x8x8x4xf32>
    %5 = arith.maximumf %2, %4 : vector<2x8x8x4xf32>
    %6 = vector.extract_strided_slice %0 {offsets = [0, 0, 1, 0, 0, 0], sizes = [2, 8, 1, 8, 1, 4], strides = [1, 1, 1, 1, 1, 1]} : vector<2x8x2x8x2x4xf32> to vector<2x8x1x8x1x4xf32>
    %7 = vector.shape_cast %6 : vector<2x8x1x8x1x4xf32> to vector<2x8x8x4xf32>
    %8 = vector.extract_strided_slice %0 {offsets = [0, 0, 1, 0, 1, 0], sizes = [2, 8, 1, 8, 1, 4], strides = [1, 1, 1, 1, 1, 1]} : vector<2x8x2x8x2x4xf32> to vector<2x8x1x8x1x4xf32>
    %9 = vector.shape_cast %8 : vector<2x8x1x8x1x4xf32> to vector<2x8x8x4xf32>
    %10 = arith.maximumf %7, %9 : vector<2x8x8x4xf32>
    %11 = arith.maximumf %5, %10 : vector<2x8x8x4xf32>
    %cst = arith.constant 0.000000e+00 : f32
    %12 = vector.broadcast %cst : f32 to vector<2x10x10x4xf32>
    %c0_5 = arith.constant 0 : index
    %c0_6 = arith.constant 0 : index
    %c0_7 = arith.constant 0 : index
    %c0_8 = arith.constant 0 : index
    %13 = vector.load %arg8[%c0_5, %c0_6, %c0_7, %c0_8] : memref<2x10x10x4xf32, #tpu.memory_space<vmem>>, vector<2x10x10x4xf32>
    tpu.vector_store %arg8[%c0_5, %c0_6, %c0_7, %c0_8], %12 {strides = array<i32>} : memref<2x10x10x4xf32, #tpu.memory_space<vmem>>, vector<2x10x10x4xf32>,
    %c0_9 = arith.constant 0 : index
    %c1 = arith.constant 1 : index
    %c1_10 = arith.constant 1 : index
    %c0_11 = arith.constant 0 : index
    %14 = vector.load %arg8[%c0_9, %c1, %c1_10, %c0_11] : memref<2x10x10x4xf32, #tpu.memory_space<vmem>>, vector<2x8x8x4xf32>
    tpu.vector_store %arg8[%c0_9, %c1, %c1_10, %c0_11], %11 {strides = array<i32>} : memref<2x10x10x4xf32, #tpu.memory_space<vmem>>, vector<2x8x8x4xf32>,
    %c0_12 = arith.constant 0 : index
    %c0_13 = arith.constant 0 : index
    %c0_14 = arith.constant 0 : index
    %c0_15 = arith.constant 0 : index
    %15 = vector.load %arg8[%c0_12, %c0_13, %c0_14, %c0_15] : memref<2x10x10x4xf32, #tpu.memory_space<vmem>>, vector<2x10x10x4xf32>
    %c0_16 = arith.constant 0 : index
    %c0_17 = arith.constant 0 : index
    %c0_18 = arith.constant 0 : index
    %c0_19 = arith.constant 0 : index
    %16 = vector.load %arg1[%c0_16, %c0_17, %c0_18, %c0_19] : memref<3x3x4x8xf32, #tpu.memory_space<vmem>>, vector<3x3x4x8xf32>
    %cst_20 = arith.constant 0.000000e+00 : f32
    %17 = vector.broadcast %cst_20 : f32 to vector<128x8xf32>
    %18 = vector.extract_strided_slice %15 {offsets = [0, 0, 0, 0], sizes = [2, 8, 8, 4], strides = [1, 1, 1, 1]} : vector<2x10x10x4xf32> to vector<2x8x8x4xf32>
    %19 = vector.shape_cast %18 : vector<2x8x8x4xf32> to vector<128x4xf32>
    %20 = vector.extract_strided_slice %16 {offsets = [0, 0, 0, 0], sizes = [1, 1, 4, 8], strides = [1, 1, 1, 1]} : vector<3x3x4x8xf32> to vector<1x1x4x8xf32>
    %21 = vector.shape_cast %20 : vector<1x1x4x8xf32> to vector<4x8xf32>
    %cst_21 = arith.constant dense<0.000000e+00> : vector<128x8xf32>
    %22 = tpu.matmul %19, %21, %cst_21 {dimension_numbers = #tpu.dot_dimension_numbers<[1], [0], [0], [1], [0, 0, 1, 1], [], []>} : vector<128x4xf32>, vector<4x8xf32>, vector<128x8xf32> -> vector<128x8xf32>
    %23 = arith.addf %17, %22 : vector<128x8xf32>
    %24 = vector.extract_strided_slice %15 {offsets = [0, 0, 1, 0], sizes = [2, 8, 8, 4], strides = [1, 1, 1, 1]} : vector<2x10x10x4xf32> to vector<2x8x8x4xf32>
    %25 = vector.shape_cast %24 : vector<2x8x8x4xf32> to vector<128x4xf32>
    %26 = vector.extract_strided_slice %16 {offsets = [0, 1, 0, 0], sizes = [1, 1, 4, 8], strides = [1, 1, 1, 1]} : vector<3x3x4x8xf32> to vector<1x1x4x8xf32>
    %27 = vector.shape_cast %26 : vector<1x1x4x8xf32> to vector<4x8xf32>
    %cst_22 = arith.constant dense<0.000000e+00> : vector<128x8xf32>
    %28 = tpu.matmul %25, %27, %cst_22 {dimension_numbers = #tpu.dot_dimension_numbers<[1], [0], [0], [1], [0, 0, 1, 1], [], []>} : vector<128x4xf32>, vector<4x8xf32>, vector<128x8xf32> -> vector<128x8xf32>
    %29 = arith.addf %23, %28 : vector<128x8xf32>
    %30 = vector.extract_strided_slice %15 {offsets = [0, 0, 2, 0], sizes = [2, 8, 8, 4], strides = [1, 1, 1, 1]} : vector<2x10x10x4xf32> to vector<2x8x8x4xf32>
    %31 = vector.shape_cast %30 : vector<2x8x8x4xf32> to vector<128x4xf32>
    %32 = vector.extract_strided_slice %16 {offsets = [0, 2, 0, 0], sizes = [1, 1, 4, 8], strides = [1, 1, 1, 1]} : vector<3x3x4x8xf32> to vector<1x1x4x8xf32>
    %33 = vector.shape_cast %32 : vector<1x1x4x8xf32> to vector<4x8xf32>
    %cst_23 = arith.constant dense<0.000000e+00> : vector<128x8xf32>
    %34 = tpu.matmul %31, %33, %cst_23 {dimension_numbers = #tpu.dot_dimension_numbers<[1], [0], [0], [1], [0, 0, 1, 1], [], []>} : vector<128x4xf32>, vector<4x8xf32>, vector<128x8xf32> -> vector<128x8xf32>
    %35 = arith.addf %29, %34 : vector<128x8xf32>
    %36 = vector.extract_strided_slice %15 {offsets = [0, 1, 0, 0], sizes = [2, 8, 8, 4], strides = [1, 1, 1, 1]} : vector<2x10x10x4xf32> to vector<2x8x8x4xf32>
    %37 = vector.shape_cast %36 : vector<2x8x8x4xf32> to vector<128x4xf32>
    %38 = vector.extract_strided_slice %16 {offsets = [1, 0, 0, 0], sizes = [1, 1, 4, 8], strides = [1, 1, 1, 1]} : vector<3x3x4x8xf32> to vector<1x1x4x8xf32>
    %39 = vector.shape_cast %38 : vector<1x1x4x8xf32> to vector<4x8xf32>
    %cst_24 = arith.constant dense<0.000000e+00> : vector<128x8xf32>
    %40 = tpu.matmul %37, %39, %cst_24 {dimension_numbers = #tpu.dot_dimension_numbers<[1], [0], [0], [1], [0, 0, 1, 1], [], []>} : vector<128x4xf32>, vector<4x8xf32>, vector<128x8xf32> -> vector<128x8xf32>
    %41 = arith.addf %35, %40 : vector<128x8xf32>
    %42 = vector.extract_strided_slice %15 {offsets = [0, 1, 1, 0], sizes = [2, 8, 8, 4], strides = [1, 1, 1, 1]} : vector<2x10x10x4xf32> to vector<2x8x8x4xf32>
    %43 = vector.shape_cast %42 : vector<2x8x8x4xf32> to vector<128x4xf32>
    %44 = vector.extract_strided_slice %16 {offsets = [1, 1, 0, 0], sizes = [1, 1, 4, 8], strides = [1, 1, 1, 1]} : vector<3x3x4x8xf32> to vector<1x1x4x8xf32>
    %45 = vector.shape_cast %44 : vector<1x1x4x8xf32> to vector<4x8xf32>
    %cst_25 = arith.constant dense<0.000000e+00> : vector<128x8xf32>
    %46 = tpu.matmul %43, %45, %cst_25 {dimension_numbers = #tpu.dot_dimension_numbers<[1], [0], [0], [1], [0, 0, 1, 1], [], []>} : vector<128x4xf32>, vector<4x8xf32>, vector<128x8xf32> -> vector<128x8xf32>
    %47 = arith.addf %41, %46 : vector<128x8xf32>
    %48 = vector.extract_strided_slice %15 {offsets = [0, 1, 2, 0], sizes = [2, 8, 8, 4], strides = [1, 1, 1, 1]} : vector<2x10x10x4xf32> to vector<2x8x8x4xf32>
    %49 = vector.shape_cast %48 : vector<2x8x8x4xf32> to vector<128x4xf32>
    %50 = vector.extract_strided_slice %16 {offsets = [1, 2, 0, 0], sizes = [1, 1, 4, 8], strides = [1, 1, 1, 1]} : vector<3x3x4x8xf32> to vector<1x1x4x8xf32>
    %51 = vector.shape_cast %50 : vector<1x1x4x8xf32> to vector<4x8xf32>
    %cst_26 = arith.constant dense<0.000000e+00> : vector<128x8xf32>
    %52 = tpu.matmul %49, %51, %cst_26 {dimension_numbers = #tpu.dot_dimension_numbers<[1], [0], [0], [1], [0, 0, 1, 1], [], []>} : vector<128x4xf32>, vector<4x8xf32>, vector<128x8xf32> -> vector<128x8xf32>
    %53 = arith.addf %47, %52 : vector<128x8xf32>
    %54 = vector.extract_strided_slice %15 {offsets = [0, 2, 0, 0], sizes = [2, 8, 8, 4], strides = [1, 1, 1, 1]} : vector<2x10x10x4xf32> to vector<2x8x8x4xf32>
    %55 = vector.shape_cast %54 : vector<2x8x8x4xf32> to vector<128x4xf32>
    %56 = vector.extract_strided_slice %16 {offsets = [2, 0, 0, 0], sizes = [1, 1, 4, 8], strides = [1, 1, 1, 1]} : vector<3x3x4x8xf32> to vector<1x1x4x8xf32>
    %57 = vector.shape_cast %56 : vector<1x1x4x8xf32> to vector<4x8xf32>
    %cst_27 = arith.constant dense<0.000000e+00> : vector<128x8xf32>
    %58 = tpu.matmul %55, %57, %cst_27 {dimension_numbers = #tpu.dot_dimension_numbers<[1], [0], [0], [1], [0, 0, 1, 1], [], []>} : vector<128x4xf32>, vector<4x8xf32>, vector<128x8xf32> -> vector<128x8xf32>
    %59 = arith.addf %53, %58 : vector<128x8xf32>
    %60 = vector.extract_strided_slice %15 {offsets = [0, 2, 1, 0], sizes = [2, 8, 8, 4], strides = [1, 1, 1, 1]} : vector<2x10x10x4xf32> to vector<2x8x8x4xf32>
    %61 = vector.shape_cast %60 : vector<2x8x8x4xf32> to vector<128x4xf32>
    %62 = vector.extract_strided_slice %16 {offsets = [2, 1, 0, 0], sizes = [1, 1, 4, 8], strides = [1, 1, 1, 1]} : vector<3x3x4x8xf32> to vector<1x1x4x8xf32>
    %63 = vector.shape_cast %62 : vector<1x1x4x8xf32> to vector<4x8xf32>
    %cst_28 = arith.constant dense<0.000000e+00> : vector<128x8xf32>
    %64 = tpu.matmul %61, %63, %cst_28 {dimension_numbers = #tpu.dot_dimension_numbers<[1], [0], [0], [1], [0, 0, 1, 1], [], []>} : vector<128x4xf32>, vector<4x8xf32>, vector<128x8xf32> -> vector<128x8xf32>
    %65 = arith.addf %59, %64 : vector<128x8xf32>
    %66 = vector.extract_strided_slice %15 {offsets = [0, 2, 2, 0], sizes = [2, 8, 8, 4], strides = [1, 1, 1, 1]} : vector<2x10x10x4xf32> to vector<2x8x8x4xf32>
    %67 = vector.shape_cast %66 : vector<2x8x8x4xf32> to vector<128x4xf32>
    %68 = vector.extract_strided_slice %16 {offsets = [2, 2, 0, 0], sizes = [1, 1, 4, 8], strides = [1, 1, 1, 1]} : vector<3x3x4x8xf32> to vector<1x1x4x8xf32>
    %69 = vector.shape_cast %68 : vector<1x1x4x8xf32> to vector<4x8xf32>
    %cst_29 = arith.constant dense<0.000000e+00> : vector<128x8xf32>
    %70 = tpu.matmul %67, %69, %cst_29 {dimension_numbers = #tpu.dot_dimension_numbers<[1], [0], [0], [1], [0, 0, 1, 1], [], []>} : vector<128x4xf32>, vector<4x8xf32>, vector<128x8xf32> -> vector<128x8xf32>
    %71 = arith.addf %65, %70 : vector<128x8xf32>
    %cst_30 = arith.constant dense<0.000000e+00> : vector<8xf32>
    %72 = vector.multi_reduction <add>, %71, %cst_30 [0] : vector<128x8xf32> to vector<8xf32>
    %73 = vector.shape_cast %72 : vector<8xf32> to vector<1x8xf32>
    %cst_31 = arith.constant 7.812500e-03 : f32
    %74 = vector.broadcast %cst_31 : f32 to vector<1x8xf32>
    %75 = arith.mulf %73, %74 : vector<1x8xf32>
    %76 = arith.mulf %71, %71 : vector<128x8xf32>
    %cst_32 = arith.constant dense<0.000000e+00> : vector<8xf32>
    %77 = vector.multi_reduction <add>, %76, %cst_32 [0] : vector<128x8xf32> to vector<8xf32>
    %78 = vector.shape_cast %77 : vector<8xf32> to vector<1x8xf32>
    %cst_33 = arith.constant 7.812500e-03 : f32
    %79 = vector.broadcast %cst_33 : f32 to vector<1x8xf32>
    %80 = arith.mulf %78, %79 : vector<1x8xf32>
    %81 = arith.mulf %75, %75 : vector<1x8xf32>
    %82 = arith.subf %80, %81 : vector<1x8xf32>
    %83 = vector.broadcast %75 : vector<1x8xf32> to vector<128x8xf32>
    %84 = arith.subf %71, %83 : vector<128x8xf32>
    %cst_34 = arith.constant 9.99999974E-6 : f32
    %85 = vector.broadcast %cst_34 : f32 to vector<1x8xf32>
    %86 = arith.addf %82, %85 : vector<1x8xf32>
    %87 = math.rsqrt %86 : vector<1x8xf32>
    %88 = vector.broadcast %87 : vector<1x8xf32> to vector<128x8xf32>
    %89 = arith.mulf %84, %88 : vector<128x8xf32>
    %c0_35 = arith.constant 0 : index
    %c0_36 = arith.constant 0 : index
    %90 = vector.load %arg3[%c0_35, %c0_36] : memref<1x8xf32, #tpu.memory_space<vmem>>, vector<1x8xf32>
    %91 = vector.broadcast %90 : vector<1x8xf32> to vector<128x8xf32>
    %92 = arith.mulf %89, %91 : vector<128x8xf32>
    %c0_37 = arith.constant 0 : index
    %c0_38 = arith.constant 0 : index
    %93 = vector.load %arg4[%c0_37, %c0_38] : memref<1x8xf32, #tpu.memory_space<vmem>>, vector<1x8xf32>
    %94 = vector.broadcast %93 : vector<1x8xf32> to vector<128x8xf32>
    %95 = arith.addf %92, %94 : vector<128x8xf32>
    %cst_39 = arith.constant 0.000000e+00 : f32
    %96 = vector.broadcast %cst_39 : f32 to vector<128x8xf32>
    %97 = arith.maximumf %95, %96 : vector<128x8xf32>
    %98 = vector.shape_cast %97 : vector<128x8xf32> to vector<2x8x8x8xf32>
    %cst_40 = arith.constant 0.000000e+00 : f32
    %99 = vector.broadcast %cst_40 : f32 to vector<2x10x10x8xf32>
    %c0_41 = arith.constant 0 : index
    %c0_42 = arith.constant 0 : index
    %c0_43 = arith.constant 0 : index
    %c0_44 = arith.constant 0 : index
    %100 = vector.load %arg9[%c0_41, %c0_42, %c0_43, %c0_44] : memref<2x10x10x8xf32, #tpu.memory_space<vmem>>, vector<2x10x10x8xf32>
    tpu.vector_store %arg9[%c0_41, %c0_42, %c0_43, %c0_44], %99 {strides = array<i32>} : memref<2x10x10x8xf32, #tpu.memory_space<vmem>>, vector<2x10x10x8xf32>,
    %c0_45 = arith.constant 0 : index
    %c1_46 = arith.constant 1 : index
    %c1_47 = arith.constant 1 : index
    %c0_48 = arith.constant 0 : index
    %101 = vector.load %arg9[%c0_45, %c1_46, %c1_47, %c0_48] : memref<2x10x10x8xf32, #tpu.memory_space<vmem>>, vector<2x8x8x8xf32>
    tpu.vector_store %arg9[%c0_45, %c1_46, %c1_47, %c0_48], %98 {strides = array<i32>} : memref<2x10x10x8xf32, #tpu.memory_space<vmem>>, vector<2x8x8x8xf32>,
    %c0_49 = arith.constant 0 : index
    %c0_50 = arith.constant 0 : index
    %c0_51 = arith.constant 0 : index
    %c0_52 = arith.constant 0 : index
    %102 = vector.load %arg9[%c0_49, %c0_50, %c0_51, %c0_52] : memref<2x10x10x8xf32, #tpu.memory_space<vmem>>, vector<2x10x10x8xf32>
    %c0_53 = arith.constant 0 : index
    %c0_54 = arith.constant 0 : index
    %c0_55 = arith.constant 0 : index
    %c0_56 = arith.constant 0 : index
    %103 = vector.load %arg2[%c0_53, %c0_54, %c0_55, %c0_56] : memref<3x3x8x8xf32, #tpu.memory_space<vmem>>, vector<3x3x8x8xf32>
    %cst_57 = arith.constant 0.000000e+00 : f32
    %104 = vector.broadcast %cst_57 : f32 to vector<8x128xf32>
    %105 = vector.extract_strided_slice %102 {offsets = [0, 0, 0, 0], sizes = [2, 8, 8, 8], strides = [1, 1, 1, 1]} : vector<2x10x10x8xf32> to vector<2x8x8x8xf32>
    %106 = vector.shape_cast %105 : vector<2x8x8x8xf32> to vector<128x8xf32>
    %107 = vector.extract_strided_slice %103 {offsets = [0, 0, 0, 0], sizes = [1, 1, 8, 8], strides = [1, 1, 1, 1]} : vector<3x3x8x8xf32> to vector<1x1x8x8xf32>
    %108 = vector.shape_cast %107 : vector<1x1x8x8xf32> to vector<8x8xf32>
    %cst_58 = arith.constant dense<0.000000e+00> : vector<8x128xf32>
    %109 = tpu.matmul %108, %106, %cst_58 {dimension_numbers = #tpu.dot_dimension_numbers<[1], [1], [0], [0], [0, 0, 1, 0], [], []>} : vector<8x8xf32>, vector<128x8xf32>, vector<8x128xf32> -> vector<8x128xf32>
    %110 = arith.addf %104, %109 : vector<8x128xf32>
    %111 = vector.extract_strided_slice %102 {offsets = [0, 0, 1, 0], sizes = [2, 8, 8, 8], strides = [1, 1, 1, 1]} : vector<2x10x10x8xf32> to vector<2x8x8x8xf32>
    %112 = vector.shape_cast %111 : vector<2x8x8x8xf32> to vector<128x8xf32>
    %113 = vector.extract_strided_slice %103 {offsets = [0, 1, 0, 0], sizes = [1, 1, 8, 8], strides = [1, 1, 1, 1]} : vector<3x3x8x8xf32> to vector<1x1x8x8xf32>
    %114 = vector.shape_cast %113 : vector<1x1x8x8xf32> to vector<8x8xf32>
    %cst_59 = arith.constant dense<0.000000e+00> : vector<8x128xf32>
    %115 = tpu.matmul %114, %112, %cst_59 {dimension_numbers = #tpu.dot_dimension_numbers<[1], [1], [0], [0], [0, 0, 1, 0], [], []>} : vector<8x8xf32>, vector<128x8xf32>, vector<8x128xf32> -> vector<8x128xf32>
    %116 = arith.addf %110, %115 : vector<8x128xf32>
    %117 = vector.extract_strided_slice %102 {offsets = [0, 0, 2, 0], sizes = [2, 8, 8, 8], strides = [1, 1, 1, 1]} : vector<2x10x10x8xf32> to vector<2x8x8x8xf32>
    %118 = vector.shape_cast %117 : vector<2x8x8x8xf32> to vector<128x8xf32>
    %119 = vector.extract_strided_slice %103 {offsets = [0, 2, 0, 0], sizes = [1, 1, 8, 8], strides = [1, 1, 1, 1]} : vector<3x3x8x8xf32> to vector<1x1x8x8xf32>
    %120 = vector.shape_cast %119 : vector<1x1x8x8xf32> to vector<8x8xf32>
    %cst_60 = arith.constant dense<0.000000e+00> : vector<8x128xf32>
    %121 = tpu.matmul %120, %118, %cst_60 {dimension_numbers = #tpu.dot_dimension_numbers<[1], [1], [0], [0], [0, 0, 1, 0], [], []>} : vector<8x8xf32>, vector<128x8xf32>, vector<8x128xf32> -> vector<8x128xf32>
    %122 = arith.addf %116, %121 : vector<8x128xf32>
    %123 = vector.extract_strided_slice %102 {offsets = [0, 1, 0, 0], sizes = [2, 8, 8, 8], strides = [1, 1, 1, 1]} : vector<2x10x10x8xf32> to vector<2x8x8x8xf32>
    %124 = vector.shape_cast %123 : vector<2x8x8x8xf32> to vector<128x8xf32>
    %125 = vector.extract_strided_slice %103 {offsets = [1, 0, 0, 0], sizes = [1, 1, 8, 8], strides = [1, 1, 1, 1]} : vector<3x3x8x8xf32> to vector<1x1x8x8xf32>
    %126 = vector.shape_cast %125 : vector<1x1x8x8xf32> to vector<8x8xf32>
    %cst_61 = arith.constant dense<0.000000e+00> : vector<8x128xf32>
    %127 = tpu.matmul %126, %124, %cst_61 {dimension_numbers = #tpu.dot_dimension_numbers<[1], [1], [0], [0], [0, 0, 1, 0], [], []>} : vector<8x8xf32>, vector<128x8xf32>, vector<8x128xf32> -> vector<8x128xf32>
    %128 = arith.addf %122, %127 : vector<8x128xf32>
    %129 = vector.extract_strided_slice %102 {offsets = [0, 1, 1, 0], sizes = [2, 8, 8, 8], strides = [1, 1, 1, 1]} : vector<2x10x10x8xf32> to vector<2x8x8x8xf32>
    %130 = vector.shape_cast %129 : vector<2x8x8x8xf32> to vector<128x8xf32>
    %131 = vector.extract_strided_slice %103 {offsets = [1, 1, 0, 0], sizes = [1, 1, 8, 8], strides = [1, 1, 1, 1]} : vector<3x3x8x8xf32> to vector<1x1x8x8xf32>
    %132 = vector.shape_cast %131 : vector<1x1x8x8xf32> to vector<8x8xf32>
    %cst_62 = arith.constant dense<0.000000e+00> : vector<8x128xf32>
    %133 = tpu.matmul %132, %130, %cst_62 {dimension_numbers = #tpu.dot_dimension_numbers<[1], [1], [0], [0], [0, 0, 1, 0], [], []>} : vector<8x8xf32>, vector<128x8xf32>, vector<8x128xf32> -> vector<8x128xf32>
    %134 = arith.addf %128, %133 : vector<8x128xf32>
    %135 = vector.extract_strided_slice %102 {offsets = [0, 1, 2, 0], sizes = [2, 8, 8, 8], strides = [1, 1, 1, 1]} : vector<2x10x10x8xf32> to vector<2x8x8x8xf32>
    %136 = vector.shape_cast %135 : vector<2x8x8x8xf32> to vector<128x8xf32>
    %137 = vector.extract_strided_slice %103 {offsets = [1, 2, 0, 0], sizes = [1, 1, 8, 8], strides = [1, 1, 1, 1]} : vector<3x3x8x8xf32> to vector<1x1x8x8xf32>
    %138 = vector.shape_cast %137 : vector<1x1x8x8xf32> to vector<8x8xf32>
    %cst_63 = arith.constant dense<0.000000e+00> : vector<8x128xf32>
    %139 = tpu.matmul %138, %136, %cst_63 {dimension_numbers = #tpu.dot_dimension_numbers<[1], [1], [0], [0], [0, 0, 1, 0], [], []>} : vector<8x8xf32>, vector<128x8xf32>, vector<8x128xf32> -> vector<8x128xf32>
    %140 = arith.addf %134, %139 : vector<8x128xf32>
    %141 = vector.extract_strided_slice %102 {offsets = [0, 2, 0, 0], sizes = [2, 8, 8, 8], strides = [1, 1, 1, 1]} : vector<2x10x10x8xf32> to vector<2x8x8x8xf32>
    %142 = vector.shape_cast %141 : vector<2x8x8x8xf32> to vector<128x8xf32>
    %143 = vector.extract_strided_slice %103 {offsets = [2, 0, 0, 0], sizes = [1, 1, 8, 8], strides = [1, 1, 1, 1]} : vector<3x3x8x8xf32> to vector<1x1x8x8xf32>
    %144 = vector.shape_cast %143 : vector<1x1x8x8xf32> to vector<8x8xf32>
    %cst_64 = arith.constant dense<0.000000e+00> : vector<8x128xf32>
    %145 = tpu.matmul %144, %142, %cst_64 {dimension_numbers = #tpu.dot_dimension_numbers<[1], [1], [0], [0], [0, 0, 1, 0], [], []>} : vector<8x8xf32>, vector<128x8xf32>, vector<8x128xf32> -> vector<8x128xf32>
    %146 = arith.addf %140, %145 : vector<8x128xf32>
    %147 = vector.extract_strided_slice %102 {offsets = [0, 2, 1, 0], sizes = [2, 8, 8, 8], strides = [1, 1, 1, 1]} : vector<2x10x10x8xf32> to vector<2x8x8x8xf32>
    %148 = vector.shape_cast %147 : vector<2x8x8x8xf32> to vector<128x8xf32>
    %149 = vector.extract_strided_slice %103 {offsets = [2, 1, 0, 0], sizes = [1, 1, 8, 8], strides = [1, 1, 1, 1]} : vector<3x3x8x8xf32> to vector<1x1x8x8xf32>
    %150 = vector.shape_cast %149 : vector<1x1x8x8xf32> to vector<8x8xf32>
    %cst_65 = arith.constant dense<0.000000e+00> : vector<8x128xf32>
    %151 = tpu.matmul %150, %148, %cst_65 {dimension_numbers = #tpu.dot_dimension_numbers<[1], [1], [0], [0], [0, 0, 1, 0], [], []>} : vector<8x8xf32>, vector<128x8xf32>, vector<8x128xf32> -> vector<8x128xf32>
    %152 = arith.addf %146, %151 : vector<8x128xf32>
    %153 = vector.extract_strided_slice %102 {offsets = [0, 2, 2, 0], sizes = [2, 8, 8, 8], strides = [1, 1, 1, 1]} : vector<2x10x10x8xf32> to vector<2x8x8x8xf32>
    %154 = vector.shape_cast %153 : vector<2x8x8x8xf32> to vector<128x8xf32>
    %155 = vector.extract_strided_slice %103 {offsets = [2, 2, 0, 0], sizes = [1, 1, 8, 8], strides = [1, 1, 1, 1]} : vector<3x3x8x8xf32> to vector<1x1x8x8xf32>
    %156 = vector.shape_cast %155 : vector<1x1x8x8xf32> to vector<8x8xf32>
    %cst_66 = arith.constant dense<0.000000e+00> : vector<8x128xf32>
    %157 = tpu.matmul %156, %154, %cst_66 {dimension_numbers = #tpu.dot_dimension_numbers<[1], [1], [0], [0], [0, 0, 1, 0], [], []>} : vector<8x8xf32>, vector<128x8xf32>, vector<8x128xf32> -> vector<8x128xf32>
    %158 = arith.addf %152, %157 : vector<8x128xf32>
    %cst_67 = arith.constant dense<0.000000e+00> : vector<8xf32>
    %159 = vector.multi_reduction <add>, %158, %cst_67 [1] : vector<8x128xf32> to vector<8xf32>
    %160 = vector.shape_cast %159 : vector<8xf32> to vector<8x1xf32>
    %cst_68 = arith.constant 7.812500e-03 : f32
    %161 = vector.broadcast %cst_68 : f32 to vector<8x1xf32>
    %162 = arith.mulf %160, %161 : vector<8x1xf32>
    %163 = arith.mulf %158, %158 : vector<8x128xf32>
    %cst_69 = arith.constant dense<0.000000e+00> : vector<8xf32>
    %164 = vector.multi_reduction <add>, %163, %cst_69 [1] : vector<8x128xf32> to vector<8xf32>
    %165 = vector.shape_cast %164 : vector<8xf32> to vector<8x1xf32>
    %cst_70 = arith.constant 7.812500e-03 : f32
    %166 = vector.broadcast %cst_70 : f32 to vector<8x1xf32>
    %167 = arith.mulf %165, %166 : vector<8x1xf32>
    %168 = arith.mulf %162, %162 : vector<8x1xf32>
    %169 = arith.subf %167, %168 : vector<8x1xf32>
    %170 = vector.broadcast %162 : vector<8x1xf32> to vector<8x128xf32>
    %171 = arith.subf %158, %170 : vector<8x128xf32>
    %cst_71 = arith.constant 9.99999974E-6 : f32
    %172 = vector.broadcast %cst_71 : f32 to vector<8x1xf32>
    %173 = arith.addf %169, %172 : vector<8x1xf32>
    %174 = math.rsqrt %173 : vector<8x1xf32>
    %175 = vector.broadcast %174 : vector<8x1xf32> to vector<8x128xf32>
    %176 = arith.mulf %171, %175 : vector<8x128xf32>
    %c0_72 = arith.constant 0 : index
    %c0_73 = arith.constant 0 : index
    %177 = vector.load %arg5[%c0_72, %c0_73] : memref<8x1xf32, #tpu.memory_space<vmem>>, vector<8x1xf32>
    %178 = vector.broadcast %177 : vector<8x1xf32> to vector<8x128xf32>
    %179 = arith.mulf %176, %178 : vector<8x128xf32>
    %c0_74 = arith.constant 0 : index
    %c0_75 = arith.constant 0 : index
    %180 = vector.load %arg6[%c0_74, %c0_75] : memref<8x1xf32, #tpu.memory_space<vmem>>, vector<8x1xf32>
    %181 = vector.broadcast %180 : vector<8x1xf32> to vector<8x128xf32>
    %182 = arith.addf %179, %181 : vector<8x128xf32>
    %cst_76 = arith.constant 0.000000e+00 : f32
    %183 = vector.broadcast %cst_76 : f32 to vector<8x128xf32>
    %184 = arith.maximumf %182, %183 : vector<8x128xf32>
    %c0_77 = arith.constant 0 : index
    %c0_78 = arith.constant 0 : index
    %185 = vector.load %arg7[%c0_77, %c0_78] : memref<8x128xf32, #tpu.memory_space<vmem>>, vector<8x128xf32>
    tpu.vector_store %arg7[%c0_77, %c0_78], %184 {strides = array<i32>} : memref<8x128xf32, #tpu.memory_space<vmem>>, vector<8x128xf32>,
    return
  }
}

</mosaic_0001>

<llo_original>
// kernel: down_forward.1
$region0: #{down_forward.1}
  #allocation0 [shape = 'u32[]', space=smem, size = 0x4, offset = 0x4, fixed_abs, tag = 'smem constant byte address 0x4 - core index']
  #allocation1 [shape = 'u32[144,128]{1,0:T(1,128)}', space=vmem, size = 0x12000, scoped, tag = 'internal scratch']
  #allocation2 [shape = 'f32[2,10,10,4]{3,2,1,0:T(8,128)}', space=vmem, size = 0x28000, scoped, tag = 'scratch operand']
  #allocation3 [shape = 'f32[2,10,10,8]{3,2,1,0:T(8,128)}', space=vmem, size = 0x28000, scoped, tag = 'scratch operand']
  %s0 = inlined_call_operand.vmem [shape: f32[2,8,2,8,2,4], index: 0, kind: input, shape index: {}]
  %s1 = inlined_call_operand.vmem [shape: f32[3,3,4,8], index: 1, kind: input, shape index: {}]
  %s2 = inlined_call_operand.vmem [shape: f32[3,3,8,8], index: 2, kind: input, shape index: {}]
  %s3 = inlined_call_operand.vmem [shape: f32[1,8], index: 3, kind: input, shape index: {}]
  %s4 = inlined_call_operand.vmem [shape: f32[1,8], index: 4, kind: input, shape index: {}]
  %s5 = inlined_call_operand.vmem [shape: f32[8,1], index: 5, kind: input, shape index: {}]
  %s6 = inlined_call_operand.vmem [shape: f32[8,1], index: 6, kind: input, shape index: {}]
  %s7 = inlined_call_operand.vmem [shape: f32[8,128], index: 7, kind: output, shape index: {}]
  %s8 = sld [smem:[#allocation0]]
  $region38: #{down_forward.1} parent=0
    _
  %s10 = ssub.s32 1, %s8
  %s11 = scalar_select 0, %s10, %s8
  // Predicated region
  $region2: #{down_forward.1} parent=0 // pred_check
    _
  $region3: #{down_forward.1} parent=0 // pred_check_branch
    %13 = sbr.rel (0) target = $region5
  $region4: #{down_forward.1} parent=0 // pred_region
    _
  $region5: #{down_forward.1} parent=0 // pred_fallthru
    _
  // Predicated region
  $region6: #{down_forward.1} parent=0 // pred_check
    _
  $region7: #{down_forward.1} parent=0 // pred_check_branch
    %15 = sbr.rel (0) target = $region9
  $region8: #{down_forward.1} parent=0 // pred_region
    _
  $region9: #{down_forward.1} parent=0 // pred_fallthru
    _
  // Predicated region
  $region10: #{down_forward.1} parent=0 // pred_check
    _
  $region11: #{down_forward.1} parent=0 // pred_check_branch
    %17 = sbr.rel (0) target = $region13
  $region12: #{down_forward.1} parent=0 // pred_region
    _
  $region13: #{down_forward.1} parent=0 // pred_fallthru
    _
  // Predicated region
  $region14: #{down_forward.1} parent=0 // pred_check
    _
  $region15: #{down_forward.1} parent=0 // pred_check_branch
    %19 = sbr.rel (0) target = $region17
  $region16: #{down_forward.1} parent=0 // pred_region
    _
  $region17: #{down_forward.1} parent=0 // pred_fallthru
    _
  // Predicated region
  $region18: #{down_forward.1} parent=0 // pred_check
    _
  $region19: #{down_forward.1} parent=0 // pred_check_branch
    %21 = sbr.rel (0) target = $region21
  $region20: #{down_forward.1} parent=0 // pred_region
    _
  $region21: #{down_forward.1} parent=0 // pred_fallthru
    _
  // Predicated region
  $region22: #{down_forward.1} parent=0 // pred_check
    _
  $region23: #{down_forward.1} parent=0 // pred_check_branch
    %23 = sbr.rel (0) target = $region25
  $region24: #{down_forward.1} parent=0 // pred_region
    _
  $region25: #{down_forward.1} parent=0 // pred_fallthru
    _
  // Predicated region
  $region26: #{down_forward.1} parent=0 // pred_check
    _
  $region27: #{down_forward.1} parent=0 // pred_check_branch
    %25 = sbr.rel (0) target = $region29
  $region28: #{down_forward.1} parent=0 // pred_region
    _
  $region29: #{down_forward.1} parent=0 // pred_fallthru
    _
  %v26 = vld [vmem:[%s0] sm:$0x3]
  %v27 = vld [vmem:[%s0 + $0x2] sm:$0x3]
  %v28 = vld [vmem:[%s0 + $0x4] sm:$0x3]
  %v29 = vld [vmem:[%s0 + $0x6] sm:$0x3]
  %v30 = vld [vmem:[%s0 + $0x8] sm:$0x3]
  %v31 = vld [vmem:[%s0 + $0xa] sm:$0x3]
  %v32 = vld [vmem:[%s0 + $0xc] sm:$0x3]
  %v33 = vld [vmem:[%s0 + $0xe] sm:$0x3]
  %v34 = vld [vmem:[%s0 + $0x10] sm:$0x3]
  %v35 = vld [vmem:[%s0 + $0x12] sm:$0x3]
  %v36 = vld [vmem:[%s0 + $0x14] sm:$0x3]
  %v37 = vld [vmem:[%s0 + $0x16] sm:$0x3]
  %v38 = vld [vmem:[%s0 + $0x18] sm:$0x3]
  %v39 = vld [vmem:[%s0 + $0x1a] sm:$0x3]
  %v40 = vld [vmem:[%s0 + $0x1c] sm:$0x3]
  %v41 = vld [vmem:[%s0 + $0x1e] sm:$0x3]
  %v42 = vld [vmem:[%s0 + $0x20] sm:$0x3]
  %v43 = vld [vmem:[%s0 + $0x22] sm:$0x3]
  %v44 = vld [vmem:[%s0 + $0x24] sm:$0x3]
  %v45 = vld [vmem:[%s0 + $0x26] sm:$0x3]
  %v46 = vld [vmem:[%s0 + $0x28] sm:$0x3]
  %v47 = vld [vmem:[%s0 + $0x2a] sm:$0x3]
  %v48 = vld [vmem:[%s0 + $0x2c] sm:$0x3]
  %v49 = vld [vmem:[%s0 + $0x2e] sm:$0x3]
  %v50 = vld [vmem:[%s0 + $0x30] sm:$0x3]
  %v51 = vld [vmem:[%s0 + $0x32] sm:$0x3]
  %v52 = vld [vmem:[%s0 + $0x34] sm:$0x3]
  %v53 = vld [vmem:[%s0 + $0x36] sm:$0x3]
  %v54 = vld [vmem:[%s0 + $0x38] sm:$0x3]
  %v55 = vld [vmem:[%s0 + $0x3a] sm:$0x3]
  %v56 = vld [vmem:[%s0 + $0x3c] sm:$0x3]
  %v57 = vld [vmem:[%s0 + $0x3e] sm:$0x3]
  %v58 = vld [vmem:[%s0 + $0x40] sm:$0x3]
  %v59 = vld [vmem:[%s0 + $0x42] sm:$0x3]
  %v60 = vld [vmem:[%s0 + $0x44] sm:$0x3]
  %v61 = vld [vmem:[%s0 + $0x46] sm:$0x3]
  %v62 = vld [vmem:[%s0 + $0x48] sm:$0x3]
  %v63 = vld [vmem:[%s0 + $0x4a] sm:$0x3]
  %v64 = vld [vmem:[%s0 + $0x4c] sm:$0x3]
  %v65 = vld [vmem:[%s0 + $0x4e] sm:$0x3]
  %v66 = vld [vmem:[%s0 + $0x50] sm:$0x3]
  %v67 = vld [vmem:[%s0 + $0x52] sm:$0x3]
  %v68 = vld [vmem:[%s0 + $0x54] sm:$0x3]
  %v69 = vld [vmem:[%s0 + $0x56] sm:$0x3]
  %v70 = vld [vmem:[%s0 + $0x58] sm:$0x3]
  %v71 = vld [vmem:[%s0 + $0x5a] sm:$0x3]
  %v72 = vld [vmem:[%s0 + $0x5c] sm:$0x3]
  %v73 = vld [vmem:[%s0 + $0x5e] sm:$0x3]
  %v74 = vld [vmem:[%s0 + $0x60] sm:$0x3]
  %v75 = vld [vmem:[%s0 + $0x62] sm:$0x3]
  %v76 = vld [vmem:[%s0 + $0x64] sm:$0x3]
  %v77 = vld [vmem:[%s0 + $0x66] sm:$0x3]
  %v78 = vld [vmem:[%s0 + $0x68] sm:$0x3]
  %v79 = vld [vmem:[%s0 + $0x6a] sm:$0x3]
  %v80 = vld [vmem:[%s0 + $0x6c] sm:$0x3]
  %v81 = vld [vmem:[%s0 + $0x6e] sm:$0x3]
  %v82 = vld [vmem:[%s0 + $0x70] sm:$0x3]
  %v83 = vld [vmem:[%s0 + $0x72] sm:$0x3]
  %v84 = vld [vmem:[%s0 + $0x74] sm:$0x3]
  %v85 = vld [vmem:[%s0 + $0x76] sm:$0x3]
  %v86 = vld [vmem:[%s0 + $0x78] sm:$0x3]
  %v87 = vld [vmem:[%s0 + $0x7a] sm:$0x3]
  %v88 = vld [vmem:[%s0 + $0x7c] sm:$0x3]
  %v89 = vld [vmem:[%s0 + $0x7e] sm:$0x3]
  %v90 = vld [vmem:[%s0 + $0x80] sm:$0x3]
  %v91 = vld [vmem:[%s0 + $0x82] sm:$0x3]
  %v92 = vld [vmem:[%s0 + $0x84] sm:$0x3]
  %v93 = vld [vmem:[%s0 + $0x86] sm:$0x3]
  %v94 = vld [vmem:[%s0 + $0x88] sm:$0x3]
  %v95 = vld [vmem:[%s0 + $0x8a] sm:$0x3]
  %v96 = vld [vmem:[%s0 + $0x8c] sm:$0x3]
  %v97 = vld [vmem:[%s0 + $0x8e] sm:$0x3]
  %v98 = vld [vmem:[%s0 + $0x90] sm:$0x3]
  %v99 = vld [vmem:[%s0 + $0x92] sm:$0x3]
  %v100 = vld [vmem:[%s0 + $0x94] sm:$0x3]
  %v101 = vld [vmem:[%s0 + $0x96] sm:$0x3]
  %v102 = vld [vmem:[%s0 + $0x98] sm:$0x3]
  %v103 = vld [vmem:[%s0 + $0x9a] sm:$0x3]
  %v104 = vld [vmem:[%s0 + $0x9c] sm:$0x3]
  %v105 = vld [vmem:[%s0 + $0x9e] sm:$0x3]
  %v106 = vld [vmem:[%s0 + $0xa0] sm:$0x3]
  %v107 = vld [vmem:[%s0 + $0xa2] sm:$0x3]
  %v108 = vld [vmem:[%s0 + $0xa4] sm:$0x3]
  %v109 = vld [vmem:[%s0 + $0xa6] sm:$0x3]
  %v110 = vld [vmem:[%s0 + $0xa8] sm:$0x3]
  %v111 = vld [vmem:[%s0 + $0xaa] sm:$0x3]
  %v112 = vld [vmem:[%s0 + $0xac] sm:$0x3]
  %v113 = vld [vmem:[%s0 + $0xae] sm:$0x3]
  %v114 = vld [vmem:[%s0 + $0xb0] sm:$0x3]
  %v115 = vld [vmem:[%s0 + $0xb2] sm:$0x3]
  %v116 = vld [vmem:[%s0 + $0xb4] sm:$0x3]
  %v117 = vld [vmem:[%s0 + $0xb6] sm:$0x3]
  %v118 = vld [vmem:[%s0 + $0xb8] sm:$0x3]
  %v119 = vld [vmem:[%s0 + $0xba] sm:$0x3]
  %v120 = vld [vmem:[%s0 + $0xbc] sm:$0x3]
  %v121 = vld [vmem:[%s0 + $0xbe] sm:$0x3]
  %v122 = vld [vmem:[%s0 + $0xc0] sm:$0x3]
  %v123 = vld [vmem:[%s0 + $0xc2] sm:$0x3]
  %v124 = vld [vmem:[%s0 + $0xc4] sm:$0x3]
  %v125 = vld [vmem:[%s0 + $0xc6] sm:$0x3]
  %v126 = vld [vmem:[%s0 + $0xc8] sm:$0x3]
  %v127 = vld [vmem:[%s0 + $0xca] sm:$0x3]
  %v128 = vld [vmem:[%s0 + $0xcc] sm:$0x3]
  %v129 = vld [vmem:[%s0 + $0xce] sm:$0x3]
  %v130 = vld [vmem:[%s0 + $0xd0] sm:$0x3]
  %v131 = vld [vmem:[%s0 + $0xd2] sm:$0x3]
  %v132 = vld [vmem:[%s0 + $0xd4] sm:$0x3]
  %v133 = vld [vmem:[%s0 + $0xd6] sm:$0x3]
  %v134 = vld [vmem:[%s0 + $0xd8] sm:$0x3]
  %v135 = vld [vmem:[%s0 + $0xda] sm:$0x3]
  %v136 = vld [vmem:[%s0 + $0xdc] sm:$0x3]
  %v137 = vld [vmem:[%s0 + $0xde] sm:$0x3]
  %v138 = vld [vmem:[%s0 + $0xe0] sm:$0x3]
  %v139 = vld [vmem:[%s0 + $0xe2] sm:$0x3]
  %v140 = vld [vmem:[%s0 + $0xe4] sm:$0x3]
  %v141 = vld [vmem:[%s0 + $0xe6] sm:$0x3]
  %v142 = vld [vmem:[%s0 + $0xe8] sm:$0x3]
  %v143 = vld [vmem:[%s0 + $0xea] sm:$0x3]
  %v144 = vld [vmem:[%s0 + $0xec] sm:$0x3]
  %v145 = vld [vmem:[%s0 + $0xee] sm:$0x3]
  %v146 = vld [vmem:[%s0 + $0xf0] sm:$0x3]
  %v147 = vld [vmem:[%s0 + $0xf2] sm:$0x3]
  %v148 = vld [vmem:[%s0 + $0xf4] sm:$0x3]
  %v149 = vld [vmem:[%s0 + $0xf6] sm:$0x3]
  %v150 = vld [vmem:[%s0 + $0xf8] sm:$0x3]
  %v151 = vld [vmem:[%s0 + $0xfa] sm:$0x3]
  %v152 = vld [vmem:[%s0 + $0xfc] sm:$0x3]
  %v153 = vld [vmem:[%s0 + $0xfe] sm:$0x3]
  %v154 = vld [vmem:[%s0 + $0x100] sm:$0x3]
  %v155 = vld [vmem:[%s0 + $0x102] sm:$0x3]
  %v156 = vld [vmem:[%s0 + $0x104] sm:$0x3]
  %v157 = vld [vmem:[%s0 + $0x106] sm:$0x3]
  %v158 = vld [vmem:[%s0 + $0x108] sm:$0x3]
  %v159 = vld [vmem:[%s0 + $0x10a] sm:$0x3]
  %v160 = vld [vmem:[%s0 + $0x10c] sm:$0x3]
  %v161 = vld [vmem:[%s0 + $0x10e] sm:$0x3]
  %v162 = vld [vmem:[%s0 + $0x110] sm:$0x3]
  %v163 = vld [vmem:[%s0 + $0x112] sm:$0x3]
  %v164 = vld [vmem:[%s0 + $0x114] sm:$0x3]
  %v165 = vld [vmem:[%s0 + $0x116] sm:$0x3]
  %v166 = vld [vmem:[%s0 + $0x118] sm:$0x3]
  %v167 = vld [vmem:[%s0 + $0x11a] sm:$0x3]
  %v168 = vld [vmem:[%s0 + $0x11c] sm:$0x3]
  %v169 = vld [vmem:[%s0 + $0x11e] sm:$0x3]
  %v170 = vld [vmem:[%s0 + $0x120] sm:$0x3]
  %v171 = vld [vmem:[%s0 + $0x122] sm:$0x3]
  %v172 = vld [vmem:[%s0 + $0x124] sm:$0x3]
  %v173 = vld [vmem:[%s0 + $0x126] sm:$0x3]
  %v174 = vld [vmem:[%s0 + $0x128] sm:$0x3]
  %v175 = vld [vmem:[%s0 + $0x12a] sm:$0x3]
  %v176 = vld [vmem:[%s0 + $0x12c] sm:$0x3]
  %v177 = vld [vmem:[%s0 + $0x12e] sm:$0x3]
  %v178 = vld [vmem:[%s0 + $0x130] sm:$0x3]
  %v179 = vld [vmem:[%s0 + $0x132] sm:$0x3]
  %v180 = vld [vmem:[%s0 + $0x134] sm:$0x3]
  %v181 = vld [vmem:[%s0 + $0x136] sm:$0x3]
  %v182 = vld [vmem:[%s0 + $0x138] sm:$0x3]
  %v183 = vld [vmem:[%s0 + $0x13a] sm:$0x3]
  %v184 = vld [vmem:[%s0 + $0x13c] sm:$0x3]
  %v185 = vld [vmem:[%s0 + $0x13e] sm:$0x3]
  %v186 = vld [vmem:[%s0 + $0x140] sm:$0x3]
  %v187 = vld [vmem:[%s0 + $0x142] sm:$0x3]
  %v188 = vld [vmem:[%s0 + $0x144] sm:$0x3]
  %v189 = vld [vmem:[%s0 + $0x146] sm:$0x3]
  %v190 = vld [vmem:[%s0 + $0x148] sm:$0x3]
  %v191 = vld [vmem:[%s0 + $0x14a] sm:$0x3]
  %v192 = vld [vmem:[%s0 + $0x14c] sm:$0x3]
  %v193 = vld [vmem:[%s0 + $0x14e] sm:$0x3]
  %v194 = vld [vmem:[%s0 + $0x150] sm:$0x3]
  %v195 = vld [vmem:[%s0 + $0x152] sm:$0x3]
  %v196 = vld [vmem:[%s0 + $0x154] sm:$0x3]
  %v197 = vld [vmem:[%s0 + $0x156] sm:$0x3]
  %v198 = vld [vmem:[%s0 + $0x158] sm:$0x3]
  %v199 = vld [vmem:[%s0 + $0x15a] sm:$0x3]
  %v200 = vld [vmem:[%s0 + $0x15c] sm:$0x3]
  %v201 = vld [vmem:[%s0 + $0x15e] sm:$0x3]
  %v202 = vld [vmem:[%s0 + $0x160] sm:$0x3]
  %v203 = vld [vmem:[%s0 + $0x162] sm:$0x3]
  %v204 = vld [vmem:[%s0 + $0x164] sm:$0x3]
  %v205 = vld [vmem:[%s0 + $0x166] sm:$0x3]
  %v206 = vld [vmem:[%s0 + $0x168] sm:$0x3]
  %v207 = vld [vmem:[%s0 + $0x16a] sm:$0x3]
  %v208 = vld [vmem:[%s0 + $0x16c] sm:$0x3]
  %v209 = vld [vmem:[%s0 + $0x16e] sm:$0x3]
  %v210 = vld [vmem:[%s0 + $0x170] sm:$0x3]
  %v211 = vld [vmem:[%s0 + $0x172] sm:$0x3]
  %v212 = vld [vmem:[%s0 + $0x174] sm:$0x3]
  %v213 = vld [vmem:[%s0 + $0x176] sm:$0x3]
  %v214 = vld [vmem:[%s0 + $0x178] sm:$0x3]
  %v215 = vld [vmem:[%s0 + $0x17a] sm:$0x3]
  %v216 = vld [vmem:[%s0 + $0x17c] sm:$0x3]
  %v217 = vld [vmem:[%s0 + $0x17e] sm:$0x3]
  %v218 = vld [vmem:[%s0 + $0x180] sm:$0x3]
  %v219 = vld [vmem:[%s0 + $0x182] sm:$0x3]
  %v220 = vld [vmem:[%s0 + $0x184] sm:$0x3]
  %v221 = vld [vmem:[%s0 + $0x186] sm:$0x3]
  %v222 = vld [vmem:[%s0 + $0x188] sm:$0x3]
  %v223 = vld [vmem:[%s0 + $0x18a] sm:$0x3]
  %v224 = vld [vmem:[%s0 + $0x18c] sm:$0x3]
  %v225 = vld [vmem:[%s0 + $0x18e] sm:$0x3]
  %v226 = vld [vmem:[%s0 + $0x190] sm:$0x3]
  %v227 = vld [vmem:[%s0 + $0x192] sm:$0x3]
  %v228 = vld [vmem:[%s0 + $0x194] sm:$0x3]
  %v229 = vld [vmem:[%s0 + $0x196] sm:$0x3]
  %v230 = vld [vmem:[%s0 + $0x198] sm:$0x3]
  %v231 = vld [vmem:[%s0 + $0x19a] sm:$0x3]
  %v232 = vld [vmem:[%s0 + $0x19c] sm:$0x3]
  %v233 = vld [vmem:[%s0 + $0x19e] sm:$0x3]
  %v234 = vld [vmem:[%s0 + $0x1a0] sm:$0x3]
  %v235 = vld [vmem:[%s0 + $0x1a2] sm:$0x3]
  %v236 = vld [vmem:[%s0 + $0x1a4] sm:$0x3]
  %v237 = vld [vmem:[%s0 + $0x1a6] sm:$0x3]
  %v238 = vld [vmem:[%s0 + $0x1a8] sm:$0x3]
  %v239 = vld [vmem:[%s0 + $0x1aa] sm:$0x3]
  %v240 = vld [vmem:[%s0 + $0x1ac] sm:$0x3]
  %v241 = vld [vmem:[%s0 + $0x1ae] sm:$0x3]
  %v242 = vld [vmem:[%s0 + $0x1b0] sm:$0x3]
  %v243 = vld [vmem:[%s0 + $0x1b2] sm:$0x3]
  %v244 = vld [vmem:[%s0 + $0x1b4] sm:$0x3]
  %v245 = vld [vmem:[%s0 + $0x1b6] sm:$0x3]
  %v246 = vld [vmem:[%s0 + $0x1b8] sm:$0x3]
  %v247 = vld [vmem:[%s0 + $0x1ba] sm:$0x3]
  %v248 = vld [vmem:[%s0 + $0x1bc] sm:$0x3]
  %v249 = vld [vmem:[%s0 + $0x1be] sm:$0x3]
  %v250 = vld [vmem:[%s0 + $0x1c0] sm:$0x3]
  %v251 = vld [vmem:[%s0 + $0x1c2] sm:$0x3]
  %v252 = vld [vmem:[%s0 + $0x1c4] sm:$0x3]
  %v253 = vld [vmem:[%s0 + $0x1c6] sm:$0x3]
  %v254 = vld [vmem:[%s0 + $0x1c8] sm:$0x3]
  %v255 = vld [vmem:[%s0 + $0x1ca] sm:$0x3]
  %v256 = vld [vmem:[%s0 + $0x1cc] sm:$0x3]
  %v257 = vld [vmem:[%s0 + $0x1ce] sm:$0x3]
  %v258 = vld [vmem:[%s0 + $0x1d0] sm:$0x3]
  %v259 = vld [vmem:[%s0 + $0x1d2] sm:$0x3]
  %v260 = vld [vmem:[%s0 + $0x1d4] sm:$0x3]
  %v261 = vld [vmem:[%s0 + $0x1d6] sm:$0x3]
  %v262 = vld [vmem:[%s0 + $0x1d8] sm:$0x3]
  %v263 = vld [vmem:[%s0 + $0x1da] sm:$0x3]
  %v264 = vld [vmem:[%s0 + $0x1dc] sm:$0x3]
  %v265 = vld [vmem:[%s0 + $0x1de] sm:$0x3]
  %v266 = vld [vmem:[%s0 + $0x1e0] sm:$0x3]
  %v267 = vld [vmem:[%s0 + $0x1e2] sm:$0x3]
  %v268 = vld [vmem:[%s0 + $0x1e4] sm:$0x3]
  %v269 = vld [vmem:[%s0 + $0x1e6] sm:$0x3]
  %v270 = vld [vmem:[%s0 + $0x1e8] sm:$0x3]
  %v271 = vld [vmem:[%s0 + $0x1ea] sm:$0x3]
  %v272 = vld [vmem:[%s0 + $0x1ec] sm:$0x3]
  %v273 = vld [vmem:[%s0 + $0x1ee] sm:$0x3]
  %v274 = vld [vmem:[%s0 + $0x1f0] sm:$0x3]
  %v275 = vld [vmem:[%s0 + $0x1f2] sm:$0x3]
  %v276 = vld [vmem:[%s0 + $0x1f4] sm:$0x3]
  %v277 = vld [vmem:[%s0 + $0x1f6] sm:$0x3]
  %v278 = vld [vmem:[%s0 + $0x1f8] sm:$0x3]
  %v279 = vld [vmem:[%s0 + $0x1fa] sm:$0x3]
  %v280 = vld [vmem:[%s0 + $0x1fc] sm:$0x3]
  %v281 = vld [vmem:[%s0 + $0x1fe] sm:$0x3]
  %v410 = vrot.slane %v26, 1
  %v411 = vrot.slane %v27, 1
  %v412 = vrot.slane %v28, 1
  %v413 = vrot.slane %v29, 1
  %v414 = vrot.slane %v30, 1
  %v415 = vrot.slane %v31, 1
  %v416 = vrot.slane %v32, 1
  %v417 = vrot.slane %v33, 1
  %v418 = vrot.slane %v42, 1
  %v419 = vrot.slane %v43, 1
  %v420 = vrot.slane %v44, 1
  %v421 = vrot.slane %v45, 1
  %v422 = vrot.slane %v46, 1
  %v423 = vrot.slane %v47, 1
  %v424 = vrot.slane %v48, 1
  %v425 = vrot.slane %v49, 1
  %v426 = vrot.slane %v58, 1
  %v427 = vrot.slane %v59, 1
  %v428 = vrot.slane %v60, 1
  %v429 = vrot.slane %v61, 1
  %v430 = vrot.slane %v62, 1
  %v431 = vrot.slane %v63, 1
  %v432 = vrot.slane %v64, 1
  %v433 = vrot.slane %v65, 1
  %v434 = vrot.slane %v74, 1
  %v435 = vrot.slane %v75, 1
  %v436 = vrot.slane %v76, 1
  %v437 = vrot.slane %v77, 1
  %v438 = vrot.slane %v78, 1
  %v439 = vrot.slane %v79, 1
  %v440 = vrot.slane %v80, 1
  %v441 = vrot.slane %v81, 1
  %v442 = vrot.slane %v90, 1
  %v443 = vrot.slane %v91, 1
  %v444 = vrot.slane %v92, 1
  %v445 = vrot.slane %v93, 1
  %v446 = vrot.slane %v94, 1
  %v447 = vrot.slane %v95, 1
  %v448 = vrot.slane %v96, 1
  %v449 = vrot.slane %v97, 1
  %v450 = vrot.slane %v106, 1
  %v451 = vrot.slane %v107, 1
  %v452 = vrot.slane %v108, 1
  %v453 = vrot.slane %v109, 1
  %v454 = vrot.slane %v110, 1
  %v455 = vrot.slane %v111, 1
  %v456 = vrot.slane %v112, 1
  %v457 = vrot.slane %v113, 1
  %v458 = vrot.slane %v122, 1
  %v459 = vrot.slane %v123, 1
  %v460 = vrot.slane %v124, 1
  %v461 = vrot.slane %v125, 1
  %v462 = vrot.slane %v126, 1
  %v463 = vrot.slane %v127, 1
  %v464 = vrot.slane %v128, 1
  %v465 = vrot.slane %v129, 1
  %v466 = vrot.slane %v138, 1
  %v467 = vrot.slane %v139, 1
  %v468 = vrot.slane %v140, 1
  %v469 = vrot.slane %v141, 1
  %v470 = vrot.slane %v142, 1
  %v471 = vrot.slane %v143, 1
  %v472 = vrot.slane %v144, 1
  %v473 = vrot.slane %v145, 1
  %v474 = vrot.slane %v154, 1
  %v475 = vrot.slane %v155, 1
  %v476 = vrot.slane %v156, 1
  %v477 = vrot.slane %v157, 1
  %v478 = vrot.slane %v158, 1
  %v479 = vrot.slane %v159, 1
  %v480 = vrot.slane %v160, 1
  %v481 = vrot.slane %v161, 1
  %v482 = vrot.slane %v170, 1
  %v483 = vrot.slane %v171, 1
  %v484 = vrot.slane %v172, 1
  %v485 = vrot.slane %v173, 1
  %v486 = vrot.slane %v174, 1
  %v487 = vrot.slane %v175, 1
  %v488 = vrot.slane %v176, 1
  %v489 = vrot.slane %v177, 1
  %v490 = vrot.slane %v186, 1
  %v491 = vrot.slane %v187, 1
  %v492 = vrot.slane %v188, 1
  %v493 = vrot.slane %v189, 1
  %v494 = vrot.slane %v190, 1
  %v495 = vrot.slane %v191, 1
  %v496 = vrot.slane %v192, 1
  %v497 = vrot.slane %v193, 1
  %v498 = vrot.slane %v202, 1
  %v499 = vrot.slane %v203, 1
  %v500 = vrot.slane %v204, 1
  %v501 = vrot.slane %v205, 1
  %v502 = vrot.slane %v206, 1
  %v503 = vrot.slane %v207, 1
  %v504 = vrot.slane %v208, 1
  %v505 = vrot.slane %v209, 1
  %v506 = vrot.slane %v218, 1
  %v507 = vrot.slane %v219, 1
  %v508 = vrot.slane %v220, 1
  %v509 = vrot.slane %v221, 1
  %v510 = vrot.slane %v222, 1
  %v511 = vrot.slane %v223, 1
  %v512 = vrot.slane %v224, 1
  %v513 = vrot.slane %v225, 1
  %v514 = vrot.slane %v234, 1
  %v515 = vrot.slane %v235, 1
  %v516 = vrot.slane %v236, 1
  %v517 = vrot.slane %v237, 1
  %v518 = vrot.slane %v238, 1
  %v519 = vrot.slane %v239, 1
  %v520 = vrot.slane %v240, 1
  %v521 = vrot.slane %v241, 1
  %v522 = vrot.slane %v250, 1
  %v523 = vrot.slane %v251, 1
  %v524 = vrot.slane %v252, 1
  %v525 = vrot.slane %v253, 1
  %v526 = vrot.slane %v254, 1
  %v527 = vrot.slane %v255, 1
  %v528 = vrot.slane %v256, 1
  %v529 = vrot.slane %v257, 1
  %v530 = vrot.slane %v266, 1
  %v531 = vrot.slane %v267, 1
  %v532 = vrot.slane %v268, 1
  %v533 = vrot.slane %v269, 1
  %v534 = vrot.slane %v270, 1
  %v535 = vrot.slane %v271, 1
  %v536 = vrot.slane %v272, 1
  %v537 = vrot.slane %v273, 1
  %v666 = vmax.f32 %v26, %v410
  %v667 = vmax.f32 %v27, %v411
  %v668 = vmax.f32 %v28, %v412
  %v669 = vmax.f32 %v29, %v413
  %v670 = vmax.f32 %v30, %v414
  %v671 = vmax.f32 %v31, %v415
  %v672 = vmax.f32 %v32, %v416
  %v673 = vmax.f32 %v33, %v417
  %v674 = vmax.f32 %v42, %v418
  %v675 = vmax.f32 %v43, %v419
  %v676 = vmax.f32 %v44, %v420
  %v677 = vmax.f32 %v45, %v421
  %v678 = vmax.f32 %v46, %v422
  %v679 = vmax.f32 %v47, %v423
  %v680 = vmax.f32 %v48, %v424
  %v681 = vmax.f32 %v49, %v425
  %v682 = vmax.f32 %v58, %v426
  %v683 = vmax.f32 %v59, %v427
  %v684 = vmax.f32 %v60, %v428
  %v685 = vmax.f32 %v61, %v429
  %v686 = vmax.f32 %v62, %v430
  %v687 = vmax.f32 %v63, %v431
  %v688 = vmax.f32 %v64, %v432
  %v689 = vmax.f32 %v65, %v433
  %v690 = vmax.f32 %v74, %v434
  %v691 = vmax.f32 %v75, %v435
  %v692 = vmax.f32 %v76, %v436
  %v693 = vmax.f32 %v77, %v437
  %v694 = vmax.f32 %v78, %v438
  %v695 = vmax.f32 %v79, %v439
  %v696 = vmax.f32 %v80, %v440
  %v697 = vmax.f32 %v81, %v441
  %v698 = vmax.f32 %v90, %v442
  %v699 = vmax.f32 %v91, %v443
  %v700 = vmax.f32 %v92, %v444
  %v701 = vmax.f32 %v93, %v445
  %v702 = vmax.f32 %v94, %v446
  %v703 = vmax.f32 %v95, %v447
  %v704 = vmax.f32 %v96, %v448
  %v705 = vmax.f32 %v97, %v449
  %v706 = vmax.f32 %v106, %v450
  %v707 = vmax.f32 %v107, %v451
  %v708 = vmax.f32 %v108, %v452
  %v709 = vmax.f32 %v109, %v453
  %v710 = vmax.f32 %v110, %v454
  %v711 = vmax.f32 %v111, %v455
  %v712 = vmax.f32 %v112, %v456
  %v713 = vmax.f32 %v113, %v457
  %v714 = vmax.f32 %v122, %v458
  %v715 = vmax.f32 %v123, %v459
  %v716 = vmax.f32 %v124, %v460
  %v717 = vmax.f32 %v125, %v461
  %v718 = vmax.f32 %v126, %v462
  %v719 = vmax.f32 %v127, %v463
  %v720 = vmax.f32 %v128, %v464
  %v721 = vmax.f32 %v129, %v465
  %v722 = vmax.f32 %v138, %v466
  %v723 = vmax.f32 %v139, %v467
  %v724 = vmax.f32 %v140, %v468
  %v725 = vmax.f32 %v141, %v469
  %v726 = vmax.f32 %v142, %v470
  %v727 = vmax.f32 %v143, %v471
  %v728 = vmax.f32 %v144, %v472
  %v729 = vmax.f32 %v145, %v473
  %v730 = vmax.f32 %v154, %v474
  %v731 = vmax.f32 %v155, %v475
  %v732 = vmax.f32 %v156, %v476
  %v733 = vmax.f32 %v157, %v477
  %v734 = vmax.f32 %v158, %v478
  %v735 = vmax.f32 %v159, %v479
  %v736 = vmax.f32 %v160, %v480
  %v737 = vmax.f32 %v161, %v481
  %v738 = vmax.f32 %v170, %v482
  %v739 = vmax.f32 %v171, %v483
  %v740 = vmax.f32 %v172, %v484
  %v741 = vmax.f32 %v173, %v485
  %v742 = vmax.f32 %v174, %v486
  %v743 = vmax.f32 %v175, %v487
  %v744 = vmax.f32 %v176, %v488
  %v745 = vmax.f32 %v177, %v489
  %v746 = vmax.f32 %v186, %v490
  %v747 = vmax.f32 %v187, %v491
  %v748 = vmax.f32 %v188, %v492
  %v749 = vmax.f32 %v189, %v493
  %v750 = vmax.f32 %v190, %v494
  %v751 = vmax.f32 %v191, %v495
  %v752 = vmax.f32 %v192, %v496
  %v753 = vmax.f32 %v193, %v497
  %v754 = vmax.f32 %v202, %v498
  %v755 = vmax.f32 %v203, %v499
  %v756 = vmax.f32 %v204, %v500
  %v757 = vmax.f32 %v205, %v501
  %v758 = vmax.f32 %v206, %v502
  %v759 = vmax.f32 %v207, %v503
  %v760 = vmax.f32 %v208, %v504
  %v761 = vmax.f32 %v209, %v505
  %v762 = vmax.f32 %v218, %v506
  %v763 = vmax.f32 %v219, %v507
  %v764 = vmax.f32 %v220, %v508
  %v765 = vmax.f32 %v221, %v509
  %v766 = vmax.f32 %v222, %v510
  %v767 = vmax.f32 %v223, %v511
  %v768 = vmax.f32 %v224, %v512
  %v769 = vmax.f32 %v225, %v513
  %v770 = vmax.f32 %v234, %v514
  %v771 = vmax.f32 %v235, %v515
  %v772 = vmax.f32 %v236, %v516
  %v773 = vmax.f32 %v237, %v517
  %v774 = vmax.f32 %v238, %v518
  %v775 = vmax.f32 %v239, %v519
  %v776 = vmax.f32 %v240, %v520
  %v777 = vmax.f32 %v241, %v521
  %v778 = vmax.f32 %v250, %v522
  %v779 = vmax.f32 %v251, %v523
  %v780 = vmax.f32 %v252, %v524
  %v781 = vmax.f32 %v253, %v525
  %v782 = vmax.f32 %v254, %v526
  %v783 = vmax.f32 %v255, %v527
  %v784 = vmax.f32 %v256, %v528
  %v785 = vmax.f32 %v257, %v529
  %v786 = vmax.f32 %v266, %v530
  %v787 = vmax.f32 %v267, %v531
  %v788 = vmax.f32 %v268, %v532
  %v789 = vmax.f32 %v269, %v533
  %v790 = vmax.f32 %v270, %v534
  %v791 = vmax.f32 %v271, %v535
  %v792 = vmax.f32 %v272, %v536
  %v793 = vmax.f32 %v273, %v537
  %v922 = vrot.slane %v34, 1
  %v923 = vrot.slane %v35, 1
  %v924 = vrot.slane %v36, 1
  %v925 = vrot.slane %v37, 1
  %v926 = vrot.slane %v38, 1
  %v927 = vrot.slane %v39, 1
  %v928 = vrot.slane %v40, 1
  %v929 = vrot.slane %v41, 1
  %v930 = vrot.slane %v50, 1
  %v931 = vrot.slane %v51, 1
  %v932 = vrot.slane %v52, 1
  %v933 = vrot.slane %v53, 1
  %v934 = vrot.slane %v54, 1
  %v935 = vrot.slane %v55, 1
  %v936 = vrot.slane %v56, 1
  %v937 = vrot.slane %v57, 1
  %v938 = vrot.slane %v66, 1
  %v939 = vrot.slane %v67, 1
  %v940 = vrot.slane %v68, 1
  %v941 = vrot.slane %v69, 1
  %v942 = vrot.slane %v70, 1
  %v943 = vrot.slane %v71, 1
  %v944 = vrot.slane %v72, 1
  %v945 = vrot.slane %v73, 1
  %v946 = vrot.slane %v82, 1
  %v947 = vrot.slane %v83, 1
  %v948 = vrot.slane %v84, 1
  %v949 = vrot.slane %v85, 1
  %v950 = vrot.slane %v86, 1
  %v951 = vrot.slane %v87, 1
  %v952 = vrot.slane %v88, 1
  %v953 = vrot.slane %v89, 1
  %v954 = vrot.slane %v98, 1
  %v955 = vrot.slane %v99, 1
  %v956 = vrot.slane %v100, 1
  %v957 = vrot.slane %v101, 1
  %v958 = vrot.slane %v102, 1
  %v959 = vrot.slane %v103, 1
  %v960 = vrot.slane %v104, 1
  %v961 = vrot.slane %v105, 1
  %v962 = vrot.slane %v114, 1
  %v963 = vrot.slane %v115, 1
  %v964 = vrot.slane %v116, 1
  %v965 = vrot.slane %v117, 1
  %v966 = vrot.slane %v118, 1
  %v967 = vrot.slane %v119, 1
  %v968 = vrot.slane %v120, 1
  %v969 = vrot.slane %v121, 1
  %v970 = vrot.slane %v130, 1
  %v971 = vrot.slane %v131, 1
  %v972 = vrot.slane %v132, 1
  %v973 = vrot.slane %v133, 1
  %v974 = vrot.slane %v134, 1
  %v975 = vrot.slane %v135, 1
  %v976 = vrot.slane %v136, 1
  %v977 = vrot.slane %v137, 1
  %v978 = vrot.slane %v146, 1
  %v979 = vrot.slane %v147, 1
  %v980 = vrot.slane %v148, 1
  %v981 = vrot.slane %v149, 1
  %v982 = vrot.slane %v150, 1
  %v983 = vrot.slane %v151, 1
  %v984 = vrot.slane %v152, 1
  %v985 = vrot.slane %v153, 1
  %v986 = vrot.slane %v162, 1
  %v987 = vrot.slane %v163, 1
  %v988 = vrot.slane %v164, 1
  %v989 = vrot.slane %v165, 1
  %v990 = vrot.slane %v166, 1
  %v991 = vrot.slane %v167, 1
  %v992 = vrot.slane %v168, 1
  %v993 = vrot.slane %v169, 1
  %v994 = vrot.slane %v178, 1
  %v995 = vrot.slane %v179, 1
  %v996 = vrot.slane %v180, 1
  %v997 = vrot.slane %v181, 1
  %v998 = vrot.slane %v182, 1
  %v999 = vrot.slane %v183, 1
  %v1000 = vrot.slane %v184, 1
  %v1001 = vrot.slane %v185, 1
  %v1002 = vrot.slane %v194, 1
  %v1003 = vrot.slane %v195, 1
  %v1004 = vrot.slane %v196, 1
  %v1005 = vrot.slane %v197, 1
  %v1006 = vrot.slane %v198, 1
  %v1007 = vrot.slane %v199, 1
  %v1008 = vrot.slane %v200, 1
  %v1009 = vrot.slane %v201, 1
  %v1010 = vrot.slane %v210, 1
  %v1011 = vrot.slane %v211, 1
  %v1012 = vrot.slane %v212, 1
  %v1013 = vrot.slane %v213, 1
  %v1014 = vrot.slane %v214, 1
  %v1015 = vrot.slane %v215, 1
  %v1016 = vrot.slane %v216, 1
  %v1017 = vrot.slane %v217, 1
  %v1018 = vrot.slane %v226, 1
  %v1019 = vrot.slane %v227, 1
  %v1020 = vrot.slane %v228, 1
  %v1021 = vrot.slane %v229, 1
  %v1022 = vrot.slane %v230, 1
  %v1023 = vrot.slane %v231, 1
  %v1024 = vrot.slane %v232, 1
  %v1025 = vrot.slane %v233, 1
  %v1026 = vrot.slane %v242, 1
  %v1027 = vrot.slane %v243, 1
  %v1028 = vrot.slane %v244, 1
  %v1029 = vrot.slane %v245, 1
  %v1030 = vrot.slane %v246, 1
  %v1031 = vrot.slane %v247, 1
  %v1032 = vrot.slane %v248, 1
  %v1033 = vrot.slane %v249, 1
  %v1034 = vrot.slane %v258, 1
  %v1035 = vrot.slane %v259, 1
  %v1036 = vrot.slane %v260, 1
  %v1037 = vrot.slane %v261, 1
  %v1038 = vrot.slane %v262, 1
  %v1039 = vrot.slane %v263, 1
  %v1040 = vrot.slane %v264, 1
  %v1041 = vrot.slane %v265, 1
  %v1042 = vrot.slane %v274, 1
  %v1043 = vrot.slane %v275, 1
  %v1044 = vrot.slane %v276, 1
  %v1045 = vrot.slane %v277, 1
  %v1046 = vrot.slane %v278, 1
  %v1047 = vrot.slane %v279, 1
  %v1048 = vrot.slane %v280, 1
  %v1049 = vrot.slane %v281, 1
  %v1178 = vmax.f32 %v34, %v922
  %v1179 = vmax.f32 %v35, %v923
  %v1180 = vmax.f32 %v36, %v924
  %v1181 = vmax.f32 %v37, %v925
  %v1182 = vmax.f32 %v38, %v926
  %v1183 = vmax.f32 %v39, %v927
  %v1184 = vmax.f32 %v40, %v928
  %v1185 = vmax.f32 %v41, %v929
  %v1186 = vmax.f32 %v50, %v930
  %v1187 = vmax.f32 %v51, %v931
  %v1188 = vmax.f32 %v52, %v932
  %v1189 = vmax.f32 %v53, %v933
  %v1190 = vmax.f32 %v54, %v934
  %v1191 = vmax.f32 %v55, %v935
  %v1192 = vmax.f32 %v56, %v936
  %v1193 = vmax.f32 %v57, %v937
  %v1194 = vmax.f32 %v66, %v938
  %v1195 = vmax.f32 %v67, %v939
  %v1196 = vmax.f32 %v68, %v940
  %v1197 = vmax.f32 %v69, %v941
  %v1198 = vmax.f32 %v70, %v942
  %v1199 = vmax.f32 %v71, %v943
  %v1200 = vmax.f32 %v72, %v944
  %v1201 = vmax.f32 %v73, %v945
  %v1202 = vmax.f32 %v82, %v946
  %v1203 = vmax.f32 %v83, %v947
  %v1204 = vmax.f32 %v84, %v948
  %v1205 = vmax.f32 %v85, %v949
  %v1206 = vmax.f32 %v86, %v950
  %v1207 = vmax.f32 %v87, %v951
  %v1208 = vmax.f32 %v88, %v952
  %v1209 = vmax.f32 %v89, %v953
  %v1210 = vmax.f32 %v98, %v954
  %v1211 = vmax.f32 %v99, %v955
  %v1212 = vmax.f32 %v100, %v956
  %v1213 = vmax.f32 %v101, %v957
  %v1214 = vmax.f32 %v102, %v958
  %v1215 = vmax.f32 %v103, %v959
  %v1216 = vmax.f32 %v104, %v960
  %v1217 = vmax.f32 %v105, %v961
  %v1218 = vmax.f32 %v114, %v962
  %v1219 = vmax.f32 %v115, %v963
  %v1220 = vmax.f32 %v116, %v964
  %v1221 = vmax.f32 %v117, %v965
  %v1222 = vmax.f32 %v118, %v966
  %v1223 = vmax.f32 %v119, %v967
  %v1224 = vmax.f32 %v120, %v968
  %v1225 = vmax.f32 %v121, %v969
  %v1226 = vmax.f32 %v130, %v970
  %v1227 = vmax.f32 %v131, %v971
  %v1228 = vmax.f32 %v132, %v972
  %v1229 = vmax.f32 %v133, %v973
  %v1230 = vmax.f32 %v134, %v974
  %v1231 = vmax.f32 %v135, %v975
  %v1232 = vmax.f32 %v136, %v976
  %v1233 = vmax.f32 %v137, %v977
  %v1234 = vmax.f32 %v146, %v978
  %v1235 = vmax.f32 %v147, %v979
  %v1236 = vmax.f32 %v148, %v980
  %v1237 = vmax.f32 %v149, %v981
  %v1238 = vmax.f32 %v150, %v982
  %v1239 = vmax.f32 %v151, %v983
  %v1240 = vmax.f32 %v152, %v984
  %v1241 = vmax.f32 %v153, %v985
  %v1242 = vmax.f32 %v162, %v986
  %v1243 = vmax.f32 %v163, %v987
  %v1244 = vmax.f32 %v164, %v988
  %v1245 = vmax.f32 %v165, %v989
  %v1246 = vmax.f32 %v166, %v990
  %v1247 = vmax.f32 %v167, %v991
  %v1248 = vmax.f32 %v168, %v992
  %v1249 = vmax.f32 %v169, %v993
  %v1250 = vmax.f32 %v178, %v994
  %v1251 = vmax.f32 %v179, %v995
  %v1252 = vmax.f32 %v180, %v996
  %v1253 = vmax.f32 %v181, %v997
  %v1254 = vmax.f32 %v182, %v998
  %v1255 = vmax.f32 %v183, %v999
  %v1256 = vmax.f32 %v184, %v1000
  %v1257 = vmax.f32 %v185, %v1001
  %v1258 = vmax.f32 %v194, %v1002
  %v1259 = vmax.f32 %v195, %v1003
  %v1260 = vmax.f32 %v196, %v1004
  %v1261 = vmax.f32 %v197, %v1005
  %v1262 = vmax.f32 %v198, %v1006
  %v1263 = vmax.f32 %v199, %v1007
  %v1264 = vmax.f32 %v200, %v1008
  %v1265 = vmax.f32 %v201, %v1009
  %v1266 = vmax.f32 %v210, %v1010
  %v1267 = vmax.f32 %v211, %v1011
  %v1268 = vmax.f32 %v212, %v1012
  %v1269 = vmax.f32 %v213, %v1013
  %v1270 = vmax.f32 %v214, %v1014
  %v1271 = vmax.f32 %v215, %v1015
  %v1272 = vmax.f32 %v216, %v1016
  %v1273 = vmax.f32 %v217, %v1017
  %v1274 = vmax.f32 %v226, %v1018
  %v1275 = vmax.f32 %v227, %v1019
  %v1276 = vmax.f32 %v228, %v1020
  %v1277 = vmax.f32 %v229, %v1021
  %v1278 = vmax.f32 %v230, %v1022
  %v1279 = vmax.f32 %v231, %v1023
  %v1280 = vmax.f32 %v232, %v1024
  %v1281 = vmax.f32 %v233, %v1025
  %v1282 = vmax.f32 %v242, %v1026
  %v1283 = vmax.f32 %v243, %v1027
  %v1284 = vmax.f32 %v244, %v1028
  %v1285 = vmax.f32 %v245, %v1029
  %v1286 = vmax.f32 %v246, %v1030
  %v1287 = vmax.f32 %v247, %v1031
  %v1288 = vmax.f32 %v248, %v1032
  %v1289 = vmax.f32 %v249, %v1033
  %v1290 = vmax.f32 %v258, %v1034
  %v1291 = vmax.f32 %v259, %v1035
  %v1292 = vmax.f32 %v260, %v1036
  %v1293 = vmax.f32 %v261, %v1037
  %v1294 = vmax.f32 %v262, %v1038
  %v1295 = vmax.f32 %v263, %v1039
  %v1296 = vmax.f32 %v264, %v1040
  %v1297 = vmax.f32 %v265, %v1041
  %v1298 = vmax.f32 %v274, %v1042
  %v1299 = vmax.f32 %v275, %v1043
  %v1300 = vmax.f32 %v276, %v1044
  %v1301 = vmax.f32 %v277, %v1045
  %v1302 = vmax.f32 %v278, %v1046
  %v1303 = vmax.f32 %v279, %v1047
  %v1304 = vmax.f32 %v280, %v1048
  %v1305 = vmax.f32 %v281, %v1049
  %v1306 = vmax.f32 %v666, %v1178
  %v1307 = vmax.f32 %v667, %v1179
  %v1308 = vmax.f32 %v668, %v1180
  %v1309 = vmax.f32 %v669, %v1181
  %v1310 = vmax.f32 %v670, %v1182
  %v1311 = vmax.f32 %v671, %v1183
  %v1312 = vmax.f32 %v672, %v1184
  %v1313 = vmax.f32 %v673, %v1185
  %v1314 = vmax.f32 %v674, %v1186
  %v1315 = vmax.f32 %v675, %v1187
  %v1316 = vmax.f32 %v676, %v1188
  %v1317 = vmax.f32 %v677, %v1189
  %v1318 = vmax.f32 %v678, %v1190
  %v1319 = vmax.f32 %v679, %v1191
  %v1320 = vmax.f32 %v680, %v1192
  %v1321 = vmax.f32 %v681, %v1193
  %v1322 = vmax.f32 %v682, %v1194
  %v1323 = vmax.f32 %v683, %v1195
  %v1324 = vmax.f32 %v684, %v1196
  %v1325 = vmax.f32 %v685, %v1197
  %v1326 = vmax.f32 %v686, %v1198
  %v1327 = vmax.f32 %v687, %v1199
  %v1328 = vmax.f32 %v688, %v1200
  %v1329 = vmax.f32 %v689, %v1201
  %v1330 = vmax.f32 %v690, %v1202
  %v1331 = vmax.f32 %v691, %v1203
  %v1332 = vmax.f32 %v692, %v1204
  %v1333 = vmax.f32 %v693, %v1205
  %v1334 = vmax.f32 %v694, %v1206
  %v1335 = vmax.f32 %v695, %v1207
  %v1336 = vmax.f32 %v696, %v1208
  %v1337 = vmax.f32 %v697, %v1209
  %v1338 = vmax.f32 %v698, %v1210
  %v1339 = vmax.f32 %v699, %v1211
  %v1340 = vmax.f32 %v700, %v1212
  %v1341 = vmax.f32 %v701, %v1213
  %v1342 = vmax.f32 %v702, %v1214
  %v1343 = vmax.f32 %v703, %v1215
  %v1344 = vmax.f32 %v704, %v1216
  %v1345 = vmax.f32 %v705, %v1217
  %v1346 = vmax.f32 %v706, %v1218
  %v1347 = vmax.f32 %v707, %v1219
  %v1348 = vmax.f32 %v708, %v1220
  %v1349 = vmax.f32 %v709, %v1221
  %v1350 = vmax.f32 %v710, %v1222
  %v1351 = vmax.f32 %v711, %v1223
  %v1352 = vmax.f32 %v712, %v1224
  %v1353 = vmax.f32 %v713, %v1225
  %v1354 = vmax.f32 %v714, %v1226
  %v1355 = vmax.f32 %v715, %v1227
  %v1356 = vmax.f32 %v716, %v1228
  %v1357 = vmax.f32 %v717, %v1229
  %v1358 = vmax.f32 %v718, %v1230
  %v1359 = vmax.f32 %v719, %v1231
  %v1360 = vmax.f32 %v720, %v1232
  %v1361 = vmax.f32 %v721, %v1233
  %v1362 = vmax.f32 %v722, %v1234
  %v1363 = vmax.f32 %v723, %v1235
  %v1364 = vmax.f32 %v724, %v1236
  %v1365 = vmax.f32 %v725, %v1237
  %v1366 = vmax.f32 %v726, %v1238
  %v1367 = vmax.f32 %v727, %v1239
  %v1368 = vmax.f32 %v728, %v1240
  %v1369 = vmax.f32 %v729, %v1241
  %v1370 = vmax.f32 %v730, %v1242
  %v1371 = vmax.f32 %v731, %v1243
  %v1372 = vmax.f32 %v732, %v1244
  %v1373 = vmax.f32 %v733, %v1245
  %v1374 = vmax.f32 %v734, %v1246
  %v1375 = vmax.f32 %v735, %v1247
  %v1376 = vmax.f32 %v736, %v1248
  %v1377 = vmax.f32 %v737, %v1249
  %v1378 = vmax.f32 %v738, %v1250
  %v1379 = vmax.f32 %v739, %v1251
  %v1380 = vmax.f32 %v740, %v1252
  %v1381 = vmax.f32 %v741, %v1253
  %v1382 = vmax.f32 %v742, %v1254
  %v1383 = vmax.f32 %v743, %v1255
  %v1384 = vmax.f32 %v744, %v1256
  %v1385 = vmax.f32 %v745, %v1257
  %v1386 = vmax.f32 %v746, %v1258
  %v1387 = vmax.f32 %v747, %v1259
  %v1388 = vmax.f32 %v748, %v1260
  %v1389 = vmax.f32 %v749, %v1261
  %v1390 = vmax.f32 %v750, %v1262
  %v1391 = vmax.f32 %v751, %v1263
  %v1392 = vmax.f32 %v752, %v1264
  %v1393 = vmax.f32 %v753, %v1265
  %v1394 = vmax.f32 %v754, %v1266
  %v1395 = vmax.f32 %v755, %v1267
  %v1396 = vmax.f32 %v756, %v1268
  %v1397 = vmax.f32 %v757, %v1269
  %v1398 = vmax.f32 %v758, %v1270
  %v1399 = vmax.f32 %v759, %v1271
  %v1400 = vmax.f32 %v760, %v1272
  %v1401 = vmax.f32 %v761, %v1273
  %v1402 = vmax.f32 %v762, %v1274
  %v1403 = vmax.f32 %v763, %v1275
  %v1404 = vmax.f32 %v764, %v1276
  %v1405 = vmax.f32 %v765, %v1277
  %v1406 = vmax.f32 %v766, %v1278
  %v1407 = vmax.f32 %v767, %v1279
  %v1408 = vmax.f32 %v768, %v1280
  %v1409 = vmax.f32 %v769, %v1281
  %v1410 = vmax.f32 %v770, %v1282
  %v1411 = vmax.f32 %v771, %v1283
  %v1412 = vmax.f32 %v772, %v1284
  %v1413 = vmax.f32 %v773, %v1285
  %v1414 = vmax.f32 %v774, %v1286
  %v1415 = vmax.f32 %v775, %v1287
  %v1416 = vmax.f32 %v776, %v1288
  %v1417 = vmax.f32 %v777, %v1289
  %v1418 = vmax.f32 %v778, %v1290
  %v1419 = vmax.f32 %v779, %v1291
  %v1420 = vmax.f32 %v780, %v1292
  %v1421 = vmax.f32 %v781, %v1293
  %v1422 = vmax.f32 %v782, %v1294
  %v1423 = vmax.f32 %v783, %v1295
  %v1424 = vmax.f32 %v784, %v1296
  %v1425 = vmax.f32 %v785, %v1297
  %v1426 = vmax.f32 %v786, %v1298
  %v1427 = vmax.f32 %v787, %v1299
  %v1428 = vmax.f32 %v788, %v1300
  %v1429 = vmax.f32 %v789, %v1301
  %v1430 = vmax.f32 %v790, %v1302
  %v1431 = vmax.f32 %v791, %v1303
  %v1432 = vmax.f32 %v792, %v1304
  %v1433 = vmax.f32 %v793, %v1305
  %vm1434 = vcmask 31744
  %1435 = vst.msk [vmem:[#allocation2] sm:$0xff] %vm1434, 0.0
  %vm1436 = vcmask 25600
  %1437 = vst.msk [vmem:[#allocation2 + $0x8] sm:$0x3] %vm1436, 0.0
  %1438 = vst.msk [vmem:[#allocation2 + $0x10] sm:$0xff] %vm1434, 0.0
  %1439 = vst.msk [vmem:[#allocation2 + $0x18] sm:$0x3] %vm1436, 0.0
  %1440 = vst.msk [vmem:[#allocation2 + $0x20] sm:$0xff] %vm1434, 0.0
  %1441 = vst.msk [vmem:[#allocation2 + $0x28] sm:$0x3] %vm1436, 0.0
  %1442 = vst.msk [vmem:[#allocation2 + $0x30] sm:$0xff] %vm1434, 0.0
  %1443 = vst.msk [vmem:[#allocation2 + $0x38] sm:$0x3] %vm1436, 0.0
  %1444 = vst.msk [vmem:[#allocation2 + $0x40] sm:$0xff] %vm1434, 0.0
  %1445 = vst.msk [vmem:[#allocation2 + $0x48] sm:$0x3] %vm1436, 0.0
  %1446 = vst.msk [vmem:[#allocation2 + $0x50] sm:$0xff] %vm1434, 0.0
  %1447 = vst.msk [vmem:[#allocation2 + $0x58] sm:$0x3] %vm1436, 0.0
  %1448 = vst.msk [vmem:[#allocation2 + $0x60] sm:$0xff] %vm1434, 0.0
  %1449 = vst.msk [vmem:[#allocation2 + $0x68] sm:$0x3] %vm1436, 0.0
  %1450 = vst.msk [vmem:[#allocation2 + $0x70] sm:$0xff] %vm1434, 0.0
  %1451 = vst.msk [vmem:[#allocation2 + $0x78] sm:$0x3] %vm1436, 0.0
  %1452 = vst.msk [vmem:[#allocation2 + $0x80] sm:$0xff] %vm1434, 0.0
  %1453 = vst.msk [vmem:[#allocation2 + $0x88] sm:$0x3] %vm1436, 0.0
  %1454 = vst.msk [vmem:[#allocation2 + $0x90] sm:$0xff] %vm1434, 0.0
  %1455 = vst.msk [vmem:[#allocation2 + $0x98] sm:$0x3] %vm1436, 0.0
  %1456 = vst.msk [vmem:[#allocation2 + $0xa0] sm:$0xff] %vm1434, 0.0
  %1457 = vst.msk [vmem:[#allocation2 + $0xa8] sm:$0x3] %vm1436, 0.0
  %1458 = vst.msk [vmem:[#allocation2 + $0xb0] sm:$0xff] %vm1434, 0.0
  %1459 = vst.msk [vmem:[#allocation2 + $0xb8] sm:$0x3] %vm1436, 0.0
  %1460 = vst.msk [vmem:[#allocation2 + $0xc0] sm:$0xff] %vm1434, 0.0
  %1461 = vst.msk [vmem:[#allocation2 + $0xc8] sm:$0x3] %vm1436, 0.0
  %1462 = vst.msk [vmem:[#allocation2 + $0xd0] sm:$0xff] %vm1434, 0.0
  %1463 = vst.msk [vmem:[#allocation2 + $0xd8] sm:$0x3] %vm1436, 0.0
  %1464 = vst.msk [vmem:[#allocation2 + $0xe0] sm:$0xff] %vm1434, 0.0
  %1465 = vst.msk [vmem:[#allocation2 + $0xe8] sm:$0x3] %vm1436, 0.0
  %1466 = vst.msk [vmem:[#allocation2 + $0xf0] sm:$0xff] %vm1434, 0.0
  %1467 = vst.msk [vmem:[#allocation2 + $0xf8] sm:$0x3] %vm1436, 0.0
  %1468 = vst.msk [vmem:[#allocation2 + $0x100] sm:$0xff] %vm1434, 0.0
  %1469 = vst.msk [vmem:[#allocation2 + $0x108] sm:$0x3] %vm1436, 0.0
  %1470 = vst.msk [vmem:[#allocation2 + $0x110] sm:$0xff] %vm1434, 0.0
  %1471 = vst.msk [vmem:[#allocation2 + $0x118] sm:$0x3] %vm1436, 0.0
  %1472 = vst.msk [vmem:[#allocation2 + $0x120] sm:$0xff] %vm1434, 0.0
  %1473 = vst.msk [vmem:[#allocation2 + $0x128] sm:$0x3] %vm1436, 0.0
  %1474 = vst.msk [vmem:[#allocation2 + $0x130] sm:$0xff] %vm1434, 0.0
  %1475 = vst.msk [vmem:[#allocation2 + $0x138] sm:$0x3] %vm1436, 0.0
  %v1604 = vrot.slane %v1307, 7
  %vm1605 = vcmask 1041409
  %v1606 = vsel %vm1605, %v1604, %v1306
  %v1607 = vrot.slane %v1308, 6
  %vm1608 = vcmask 1042434
  %v1609 = vsel %vm1608, %v1607, %v1606
  %v1610 = vrot.slane %v1309, 5
  %vm1611 = vcmask 1043459
  %v1612 = vsel %vm1611, %v1610, %v1609
  %v1613 = vrot.slane %v1310, 4
  %vm1614 = vcmask 1044484
  %v1615 = vsel %vm1614, %v1613, %v1612
  %v1616 = vrot.slane %v1311, 3
  %vm1617 = vcmask 1045509
  %v1618 = vsel %vm1617, %v1616, %v1615
  %v1619 = vrot.slane %v1312, 2
  %vm1620 = vcmask 1046534
  %v1621 = vsel %vm1620, %v1619, %v1618
  %v1622 = vrot.slane %v1313, 1
  %vm1623 = vcmask 1047559
  %v1624 = vsel %vm1623, %v1622, %v1621
  %v1625 = vrot.slane %v1315, 7
  %v1626 = vsel %vm1605, %v1625, %v1314
  %v1627 = vrot.slane %v1316, 6
  %v1628 = vsel %vm1608, %v1627, %v1626
  %v1629 = vrot.slane %v1317, 5
  %v1630 = vsel %vm1611, %v1629, %v1628
  %v1631 = vrot.slane %v1318, 4
  %v1632 = vsel %vm1614, %v1631, %v1630
  %v1633 = vrot.slane %v1319, 3
  %v1634 = vsel %vm1617, %v1633, %v1632
  %v1635 = vrot.slane %v1320, 2
  %v1636 = vsel %vm1620, %v1635, %v1634
  %v1637 = vrot.slane %v1321, 1
  %v1638 = vsel %vm1623, %v1637, %v1636
  %v1639 = vrot.slane %v1323, 7
  %v1640 = vsel %vm1605, %v1639, %v1322
  %v1641 = vrot.slane %v1324, 6
  %v1642 = vsel %vm1608, %v1641, %v1640
  %v1643 = vrot.slane %v1325, 5
  %v1644 = vsel %vm1611, %v1643, %v1642
  %v1645 = vrot.slane %v1326, 4
  %v1646 = vsel %vm1614, %v1645, %v1644
  %v1647 = vrot.slane %v1327, 3
  %v1648 = vsel %vm1617, %v1647, %v1646
  %v1649 = vrot.slane %v1328, 2
  %v1650 = vsel %vm1620, %v1649, %v1648
  %v1651 = vrot.slane %v1329, 1
  %v1652 = vsel %vm1623, %v1651, %v1650
  %v1653 = vrot.slane %v1331, 7
  %v1654 = vsel %vm1605, %v1653, %v1330
  %v1655 = vrot.slane %v1332, 6
  %v1656 = vsel %vm1608, %v1655, %v1654
  %v1657 = vrot.slane %v1333, 5
  %v1658 = vsel %vm1611, %v1657, %v1656
  %v1659 = vrot.slane %v1334, 4
  %v1660 = vsel %vm1614, %v1659, %v1658
  %v1661 = vrot.slane %v1335, 3
  %v1662 = vsel %vm1617, %v1661, %v1660
  %v1663 = vrot.slane %v1336, 2
  %v1664 = vsel %vm1620, %v1663, %v1662
  %v1665 = vrot.slane %v1337, 1
  %v1666 = vsel %vm1623, %v1665, %v1664
  %v1667 = vrot.slane %v1339, 7
  %v1668 = vsel %vm1605, %v1667, %v1338
  %v1669 = vrot.slane %v1340, 6
  %v1670 = vsel %vm1608, %v1669, %v1668
  %v1671 = vrot.slane %v1341, 5
  %v1672 = vsel %vm1611, %v1671, %v1670
  %v1673 = vrot.slane %v1342, 4
  %v1674 = vsel %vm1614, %v1673, %v1672
  %v1675 = vrot.slane %v1343, 3
  %v1676 = vsel %vm1617, %v1675, %v1674
  %v1677 = vrot.slane %v1344, 2
  %v1678 = vsel %vm1620, %v1677, %v1676
  %v1679 = vrot.slane %v1345, 1
  %v1680 = vsel %vm1623, %v1679, %v1678
  %v1681 = vrot.slane %v1347, 7
  %v1682 = vsel %vm1605, %v1681, %v1346
  %v1683 = vrot.slane %v1348, 6
  %v1684 = vsel %vm1608, %v1683, %v1682
  %v1685 = vrot.slane %v1349, 5
  %v1686 = vsel %vm1611, %v1685, %v1684
  %v1687 = vrot.slane %v1350, 4
  %v1688 = vsel %vm1614, %v1687, %v1686
  %v1689 = vrot.slane %v1351, 3
  %v1690 = vsel %vm1617, %v1689, %v1688
  %v1691 = vrot.slane %v1352, 2
  %v1692 = vsel %vm1620, %v1691, %v1690
  %v1693 = vrot.slane %v1353, 1
  %v1694 = vsel %vm1623, %v1693, %v1692
  %v1695 = vrot.slane %v1355, 7
  %v1696 = vsel %vm1605, %v1695, %v1354
  %v1697 = vrot.slane %v1356, 6
  %v1698 = vsel %vm1608, %v1697, %v1696
  %v1699 = vrot.slane %v1357, 5
  %v1700 = vsel %vm1611, %v1699, %v1698
  %v1701 = vrot.slane %v1358, 4
  %v1702 = vsel %vm1614, %v1701, %v1700
  %v1703 = vrot.slane %v1359, 3
  %v1704 = vsel %vm1617, %v1703, %v1702
  %v1705 = vrot.slane %v1360, 2
  %v1706 = vsel %vm1620, %v1705, %v1704
  %v1707 = vrot.slane %v1361, 1
  %v1708 = vsel %vm1623, %v1707, %v1706
  %v1709 = vrot.slane %v1363, 7
  %v1710 = vsel %vm1605, %v1709, %v1362
  %v1711 = vrot.slane %v1364, 6
  %v1712 = vsel %vm1608, %v1711, %v1710
  %v1713 = vrot.slane %v1365, 5
  %v1714 = vsel %vm1611, %v1713, %v1712
  %v1715 = vrot.slane %v1366, 4
  %v1716 = vsel %vm1614, %v1715, %v1714
  %v1717 = vrot.slane %v1367, 3
  %v1718 = vsel %vm1617, %v1717, %v1716
  %v1719 = vrot.slane %v1368, 2
  %v1720 = vsel %vm1620, %v1719, %v1718
  %v1721 = vrot.slane %v1369, 1
  %v1722 = vsel %vm1623, %v1721, %v1720
  %v1723 = vrot.slane %v1371, 7
  %v1724 = vsel %vm1605, %v1723, %v1370
  %v1725 = vrot.slane %v1372, 6
  %v1726 = vsel %vm1608, %v1725, %v1724
  %v1727 = vrot.slane %v1373, 5
  %v1728 = vsel %vm1611, %v1727, %v1726
  %v1729 = vrot.slane %v1374, 4
  %v1730 = vsel %vm1614, %v1729, %v1728
  %v1731 = vrot.slane %v1375, 3
  %v1732 = vsel %vm1617, %v1731, %v1730
  %v1733 = vrot.slane %v1376, 2
  %v1734 = vsel %vm1620, %v1733, %v1732
  %v1735 = vrot.slane %v1377, 1
  %v1736 = vsel %vm1623, %v1735, %v1734
  %v1737 = vrot.slane %v1379, 7
  %v1738 = vsel %vm1605, %v1737, %v1378
  %v1739 = vrot.slane %v1380, 6
  %v1740 = vsel %vm1608, %v1739, %v1738
  %v1741 = vrot.slane %v1381, 5
  %v1742 = vsel %vm1611, %v1741, %v1740
  %v1743 = vrot.slane %v1382, 4
  %v1744 = vsel %vm1614, %v1743, %v1742
  %v1745 = vrot.slane %v1383, 3
  %v1746 = vsel %vm1617, %v1745, %v1744
  %v1747 = vrot.slane %v1384, 2
  %v1748 = vsel %vm1620, %v1747, %v1746
  %v1749 = vrot.slane %v1385, 1
  %v1750 = vsel %vm1623, %v1749, %v1748
  %v1751 = vrot.slane %v1387, 7
  %v1752 = vsel %vm1605, %v1751, %v1386
  %v1753 = vrot.slane %v1388, 6
  %v1754 = vsel %vm1608, %v1753, %v1752
  %v1755 = vrot.slane %v1389, 5
  %v1756 = vsel %vm1611, %v1755, %v1754
  %v1757 = vrot.slane %v1390, 4
  %v1758 = vsel %vm1614, %v1757, %v1756
  %v1759 = vrot.slane %v1391, 3
  %v1760 = vsel %vm1617, %v1759, %v1758
  %v1761 = vrot.slane %v1392, 2
  %v1762 = vsel %vm1620, %v1761, %v1760
  %v1763 = vrot.slane %v1393, 1
  %v1764 = vsel %vm1623, %v1763, %v1762
  %v1765 = vrot.slane %v1395, 7
  %v1766 = vsel %vm1605, %v1765, %v1394
  %v1767 = vrot.slane %v1396, 6
  %v1768 = vsel %vm1608, %v1767, %v1766
  %v1769 = vrot.slane %v1397, 5
  %v1770 = vsel %vm1611, %v1769, %v1768
  %v1771 = vrot.slane %v1398, 4
  %v1772 = vsel %vm1614, %v1771, %v1770
  %v1773 = vrot.slane %v1399, 3
  %v1774 = vsel %vm1617, %v1773, %v1772
  %v1775 = vrot.slane %v1400, 2
  %v1776 = vsel %vm1620, %v1775, %v1774
  %v1777 = vrot.slane %v1401, 1
  %v1778 = vsel %vm1623, %v1777, %v1776
  %v1779 = vrot.slane %v1403, 7
  %v1780 = vsel %vm1605, %v1779, %v1402
  %v1781 = vrot.slane %v1404, 6
  %v1782 = vsel %vm1608, %v1781, %v1780
  %v1783 = vrot.slane %v1405, 5
  %v1784 = vsel %vm1611, %v1783, %v1782
  %v1785 = vrot.slane %v1406, 4
  %v1786 = vsel %vm1614, %v1785, %v1784
  %v1787 = vrot.slane %v1407, 3
  %v1788 = vsel %vm1617, %v1787, %v1786
  %v1789 = vrot.slane %v1408, 2
  %v1790 = vsel %vm1620, %v1789, %v1788
  %v1791 = vrot.slane %v1409, 1
  %v1792 = vsel %vm1623, %v1791, %v1790
  %v1793 = vrot.slane %v1411, 7
  %v1794 = vsel %vm1605, %v1793, %v1410
  %v1795 = vrot.slane %v1412, 6
  %v1796 = vsel %vm1608, %v1795, %v1794
  %v1797 = vrot.slane %v1413, 5
  %v1798 = vsel %vm1611, %v1797, %v1796
  %v1799 = vrot.slane %v1414, 4
  %v1800 = vsel %vm1614, %v1799, %v1798
  %v1801 = vrot.slane %v1415, 3
  %v1802 = vsel %vm1617, %v1801, %v1800
  %v1803 = vrot.slane %v1416, 2
  %v1804 = vsel %vm1620, %v1803, %v1802
  %v1805 = vrot.slane %v1417, 1
  %v1806 = vsel %vm1623, %v1805, %v1804
  %v1807 = vrot.slane %v1419, 7
  %v1808 = vsel %vm1605, %v1807, %v1418
  %v1809 = vrot.slane %v1420, 6
  %v1810 = vsel %vm1608, %v1809, %v1808
  %v1811 = vrot.slane %v1421, 5
  %v1812 = vsel %vm1611, %v1811, %v1810
  %v1813 = vrot.slane %v1422, 4
  %v1814 = vsel %vm1614, %v1813, %v1812
  %v1815 = vrot.slane %v1423, 3
  %v1816 = vsel %vm1617, %v1815, %v1814
  %v1817 = vrot.slane %v1424, 2
  %v1818 = vsel %vm1620, %v1817, %v1816
  %v1819 = vrot.slane %v1425, 1
  %v1820 = vsel %vm1623, %v1819, %v1818
  %v1821 = vrot.slane %v1427, 7
  %v1822 = vsel %vm1605, %v1821, %v1426
  %v1823 = vrot.slane %v1428, 6
  %v1824 = vsel %vm1608, %v1823, %v1822
  %v1825 = vrot.slane %v1429, 5
  %v1826 = vsel %vm1611, %v1825, %v1824
  %v1827 = vrot.slane %v1430, 4
  %v1828 = vsel %vm1614, %v1827, %v1826
  %v1829 = vrot.slane %v1431, 3
  %v1830 = vsel %vm1617, %v1829, %v1828
  %v1831 = vrot.slane %v1432, 2
  %v1832 = vsel %vm1620, %v1831, %v1830
  %v1833 = vrot.slane %v1433, 1
  %v1834 = vsel %vm1623, %v1833, %v1832
  %s1851 = scalar_lea.vmem [#allocation2], 16
  %1852 = vst.msk [vmem:[%s1851 + $0x1] sm:$0xff] %vm1434, %v1624
  %1853 = vst.msk [vmem:[%s1851 + $0x11] sm:$0xff] %vm1434, %v1638
  %1854 = vst.msk [vmem:[%s1851 + $0x21] sm:$0xff] %vm1434, %v1652
  %1855 = vst.msk [vmem:[%s1851 + $0x31] sm:$0xff] %vm1434, %v1666
  %1856 = vst.msk [vmem:[%s1851 + $0x41] sm:$0xff] %vm1434, %v1680
  %1857 = vst.msk [vmem:[%s1851 + $0x51] sm:$0xff] %vm1434, %v1694
  %1858 = vst.msk [vmem:[%s1851 + $0x61] sm:$0xff] %vm1434, %v1708
  %1859 = vst.msk [vmem:[%s1851 + $0x71] sm:$0xff] %vm1434, %v1722
  %1860 = vst.msk [vmem:[%s1851 + $0xa1] sm:$0xff] %vm1434, %v1736
  %1861 = vst.msk [vmem:[%s1851 + $0xb1] sm:$0xff] %vm1434, %v1750
  %1862 = vst.msk [vmem:[%s1851 + $0xc1] sm:$0xff] %vm1434, %v1764
  %1863 = vst.msk [vmem:[%s1851 + $0xd1] sm:$0xff] %vm1434, %v1778
  %1864 = vst.msk [vmem:[%s1851 + $0xe1] sm:$0xff] %vm1434, %v1792
  %1865 = vst.msk [vmem:[%s1851 + $0xf1] sm:$0xff] %vm1434, %v1806
  %1866 = vst.msk [vmem:[%s1851 + $0x101] sm:$0xff] %vm1434, %v1820
  %1867 = vst.msk [vmem:[%s1851 + $0x111] sm:$0xff] %vm1434, %v1834
  %v1868 = vld [vmem:[#allocation2] sm:$0xff]
  %v1869 = vld [vmem:[#allocation2 + $0x8] sm:$0x3]
  %v1870 = vld [vmem:[#allocation2 + $0x10] sm:$0xff]
  %v1871 = vld [vmem:[#allocation2 + $0x18] sm:$0x3]
  %v1872 = vld [vmem:[#allocation2 + $0x20] sm:$0xff]
  %v1873 = vld [vmem:[#allocation2 + $0x28] sm:$0x3]
  %v1874 = vld [vmem:[#allocation2 + $0x30] sm:$0xff]
  %v1875 = vld [vmem:[#allocation2 + $0x38] sm:$0x3]
  %v1876 = vld [vmem:[#allocation2 + $0x40] sm:$0xff]
  %v1877 = vld [vmem:[#allocation2 + $0x48] sm:$0x3]
  %v1878 = vld [vmem:[#allocation2 + $0x50] sm:$0xff]
  %v1879 = vld [vmem:[#allocation2 + $0x58] sm:$0x3]
  %v1880 = vld [vmem:[#allocation2 + $0x60] sm:$0xff]
  %v1881 = vld [vmem:[#allocation2 + $0x68] sm:$0x3]
  %v1882 = vld [vmem:[#allocation2 + $0x70] sm:$0xff]
  %v1883 = vld [vmem:[#allocation2 + $0x78] sm:$0x3]
  %v1884 = vld [vmem:[#allocation2 + $0x80] sm:$0xff]
  %v1885 = vld [vmem:[#allocation2 + $0x88] sm:$0x3]
  %v1886 = vld [vmem:[#allocation2 + $0x90] sm:$0xff]
  %v1887 = vld [vmem:[#allocation2 + $0x98] sm:$0x3]
  %v1888 = vld [vmem:[#allocation2 + $0xa0] sm:$0xff]
  %v1889 = vld [vmem:[#allocation2 + $0xa8] sm:$0x3]
  %v1890 = vld [vmem:[#allocation2 + $0xb0] sm:$0xff]
  %v1891 = vld [vmem:[#allocation2 + $0xb8] sm:$0x3]
  %v1892 = vld [vmem:[#allocation2 + $0xc0] sm:$0xff]
  %v1893 = vld [vmem:[#allocation2 + $0xc8] sm:$0x3]
  %v1894 = vld [vmem:[#allocation2 + $0xd0] sm:$0xff]
  %v1895 = vld [vmem:[#allocation2 + $0xd8] sm:$0x3]
  %v1896 = vld [vmem:[#allocation2 + $0xe0] sm:$0xff]
  %v1897 = vld [vmem:[#allocation2 + $0xe8] sm:$0x3]
  %v1898 = vld [vmem:[#allocation2 + $0xf0] sm:$0xff]
  %v1899 = vld [vmem:[#allocation2 + $0xf8] sm:$0x3]
  %v1900 = vld [vmem:[#allocation2 + $0x100] sm:$0xff]
  %v1901 = vld [vmem:[#allocation2 + $0x108] sm:$0x3]
  %v1902 = vld [vmem:[#allocation2 + $0x110] sm:$0xff]
  %v1903 = vld [vmem:[#allocation2 + $0x118] sm:$0x3]
  %v1904 = vld [vmem:[#allocation2 + $0x120] sm:$0xff]
  %v1905 = vld [vmem:[#allocation2 + $0x128] sm:$0x3]
  %v1906 = vld [vmem:[#allocation2 + $0x130] sm:$0xff]
  %v1907 = vld [vmem:[#allocation2 + $0x138] sm:$0x3]
  %v1908 = vld [vmem:[%s1] sm:$0xf]
  %v1909 = vld [vmem:[%s1 + $0x4] sm:$0xf]
  %v1910 = vld [vmem:[%s1 + $0x8] sm:$0xf]
  %v1911 = vld [vmem:[%s1 + $0xc] sm:$0xf]
  %v1912 = vld [vmem:[%s1 + $0x10] sm:$0xf]
  %v1913 = vld [vmem:[%s1 + $0x14] sm:$0xf]
  %v1914 = vld [vmem:[%s1 + $0x18] sm:$0xf]
  %v1915 = vld [vmem:[%s1 + $0x1c] sm:$0xf]
  %v1916 = vld [vmem:[%s1 + $0x20] sm:$0xf]
  %vm1949 = vcmask 1046528
  %v1950 = vrot.slane %v1868, 1
  %v1951 = vrot.slane %v1869, 1
  %v1952 = vsel %vm1949, %v1950, %v1951
  %v1953 = vrot.slane %v1870, 1
  %v1954 = vrot.slane %v1871, 1
  %v1955 = vsel %vm1949, %v1953, %v1954
  %v1956 = vrot.slane %v1872, 1
  %v1957 = vrot.slane %v1873, 1
  %v1958 = vsel %vm1949, %v1956, %v1957
  %v1959 = vrot.slane %v1874, 1
  %v1960 = vrot.slane %v1875, 1
  %v1961 = vsel %vm1949, %v1959, %v1960
  %v1962 = vrot.slane %v1876, 1
  %v1963 = vrot.slane %v1877, 1
  %v1964 = vsel %vm1949, %v1962, %v1963
  %v1965 = vrot.slane %v1878, 1
  %v1966 = vrot.slane %v1879, 1
  %v1967 = vsel %vm1949, %v1965, %v1966
  %v1968 = vrot.slane %v1880, 1
  %v1969 = vrot.slane %v1881, 1
  %v1970 = vsel %vm1949, %v1968, %v1969
  %v1971 = vrot.slane %v1882, 1
  %v1972 = vrot.slane %v1883, 1
  %v1973 = vsel %vm1949, %v1971, %v1972
  %v1974 = vrot.slane %v1888, 1
  %v1975 = vrot.slane %v1889, 1
  %v1976 = vsel %vm1949, %v1974, %v1975
  %v1977 = vrot.slane %v1890, 1
  %v1978 = vrot.slane %v1891, 1
  %v1979 = vsel %vm1949, %v1977, %v1978
  %v1980 = vrot.slane %v1892, 1
  %v1981 = vrot.slane %v1893, 1
  %v1982 = vsel %vm1949, %v1980, %v1981
  %v1983 = vrot.slane %v1894, 1
  %v1984 = vrot.slane %v1895, 1
  %v1985 = vsel %vm1949, %v1983, %v1984
  %v1986 = vrot.slane %v1896, 1
  %v1987 = vrot.slane %v1897, 1
  %v1988 = vsel %vm1949, %v1986, %v1987
  %v1989 = vrot.slane %v1898, 1
  %v1990 = vrot.slane %v1899, 1
  %v1991 = vsel %vm1949, %v1989, %v1990
  %v1992 = vrot.slane %v1900, 1
  %v1993 = vrot.slane %v1901, 1
  %v1994 = vsel %vm1949, %v1992, %v1993
  %v1995 = vrot.slane %v1902, 1
  %v1996 = vrot.slane %v1903, 1
  %v1997 = vsel %vm1949, %v1995, %v1996
  %v1998 = vsel %vm1434, %v1952, 0
  %v2000 = vsel %vm1434, %v1955, 0
  %v2002 = vsel %vm1434, %v1958, 0
  %v2004 = vsel %vm1434, %v1961, 0
  %v2006 = vsel %vm1434, %v1964, 0
  %v2008 = vsel %vm1434, %v1967, 0
  %v2010 = vsel %vm1434, %v1970, 0
  %v2012 = vsel %vm1434, %v1973, 0
  %v2014 = vsel %vm1434, %v1976, 0
  %v2016 = vsel %vm1434, %v1979, 0
  %v2018 = vsel %vm1434, %v1982, 0
  %v2020 = vsel %vm1434, %v1985, 0
  %v2022 = vsel %vm1434, %v1988, 0
  %v2024 = vsel %vm1434, %v1991, 0
  %v2026 = vsel %vm1434, %v1994, 0
  %v2028 = vsel %vm1434, %v1997, 0
  %vm2030 = vcmask 1043456
  %v2032 = vsel %vm2030, %v1909, 0
  %2034 = vmatprep.subr.mxu0 0.0
  %2035 = vmatpush1.msra.mxu0 0.0
  %2036 = vmatprep.subr.mxu0 0.0
  %2037 = vmatpush1.msra.mxu0 0.0
  %2038 = vmatprep.subr.mxu0 0.0
  %2039 = vmatpush1.msra.mxu0 0.0
  %2040 = vmatprep.subr.mxu0 0.0
  %2041 = vmatpush1.msra.mxu0 0.0
  %2042 = vmatprep.subr.mxu0 0.0
  %2043 = vmatpush1.msra.mxu0 0.0
  %2044 = vmatprep.subr.mxu0 0.0
  %2045 = vmatpush1.msra.mxu0 0.0
  %2046 = vmatprep.subr.mxu0 0.0
  %2047 = vmatpush1.msra.mxu0 0.0
  %2048 = vmatprep.subr.mxu0 0.0
  %2049 = vmatpush1.msra.mxu0 0.0
  %2050 = vmatprep.subr.mxu0 0.0
  %2051 = vmatpush1.msra.mxu0 0.0
  %2052 = vmatprep.subr.mxu0 0.0
  %2053 = vmatpush1.msra.mxu0 0.0
  %2054 = vmatprep.subr.mxu0 0.0
  %2055 = vmatpush1.msra.mxu0 0.0
  %2056 = vmatprep.subr.mxu0 0.0
  %2057 = vmatpush1.msra.mxu0 0.0
  %2058 = vmatprep.subr.mxu0 0.0
  %2059 = vmatpush1.msra.mxu0 0.0
  %2060 = vmatprep.subr.mxu0 0.0
  %2061 = vmatpush1.msra.mxu0 0.0
  %2062 = vmatprep.subr.mxu0 0.0
  %2063 = vmatpush1.msra.mxu0 0.0
  %2064 = vmatprep.subr.mxu0 0.0
  %2065 = vmatpush1.msra.mxu0 %v2032
  %2066 = vmatprep.subr.mxu0 0.0
  %2067 = vmatpush2.msra.mxu0 0.0
  %2068 = vmatprep.subr.mxu0 0.0
  %2069 = vmatpush2.msra.mxu0 0.0
  %2070 = vmatprep.subr.mxu0 0.0
  %2071 = vmatpush2.msra.mxu0 0.0
  %2072 = vmatprep.subr.mxu0 0.0
  %2073 = vmatpush2.msra.mxu0 0.0
  %2074 = vmatprep.subr.mxu0 0.0
  %2075 = vmatpush2.msra.mxu0 0.0
  %2076 = vmatprep.subr.mxu0 0.0
  %2077 = vmatpush2.msra.mxu0 0.0
  %2078 = vmatprep.subr.mxu0 0.0
  %2079 = vmatpush2.msra.mxu0 0.0
  %2080 = vmatprep.subr.mxu0 0.0
  %2081 = vmatpush2.msra.mxu0 0.0
  %2082 = vmatprep.subr.mxu0 0.0
  %2083 = vmatpush2.msra.mxu0 0.0
  %2084 = vmatprep.subr.mxu0 0.0
  %2085 = vmatpush2.msra.mxu0 0.0
  %2086 = vmatprep.subr.mxu0 0.0
  %2087 = vmatpush2.msra.mxu0 0.0
  %2088 = vmatprep.subr.mxu0 0.0
  %2089 = vmatpush2.msra.mxu0 0.0
  %2090 = vmatprep.subr.mxu0 0.0
  %2091 = vmatpush2.msra.mxu0 0.0
  %2092 = vmatprep.subr.mxu0 0.0
  %2093 = vmatpush2.msra.mxu0 0.0
  %2094 = vmatprep.subr.mxu0 0.0
  %2095 = vmatpush2.msra.mxu0 0.0
  %2096 = vmatprep.subr.mxu0 0.0
  %2097 = vmatpush2.msra.mxu0 0.0
  %2098 = vmatprep.mubr.f32.mxu0 0.0
  %2099 = vmatmul.mubr.f32.gmra.mxu0 %v1998
  %v2100 = vpop.f32.mrf.mxu0
  %v2101 = vadd.f32 0.0, %v2100
  %v2102 = vpop.f32.mrf.mxu0
  %2103 = vmatprep.mubr.f32.mxu0 0.0
  %2104 = vmatmul.mubr.f32.gmra.mxu0 %v2000
  %v2105 = vpop.f32.mrf.mxu0
  %v2106 = vadd.f32 0.0, %v2105
  %v2107 = vpop.f32.mrf.mxu0
  %2108 = vmatprep.mubr.f32.mxu0 0.0
  %2109 = vmatmul.mubr.f32.gmra.mxu0 %v2002
  %v2110 = vpop.f32.mrf.mxu0
  %v2111 = vadd.f32 0.0, %v2110
  %v2112 = vpop.f32.mrf.mxu0
  %2113 = vmatprep.mubr.f32.mxu0 0.0
  %2114 = vmatmul.mubr.f32.gmra.mxu0 %v2004
  %v2115 = vpop.f32.mrf.mxu0
  %v2116 = vadd.f32 0.0, %v2115
  %v2117 = vpop.f32.mrf.mxu0
  %2118 = vmatprep.mubr.f32.mxu0 0.0
  %2119 = vmatmul.mubr.f32.gmra.mxu0 %v2006
  %v2120 = vpop.f32.mrf.mxu0
  %v2121 = vadd.f32 0.0, %v2120
  %v2122 = vpop.f32.mrf.mxu0
  %2123 = vmatprep.mubr.f32.mxu0 0.0
  %2124 = vmatmul.mubr.f32.gmra.mxu0 %v2008
  %v2125 = vpop.f32.mrf.mxu0
  %v2126 = vadd.f32 0.0, %v2125
  %v2127 = vpop.f32.mrf.mxu0
  %2128 = vmatprep.mubr.f32.mxu0 0.0
  %2129 = vmatmul.mubr.f32.gmra.mxu0 %v2010
  %v2130 = vpop.f32.mrf.mxu0
  %v2131 = vadd.f32 0.0, %v2130
  %v2132 = vpop.f32.mrf.mxu0
  %2133 = vmatprep.mubr.f32.mxu0 0.0
  %2134 = vmatmul.mubr.f32.gmra.mxu0 %v2012
  %v2135 = vpop.f32.mrf.mxu0
  %v2136 = vadd.f32 0.0, %v2135
  %v2137 = vpop.f32.mrf.mxu0
  %2138 = vmatprep.mubr.f32.mxu0 0.0
  %2139 = vmatmul.mubr.f32.gmra.mxu0 %v2014
  %v2140 = vpop.f32.mrf.mxu0
  %v2141 = vadd.f32 0.0, %v2140
  %v2142 = vpop.f32.mrf.mxu0
  %2143 = vmatprep.mubr.f32.mxu0 0.0
  %2144 = vmatmul.mubr.f32.gmra.mxu0 %v2016
  %v2145 = vpop.f32.mrf.mxu0
  %v2146 = vadd.f32 0.0, %v2145
  %v2147 = vpop.f32.mrf.mxu0
  %2148 = vmatprep.mubr.f32.mxu0 0.0
  %2149 = vmatmul.mubr.f32.gmra.mxu0 %v2018
  %v2150 = vpop.f32.mrf.mxu0
  %v2151 = vadd.f32 0.0, %v2150
  %v2152 = vpop.f32.mrf.mxu0
  %2153 = vmatprep.mubr.f32.mxu0 0.0
  %2154 = vmatmul.mubr.f32.gmra.mxu0 %v2020
  %v2155 = vpop.f32.mrf.mxu0
  %v2156 = vadd.f32 0.0, %v2155
  %v2157 = vpop.f32.mrf.mxu0
  %2158 = vmatprep.mubr.f32.mxu0 0.0
  %2159 = vmatmul.mubr.f32.gmra.mxu0 %v2022
  %v2160 = vpop.f32.mrf.mxu0
  %v2161 = vadd.f32 0.0, %v2160
  %v2162 = vpop.f32.mrf.mxu0
  %2163 = vmatprep.mubr.f32.mxu0 0.0
  %2164 = vmatmul.mubr.f32.gmra.mxu0 %v2024
  %v2165 = vpop.f32.mrf.mxu0
  %v2166 = vadd.f32 0.0, %v2165
  %v2167 = vpop.f32.mrf.mxu0
  %2168 = vmatprep.mubr.f32.mxu0 0.0
  %2169 = vmatmul.mubr.f32.gmra.mxu0 %v2026
  %v2170 = vpop.f32.mrf.mxu0
  %v2171 = vadd.f32 0.0, %v2170
  %v2172 = vpop.f32.mrf.mxu0
  %2173 = vmatprep.mubr.f32.mxu0 0.0
  %2174 = vmatmul.mubr.f32.gmra.mxu0 %v2028
  %v2175 = vpop.f32.mrf.mxu0
  %v2176 = vadd.f32 0.0, %v2175
  %v2177 = vpop.f32.mrf.mxu0
  %2178 = vdwg.mxu0
  %v2179 = vsel %vm1434, %v1868, 0
  %v2181 = vsel %vm1434, %v1870, 0
  %v2183 = vsel %vm1434, %v1872, 0
  %v2185 = vsel %vm1434, %v1874, 0
  %v2187 = vsel %vm1434, %v1876, 0
  %v2189 = vsel %vm1434, %v1878, 0
  %v2191 = vsel %vm1434, %v1880, 0
  %v2193 = vsel %vm1434, %v1882, 0
  %v2195 = vsel %vm1434, %v1888, 0
  %v2197 = vsel %vm1434, %v1890, 0
  %v2199 = vsel %vm1434, %v1892, 0
  %v2201 = vsel %vm1434, %v1894, 0
  %v2203 = vsel %vm1434, %v1896, 0
  %v2205 = vsel %vm1434, %v1898, 0
  %v2207 = vsel %vm1434, %v1900, 0
  %v2209 = vsel %vm1434, %v1902, 0
  %v2212 = vsel %vm2030, %v1908, 0
  %2214 = vmatprep.subr.mxu0 0.0
  %2215 = vmatpush1.msra.mxu0 0.0
  %2216 = vmatprep.subr.mxu0 0.0
  %2217 = vmatpush1.msra.mxu0 0.0
  %2218 = vmatprep.subr.mxu0 0.0
  %2219 = vmatpush1.msra.mxu0 0.0
  %2220 = vmatprep.subr.mxu0 0.0
  %2221 = vmatpush1.msra.mxu0 0.0
  %2222 = vmatprep.subr.mxu0 0.0
  %2223 = vmatpush1.msra.mxu0 0.0
  %2224 = vmatprep.subr.mxu0 0.0
  %2225 = vmatpush1.msra.mxu0 0.0
  %2226 = vmatprep.subr.mxu0 0.0
  %2227 = vmatpush1.msra.mxu0 0.0
  %2228 = vmatprep.subr.mxu0 0.0
  %2229 = vmatpush1.msra.mxu0 0.0
  %2230 = vmatprep.subr.mxu0 0.0
  %2231 = vmatpush1.msra.mxu0 0.0
  %2232 = vmatprep.subr.mxu0 0.0
  %2233 = vmatpush1.msra.mxu0 0.0
  %2234 = vmatprep.subr.mxu0 0.0
  %2235 = vmatpush1.msra.mxu0 0.0
  %2236 = vmatprep.subr.mxu0 0.0
  %2237 = vmatpush1.msra.mxu0 0.0
  %2238 = vmatprep.subr.mxu0 0.0
  %2239 = vmatpush1.msra.mxu0 0.0
  %2240 = vmatprep.subr.mxu0 0.0
  %2241 = vmatpush1.msra.mxu0 0.0
  %2242 = vmatprep.subr.mxu0 0.0
  %2243 = vmatpush1.msra.mxu0 0.0
  %2244 = vmatprep.subr.mxu0 0.0
  %2245 = vmatpush1.msra.mxu0 %v2212
  %2246 = vmatprep.subr.mxu0 0.0
  %2247 = vmatpush2.msra.mxu0 0.0
  %2248 = vmatprep.subr.mxu0 0.0
  %2249 = vmatpush2.msra.mxu0 0.0
  %2250 = vmatprep.subr.mxu0 0.0
  %2251 = vmatpush2.msra.mxu0 0.0
  %2252 = vmatprep.subr.mxu0 0.0
  %2253 = vmatpush2.msra.mxu0 0.0
  %2254 = vmatprep.subr.mxu0 0.0
  %2255 = vmatpush2.msra.mxu0 0.0
  %2256 = vmatprep.subr.mxu0 0.0
  %2257 = vmatpush2.msra.mxu0 0.0
  %2258 = vmatprep.subr.mxu0 0.0
  %2259 = vmatpush2.msra.mxu0 0.0
  %2260 = vmatprep.subr.mxu0 0.0
  %2261 = vmatpush2.msra.mxu0 0.0
  %2262 = vmatprep.subr.mxu0 0.0
  %2263 = vmatpush2.msra.mxu0 0.0
  %2264 = vmatprep.subr.mxu0 0.0
  %2265 = vmatpush2.msra.mxu0 0.0
  %2266 = vmatprep.subr.mxu0 0.0
  %2267 = vmatpush2.msra.mxu0 0.0
  %2268 = vmatprep.subr.mxu0 0.0
  %2269 = vmatpush2.msra.mxu0 0.0
  %2270 = vmatprep.subr.mxu0 0.0
  %2271 = vmatpush2.msra.mxu0 0.0
  %2272 = vmatprep.subr.mxu0 0.0
  %2273 = vmatpush2.msra.mxu0 0.0
  %2274 = vmatprep.subr.mxu0 0.0
  %2275 = vmatpush2.msra.mxu0 0.0
  %2276 = vmatprep.subr.mxu0 0.0
  %2277 = vmatpush2.msra.mxu0 0.0
  %2278 = vmatprep.mubr.f32.mxu0 0.0
  %2279 = vmatmul.mubr.f32.gmra.mxu0 %v2179
  %v2280 = vpop.f32.mrf.mxu0
  %v2281 = vadd.f32 %v2101, %v2280
  %v2282 = vpop.f32.mrf.mxu0
  %2283 = vmatprep.mubr.f32.mxu0 0.0
  %2284 = vmatmul.mubr.f32.gmra.mxu0 %v2181
  %v2285 = vpop.f32.mrf.mxu0
  %v2286 = vadd.f32 %v2106, %v2285
  %v2287 = vpop.f32.mrf.mxu0
  %2288 = vmatprep.mubr.f32.mxu0 0.0
  %2289 = vmatmul.mubr.f32.gmra.mxu0 %v2183
  %v2290 = vpop.f32.mrf.mxu0
  %v2291 = vadd.f32 %v2111, %v2290
  %v2292 = vpop.f32.mrf.mxu0
  %2293 = vmatprep.mubr.f32.mxu0 0.0
  %2294 = vmatmul.mubr.f32.gmra.mxu0 %v2185
  %v2295 = vpop.f32.mrf.mxu0
  %v2296 = vadd.f32 %v2116, %v2295
  %v2297 = vpop.f32.mrf.mxu0
  %2298 = vmatprep.mubr.f32.mxu0 0.0
  %2299 = vmatmul.mubr.f32.gmra.mxu0 %v2187
  %v2300 = vpop.f32.mrf.mxu0
  %v2301 = vadd.f32 %v2121, %v2300
  %v2302 = vpop.f32.mrf.mxu0
  %2303 = vmatprep.mubr.f32.mxu0 0.0
  %2304 = vmatmul.mubr.f32.gmra.mxu0 %v2189
  %v2305 = vpop.f32.mrf.mxu0
  %v2306 = vadd.f32 %v2126, %v2305
  %v2307 = vpop.f32.mrf.mxu0
  %2308 = vmatprep.mubr.f32.mxu0 0.0
  %2309 = vmatmul.mubr.f32.gmra.mxu0 %v2191
  %v2310 = vpop.f32.mrf.mxu0
  %v2311 = vadd.f32 %v2131, %v2310
  %v2312 = vpop.f32.mrf.mxu0
  %2313 = vmatprep.mubr.f32.mxu0 0.0
  %2314 = vmatmul.mubr.f32.gmra.mxu0 %v2193
  %v2315 = vpop.f32.mrf.mxu0
  %v2316 = vadd.f32 %v2136, %v2315
  %v2317 = vpop.f32.mrf.mxu0
  %2318 = vmatprep.mubr.f32.mxu0 0.0
  %2319 = vmatmul.mubr.f32.gmra.mxu0 %v2195
  %v2320 = vpop.f32.mrf.mxu0
  %v2321 = vadd.f32 %v2141, %v2320
  %v2322 = vpop.f32.mrf.mxu0
  %2323 = vmatprep.mubr.f32.mxu0 0.0
  %2324 = vmatmul.mubr.f32.gmra.mxu0 %v2197
  %v2325 = vpop.f32.mrf.mxu0
  %v2326 = vadd.f32 %v2146, %v2325
  %v2327 = vpop.f32.mrf.mxu0
  %2328 = vmatprep.mubr.f32.mxu0 0.0
  %2329 = vmatmul.mubr.f32.gmra.mxu0 %v2199
  %v2330 = vpop.f32.mrf.mxu0
  %v2331 = vadd.f32 %v2151, %v2330
  %v2332 = vpop.f32.mrf.mxu0
  %2333 = vmatprep.mubr.f32.mxu0 0.0
  %2334 = vmatmul.mubr.f32.gmra.mxu0 %v2201
  %v2335 = vpop.f32.mrf.mxu0
  %v2336 = vadd.f32 %v2156, %v2335
  %v2337 = vpop.f32.mrf.mxu0
  %2338 = vmatprep.mubr.f32.mxu0 0.0
  %2339 = vmatmul.mubr.f32.gmra.mxu0 %v2203
  %v2340 = vpop.f32.mrf.mxu0
  %v2341 = vadd.f32 %v2161, %v2340
  %v2342 = vpop.f32.mrf.mxu0
  %2343 = vmatprep.mubr.f32.mxu0 0.0
  %2344 = vmatmul.mubr.f32.gmra.mxu0 %v2205
  %v2345 = vpop.f32.mrf.mxu0
  %v2346 = vadd.f32 %v2166, %v2345
  %v2347 = vpop.f32.mrf.mxu0
  %2348 = vmatprep.mubr.f32.mxu0 0.0
  %2349 = vmatmul.mubr.f32.gmra.mxu0 %v2207
  %v2350 = vpop.f32.mrf.mxu0
  %v2351 = vadd.f32 %v2171, %v2350
  %v2352 = vpop.f32.mrf.mxu0
  %2353 = vmatprep.mubr.f32.mxu0 0.0
  %2354 = vmatmul.mubr.f32.gmra.mxu0 %v2209
  %v2355 = vpop.f32.mrf.mxu0
  %v2356 = vadd.f32 %v2176, %v2355
  %v2357 = vpop.f32.mrf.mxu0
  %2358 = vdwg.mxu0
  %vm2359 = vcmask 1045504
  %v2360 = vrot.slane %v1868, 2
  %v2361 = vrot.slane %v1869, 2
  %v2362 = vsel %vm2359, %v2360, %v2361
  %v2363 = vrot.slane %v1870, 2
  %v2364 = vrot.slane %v1871, 2
  %v2365 = vsel %vm2359, %v2363, %v2364
  %v2366 = vrot.slane %v1872, 2
  %v2367 = vrot.slane %v1873, 2
  %v2368 = vsel %vm2359, %v2366, %v2367
  %v2369 = vrot.slane %v1874, 2
  %v2370 = vrot.slane %v1875, 2
  %v2371 = vsel %vm2359, %v2369, %v2370
  %v2372 = vrot.slane %v1876, 2
  %v2373 = vrot.slane %v1877, 2
  %v2374 = vsel %vm2359, %v2372, %v2373
  %v2375 = vrot.slane %v1878, 2
  %v2376 = vrot.slane %v1879, 2
  %v2377 = vsel %vm2359, %v2375, %v2376
  %v2378 = vrot.slane %v1880, 2
  %v2379 = vrot.slane %v1881, 2
  %v2380 = vsel %vm2359, %v2378, %v2379
  %v2381 = vrot.slane %v1882, 2
  %v2382 = vrot.slane %v1883, 2
  %v2383 = vsel %vm2359, %v2381, %v2382
  %v2384 = vrot.slane %v1888, 2
  %v2385 = vrot.slane %v1889, 2
  %v2386 = vsel %vm2359, %v2384, %v2385
  %v2387 = vrot.slane %v1890, 2
  %v2388 = vrot.slane %v1891, 2
  %v2389 = vsel %vm2359, %v2387, %v2388
  %v2390 = vrot.slane %v1892, 2
  %v2391 = vrot.slane %v1893, 2
  %v2392 = vsel %vm2359, %v2390, %v2391
  %v2393 = vrot.slane %v1894, 2
  %v2394 = vrot.slane %v1895, 2
  %v2395 = vsel %vm2359, %v2393, %v2394
  %v2396 = vrot.slane %v1896, 2
  %v2397 = vrot.slane %v1897, 2
  %v2398 = vsel %vm2359, %v2396, %v2397
  %v2399 = vrot.slane %v1898, 2
  %v2400 = vrot.slane %v1899, 2
  %v2401 = vsel %vm2359, %v2399, %v2400
  %v2402 = vrot.slane %v1900, 2
  %v2403 = vrot.slane %v1901, 2
  %v2404 = vsel %vm2359, %v2402, %v2403
  %v2405 = vrot.slane %v1902, 2
  %v2406 = vrot.slane %v1903, 2
  %v2407 = vsel %vm2359, %v2405, %v2406
  %v2408 = vsel %vm1434, %v2362, 0
  %v2410 = vsel %vm1434, %v2365, 0
  %v2412 = vsel %vm1434, %v2368, 0
  %v2414 = vsel %vm1434, %v2371, 0
  %v2416 = vsel %vm1434, %v2374, 0
  %v2418 = vsel %vm1434, %v2377, 0
  %v2420 = vsel %vm1434, %v2380, 0
  %v2422 = vsel %vm1434, %v2383, 0
  %v2424 = vsel %vm1434, %v2386, 0
  %v2426 = vsel %vm1434, %v2389, 0
  %v2428 = vsel %vm1434, %v2392, 0
  %v2430 = vsel %vm1434, %v2395, 0
  %v2432 = vsel %vm1434, %v2398, 0
  %v2434 = vsel %vm1434, %v2401, 0
  %v2436 = vsel %vm1434, %v2404, 0
  %v2438 = vsel %vm1434, %v2407, 0
  %v2441 = vsel %vm2030, %v1910, 0
  %2443 = vmatprep.subr.mxu0 0.0
  %2444 = vmatpush1.msra.mxu0 0.0
  %2445 = vmatprep.subr.mxu0 0.0
  %2446 = vmatpush1.msra.mxu0 0.0
  %2447 = vmatprep.subr.mxu0 0.0
  %2448 = vmatpush1.msra.mxu0 0.0
  %2449 = vmatprep.subr.mxu0 0.0
  %2450 = vmatpush1.msra.mxu0 0.0
  %2451 = vmatprep.subr.mxu0 0.0
  %2452 = vmatpush1.msra.mxu0 0.0
  %2453 = vmatprep.subr.mxu0 0.0
  %2454 = vmatpush1.msra.mxu0 0.0
  %2455 = vmatprep.subr.mxu0 0.0
  %2456 = vmatpush1.msra.mxu0 0.0
  %2457 = vmatprep.subr.mxu0 0.0
  %2458 = vmatpush1.msra.mxu0 0.0
  %2459 = vmatprep.subr.mxu0 0.0
  %2460 = vmatpush1.msra.mxu0 0.0
  %2461 = vmatprep.subr.mxu0 0.0
  %2462 = vmatpush1.msra.mxu0 0.0
  %2463 = vmatprep.subr.mxu0 0.0
  %2464 = vmatpush1.msra.mxu0 0.0
  %2465 = vmatprep.subr.mxu0 0.0
  %2466 = vmatpush1.msra.mxu0 0.0
  %2467 = vmatprep.subr.mxu0 0.0
  %2468 = vmatpush1.msra.mxu0 0.0
  %2469 = vmatprep.subr.mxu0 0.0
  %2470 = vmatpush1.msra.mxu0 0.0
  %2471 = vmatprep.subr.mxu0 0.0
  %2472 = vmatpush1.msra.mxu0 0.0
  %2473 = vmatprep.subr.mxu0 0.0
  %2474 = vmatpush1.msra.mxu0 %v2441
  %2475 = vmatprep.subr.mxu0 0.0
  %2476 = vmatpush2.msra.mxu0 0.0
  %2477 = vmatprep.subr.mxu0 0.0
  %2478 = vmatpush2.msra.mxu0 0.0
  %2479 = vmatprep.subr.mxu0 0.0
  %2480 = vmatpush2.msra.mxu0 0.0
  %2481 = vmatprep.subr.mxu0 0.0
  %2482 = vmatpush2.msra.mxu0 0.0
  %2483 = vmatprep.subr.mxu0 0.0
  %2484 = vmatpush2.msra.mxu0 0.0
  %2485 = vmatprep.subr.mxu0 0.0
  %2486 = vmatpush2.msra.mxu0 0.0
  %2487 = vmatprep.subr.mxu0 0.0
  %2488 = vmatpush2.msra.mxu0 0.0
  %2489 = vmatprep.subr.mxu0 0.0
  %2490 = vmatpush2.msra.mxu0 0.0
  %2491 = vmatprep.subr.mxu0 0.0
  %2492 = vmatpush2.msra.mxu0 0.0
  %2493 = vmatprep.subr.mxu0 0.0
  %2494 = vmatpush2.msra.mxu0 0.0
  %2495 = vmatprep.subr.mxu0 0.0
  %2496 = vmatpush2.msra.mxu0 0.0
  %2497 = vmatprep.subr.mxu0 0.0
  %2498 = vmatpush2.msra.mxu0 0.0
  %2499 = vmatprep.subr.mxu0 0.0
  %2500 = vmatpush2.msra.mxu0 0.0
  %2501 = vmatprep.subr.mxu0 0.0
  %2502 = vmatpush2.msra.mxu0 0.0
  %2503 = vmatprep.subr.mxu0 0.0
  %2504 = vmatpush2.msra.mxu0 0.0
  %2505 = vmatprep.subr.mxu0 0.0
  %2506 = vmatpush2.msra.mxu0 0.0
  %2507 = vmatprep.mubr.f32.mxu0 0.0
  %2508 = vmatmul.mubr.f32.gmra.mxu0 %v2408
  %v2509 = vpop.f32.mrf.mxu0
  %v2510 = vadd.f32 0.0, %v2509
  %v2511 = vpop.f32.mrf.mxu0
  %2512 = vmatprep.mubr.f32.mxu0 0.0
  %2513 = vmatmul.mubr.f32.gmra.mxu0 %v2410
  %v2514 = vpop.f32.mrf.mxu0
  %v2515 = vadd.f32 0.0, %v2514
  %v2516 = vpop.f32.mrf.mxu0
  %2517 = vmatprep.mubr.f32.mxu0 0.0
  %2518 = vmatmul.mubr.f32.gmra.mxu0 %v2412
  %v2519 = vpop.f32.mrf.mxu0
  %v2520 = vadd.f32 0.0, %v2519
  %v2521 = vpop.f32.mrf.mxu0
  %2522 = vmatprep.mubr.f32.mxu0 0.0
  %2523 = vmatmul.mubr.f32.gmra.mxu0 %v2414
  %v2524 = vpop.f32.mrf.mxu0
  %v2525 = vadd.f32 0.0, %v2524
  %v2526 = vpop.f32.mrf.mxu0
  %2527 = vmatprep.mubr.f32.mxu0 0.0
  %2528 = vmatmul.mubr.f32.gmra.mxu0 %v2416
  %v2529 = vpop.f32.mrf.mxu0
  %v2530 = vadd.f32 0.0, %v2529
  %v2531 = vpop.f32.mrf.mxu0
  %2532 = vmatprep.mubr.f32.mxu0 0.0
  %2533 = vmatmul.mubr.f32.gmra.mxu0 %v2418
  %v2534 = vpop.f32.mrf.mxu0
  %v2535 = vadd.f32 0.0, %v2534
  %v2536 = vpop.f32.mrf.mxu0
  %2537 = vmatprep.mubr.f32.mxu0 0.0
  %2538 = vmatmul.mubr.f32.gmra.mxu0 %v2420
  %v2539 = vpop.f32.mrf.mxu0
  %v2540 = vadd.f32 0.0, %v2539
  %v2541 = vpop.f32.mrf.mxu0
  %2542 = vmatprep.mubr.f32.mxu0 0.0
  %2543 = vmatmul.mubr.f32.gmra.mxu0 %v2422
  %v2544 = vpop.f32.mrf.mxu0
  %v2545 = vadd.f32 0.0, %v2544
  %v2546 = vpop.f32.mrf.mxu0
  %2547 = vmatprep.mubr.f32.mxu0 0.0
  %2548 = vmatmul.mubr.f32.gmra.mxu0 %v2424
  %v2549 = vpop.f32.mrf.mxu0
  %v2550 = vadd.f32 0.0, %v2549
  %v2551 = vpop.f32.mrf.mxu0
  %2552 = vmatprep.mubr.f32.mxu0 0.0
  %2553 = vmatmul.mubr.f32.gmra.mxu0 %v2426
  %v2554 = vpop.f32.mrf.mxu0
  %v2555 = vadd.f32 0.0, %v2554
  %v2556 = vpop.f32.mrf.mxu0
  %2557 = vmatprep.mubr.f32.mxu0 0.0
  %2558 = vmatmul.mubr.f32.gmra.mxu0 %v2428
  %v2559 = vpop.f32.mrf.mxu0
  %v2560 = vadd.f32 0.0, %v2559
  %v2561 = vpop.f32.mrf.mxu0
  %2562 = vmatprep.mubr.f32.mxu0 0.0
  %2563 = vmatmul.mubr.f32.gmra.mxu0 %v2430
  %v2564 = vpop.f32.mrf.mxu0
  %v2565 = vadd.f32 0.0, %v2564
  %v2566 = vpop.f32.mrf.mxu0
  %2567 = vmatprep.mubr.f32.mxu0 0.0
  %2568 = vmatmul.mubr.f32.gmra.mxu0 %v2432
  %v2569 = vpop.f32.mrf.mxu0
  %v2570 = vadd.f32 0.0, %v2569
  %v2571 = vpop.f32.mrf.mxu0
  %2572 = vmatprep.mubr.f32.mxu0 0.0
  %2573 = vmatmul.mubr.f32.gmra.mxu0 %v2434
  %v2574 = vpop.f32.mrf.mxu0
  %v2575 = vadd.f32 0.0, %v2574
  %v2576 = vpop.f32.mrf.mxu0
  %2577 = vmatprep.mubr.f32.mxu0 0.0
  %2578 = vmatmul.mubr.f32.gmra.mxu0 %v2436
  %v2579 = vpop.f32.mrf.mxu0
  %v2580 = vadd.f32 0.0, %v2579
  %v2581 = vpop.f32.mrf.mxu0
  %2582 = vmatprep.mubr.f32.mxu0 0.0
  %2583 = vmatmul.mubr.f32.gmra.mxu0 %v2438
  %v2584 = vpop.f32.mrf.mxu0
  %v2585 = vadd.f32 0.0, %v2584
  %v2586 = vpop.f32.mrf.mxu0
  %2587 = vdwg.mxu0
  %v2588 = vadd.f32 %v2281, %v2510
  %v2589 = vadd.f32 %v2286, %v2515
  %v2590 = vadd.f32 %v2291, %v2520
  %v2591 = vadd.f32 %v2296, %v2525
  %v2592 = vadd.f32 %v2301, %v2530
  %v2593 = vadd.f32 %v2306, %v2535
  %v2594 = vadd.f32 %v2311, %v2540
  %v2595 = vadd.f32 %v2316, %v2545
  %v2596 = vadd.f32 %v2321, %v2550
  %v2597 = vadd.f32 %v2326, %v2555
  %v2598 = vadd.f32 %v2331, %v2560
  %v2599 = vadd.f32 %v2336, %v2565
  %v2600 = vadd.f32 %v2341, %v2570
  %v2601 = vadd.f32 %v2346, %v2575
  %v2602 = vadd.f32 %v2351, %v2580
  %v2603 = vadd.f32 %v2356, %v2585
  %v2605 = vsel %vm1434, %v1884, 0
  %v2608 = vsel %vm1434, %v1904, 0
  %v2611 = vsel %vm2030, %v1911, 0
  %2613 = vmatprep.subr.mxu0 0.0
  %2614 = vmatpush1.msra.mxu0 0.0
  %2615 = vmatprep.subr.mxu0 0.0
  %2616 = vmatpush1.msra.mxu0 0.0
  %2617 = vmatprep.subr.mxu0 0.0
  %2618 = vmatpush1.msra.mxu0 0.0
  %2619 = vmatprep.subr.mxu0 0.0
  %2620 = vmatpush1.msra.mxu0 0.0
  %2621 = vmatprep.subr.mxu0 0.0
  %2622 = vmatpush1.msra.mxu0 0.0
  %2623 = vmatprep.subr.mxu0 0.0
  %2624 = vmatpush1.msra.mxu0 0.0
  %2625 = vmatprep.subr.mxu0 0.0
  %2626 = vmatpush1.msra.mxu0 0.0
  %2627 = vmatprep.subr.mxu0 0.0
  %2628 = vmatpush1.msra.mxu0 0.0
  %2629 = vmatprep.subr.mxu0 0.0
  %2630 = vmatpush1.msra.mxu0 0.0
  %2631 = vmatprep.subr.mxu0 0.0
  %2632 = vmatpush1.msra.mxu0 0.0
  %2633 = vmatprep.subr.mxu0 0.0
  %2634 = vmatpush1.msra.mxu0 0.0
  %2635 = vmatprep.subr.mxu0 0.0
  %2636 = vmatpush1.msra.mxu0 0.0
  %2637 = vmatprep.subr.mxu0 0.0
  %2638 = vmatpush1.msra.mxu0 0.0
  %2639 = vmatprep.subr.mxu0 0.0
  %2640 = vmatpush1.msra.mxu0 0.0
  %2641 = vmatprep.subr.mxu0 0.0
  %2642 = vmatpush1.msra.mxu0 0.0
  %2643 = vmatprep.subr.mxu0 0.0
  %2644 = vmatpush1.msra.mxu0 %v2611
  %2645 = vmatprep.subr.mxu0 0.0
  %2646 = vmatpush2.msra.mxu0 0.0
  %2647 = vmatprep.subr.mxu0 0.0
  %2648 = vmatpush2.msra.mxu0 0.0
  %2649 = vmatprep.subr.mxu0 0.0
  %2650 = vmatpush2.msra.mxu0 0.0
  %2651 = vmatprep.subr.mxu0 0.0
  %2652 = vmatpush2.msra.mxu0 0.0
  %2653 = vmatprep.subr.mxu0 0.0
  %2654 = vmatpush2.msra.mxu0 0.0
  %2655 = vmatprep.subr.mxu0 0.0
  %2656 = vmatpush2.msra.mxu0 0.0
  %2657 = vmatprep.subr.mxu0 0.0
  %2658 = vmatpush2.msra.mxu0 0.0
  %2659 = vmatprep.subr.mxu0 0.0
  %2660 = vmatpush2.msra.mxu0 0.0
  %2661 = vmatprep.subr.mxu0 0.0
  %2662 = vmatpush2.msra.mxu0 0.0
  %2663 = vmatprep.subr.mxu0 0.0
  %2664 = vmatpush2.msra.mxu0 0.0
  %2665 = vmatprep.subr.mxu0 0.0
  %2666 = vmatpush2.msra.mxu0 0.0
  %2667 = vmatprep.subr.mxu0 0.0
  %2668 = vmatpush2.msra.mxu0 0.0
  %2669 = vmatprep.subr.mxu0 0.0
  %2670 = vmatpush2.msra.mxu0 0.0
  %2671 = vmatprep.subr.mxu0 0.0
  %2672 = vmatpush2.msra.mxu0 0.0
  %2673 = vmatprep.subr.mxu0 0.0
  %2674 = vmatpush2.msra.mxu0 0.0
  %2675 = vmatprep.subr.mxu0 0.0
  %2676 = vmatpush2.msra.mxu0 0.0
  %2677 = vmatprep.mubr.f32.mxu0 0.0
  %2678 = vmatmul.mubr.f32.gmra.mxu0 %v2181
  %v2679 = vpop.f32.mrf.mxu0
  %v2680 = vadd.f32 0.0, %v2679
  %v2681 = vpop.f32.mrf.mxu0
  %2682 = vmatprep.mubr.f32.mxu0 0.0
  %2683 = vmatmul.mubr.f32.gmra.mxu0 %v2183
  %v2684 = vpop.f32.mrf.mxu0
  %v2685 = vadd.f32 0.0, %v2684
  %v2686 = vpop.f32.mrf.mxu0
  %2687 = vmatprep.mubr.f32.mxu0 0.0
  %2688 = vmatmul.mubr.f32.gmra.mxu0 %v2185
  %v2689 = vpop.f32.mrf.mxu0
  %v2690 = vadd.f32 0.0, %v2689
  %v2691 = vpop.f32.mrf.mxu0
  %2692 = vmatprep.mubr.f32.mxu0 0.0
  %2693 = vmatmul.mubr.f32.gmra.mxu0 %v2187
  %v2694 = vpop.f32.mrf.mxu0
  %v2695 = vadd.f32 0.0, %v2694
  %v2696 = vpop.f32.mrf.mxu0
  %2697 = vmatprep.mubr.f32.mxu0 0.0
  %2698 = vmatmul.mubr.f32.gmra.mxu0 %v2189
  %v2699 = vpop.f32.mrf.mxu0
  %v2700 = vadd.f32 0.0, %v2699
  %v2701 = vpop.f32.mrf.mxu0
  %2702 = vmatprep.mubr.f32.mxu0 0.0
  %2703 = vmatmul.mubr.f32.gmra.mxu0 %v2191
  %v2704 = vpop.f32.mrf.mxu0
  %v2705 = vadd.f32 0.0, %v2704
  %v2706 = vpop.f32.mrf.mxu0
  %2707 = vmatprep.mubr.f32.mxu0 0.0
  %2708 = vmatmul.mubr.f32.gmra.mxu0 %v2193
  %v2709 = vpop.f32.mrf.mxu0
  %v2710 = vadd.f32 0.0, %v2709
  %v2711 = vpop.f32.mrf.mxu0
  %2712 = vmatprep.mubr.f32.mxu0 0.0
  %2713 = vmatmul.mubr.f32.gmra.mxu0 %v2605
  %v2714 = vpop.f32.mrf.mxu0
  %v2715 = vadd.f32 0.0, %v2714
  %v2716 = vpop.f32.mrf.mxu0
  %2717 = vmatprep.mubr.f32.mxu0 0.0
  %2718 = vmatmul.mubr.f32.gmra.mxu0 %v2197
  %v2719 = vpop.f32.mrf.mxu0
  %v2720 = vadd.f32 0.0, %v2719
  %v2721 = vpop.f32.mrf.mxu0
  %2722 = vmatprep.mubr.f32.mxu0 0.0
  %2723 = vmatmul.mubr.f32.gmra.mxu0 %v2199
  %v2724 = vpop.f32.mrf.mxu0
  %v2725 = vadd.f32 0.0, %v2724
  %v2726 = vpop.f32.mrf.mxu0
  %2727 = vmatprep.mubr.f32.mxu0 0.0
  %2728 = vmatmul.mubr.f32.gmra.mxu0 %v2201
  %v2729 = vpop.f32.mrf.mxu0
  %v2730 = vadd.f32 0.0, %v2729
  %v2731 = vpop.f32.mrf.mxu0
  %2732 = vmatprep.mubr.f32.mxu0 0.0
  %2733 = vmatmul.mubr.f32.gmra.mxu0 %v2203
  %v2734 = vpop.f32.mrf.mxu0
  %v2735 = vadd.f32 0.0, %v2734
  %v2736 = vpop.f32.mrf.mxu0
  %2737 = vmatprep.mubr.f32.mxu0 0.0
  %2738 = vmatmul.mubr.f32.gmra.mxu0 %v2205
  %v2739 = vpop.f32.mrf.mxu0
  %v2740 = vadd.f32 0.0, %v2739
  %v2741 = vpop.f32.mrf.mxu0
  %2742 = vmatprep.mubr.f32.mxu0 0.0
  %2743 = vmatmul.mubr.f32.gmra.mxu0 %v2207
  %v2744 = vpop.f32.mrf.mxu0
  %v2745 = vadd.f32 0.0, %v2744
  %v2746 = vpop.f32.mrf.mxu0
  %2747 = vmatprep.mubr.f32.mxu0 0.0
  %2748 = vmatmul.mubr.f32.gmra.mxu0 %v2209
  %v2749 = vpop.f32.mrf.mxu0
  %v2750 = vadd.f32 0.0, %v2749
  %v2751 = vpop.f32.mrf.mxu0
  %2752 = vmatprep.mubr.f32.mxu0 0.0
  %2753 = vmatmul.mubr.f32.gmra.mxu0 %v2608
  %v2754 = vpop.f32.mrf.mxu0
  %v2755 = vadd.f32 0.0, %v2754
  %v2756 = vpop.f32.mrf.mxu0
  %2757 = vdwg.mxu0
  %v2758 = vadd.f32 %v2588, %v2680
  %v2759 = vadd.f32 %v2589, %v2685
  %v2760 = vadd.f32 %v2590, %v2690
  %v2761 = vadd.f32 %v2591, %v2695
  %v2762 = vadd.f32 %v2592, %v2700
  %v2763 = vadd.f32 %v2593, %v2705
  %v2764 = vadd.f32 %v2594, %v2710
  %v2765 = vadd.f32 %v2595, %v2715
  %v2766 = vadd.f32 %v2596, %v2720
  %v2767 = vadd.f32 %v2597, %v2725
  %v2768 = vadd.f32 %v2598, %v2730
  %v2769 = vadd.f32 %v2599, %v2735
  %v2770 = vadd.f32 %v2600, %v2740
  %v2771 = vadd.f32 %v2601, %v2745
  %v2772 = vadd.f32 %v2602, %v2750
  %v2773 = vadd.f32 %v2603, %v2755
  %v2776 = vrot.slane %v1884, 1
  %v2777 = vrot.slane %v1885, 1
  %v2778 = vsel %vm1949, %v2776, %v2777
  %v2779 = vrot.slane %v1904, 1
  %v2780 = vrot.slane %v1905, 1
  %v2781 = vsel %vm1949, %v2779, %v2780
  %v2782 = vsel %vm1434, %v2778, 0
  %v2784 = vsel %vm1434, %v2781, 0
  %v2787 = vsel %vm2030, %v1912, 0
  %2789 = vmatprep.subr.mxu0 0.0
  %2790 = vmatpush1.msra.mxu0 0.0
  %2791 = vmatprep.subr.mxu0 0.0
  %2792 = vmatpush1.msra.mxu0 0.0
  %2793 = vmatprep.subr.mxu0 0.0
  %2794 = vmatpush1.msra.mxu0 0.0
  %2795 = vmatprep.subr.mxu0 0.0
  %2796 = vmatpush1.msra.mxu0 0.0
  %2797 = vmatprep.subr.mxu0 0.0
  %2798 = vmatpush1.msra.mxu0 0.0
  %2799 = vmatprep.subr.mxu0 0.0
  %2800 = vmatpush1.msra.mxu0 0.0
  %2801 = vmatprep.subr.mxu0 0.0
  %2802 = vmatpush1.msra.mxu0 0.0
  %2803 = vmatprep.subr.mxu0 0.0
  %2804 = vmatpush1.msra.mxu0 0.0
  %2805 = vmatprep.subr.mxu0 0.0
  %2806 = vmatpush1.msra.mxu0 0.0
  %2807 = vmatprep.subr.mxu0 0.0
  %2808 = vmatpush1.msra.mxu0 0.0
  %2809 = vmatprep.subr.mxu0 0.0
  %2810 = vmatpush1.msra.mxu0 0.0
  %2811 = vmatprep.subr.mxu0 0.0
  %2812 = vmatpush1.msra.mxu0 0.0
  %2813 = vmatprep.subr.mxu0 0.0
  %2814 = vmatpush1.msra.mxu0 0.0
  %2815 = vmatprep.subr.mxu0 0.0
  %2816 = vmatpush1.msra.mxu0 0.0
  %2817 = vmatprep.subr.mxu0 0.0
  %2818 = vmatpush1.msra.mxu0 0.0
  %2819 = vmatprep.subr.mxu0 0.0
  %2820 = vmatpush1.msra.mxu0 %v2787
  %2821 = vmatprep.subr.mxu0 0.0
  %2822 = vmatpush2.msra.mxu0 0.0
  %2823 = vmatprep.subr.mxu0 0.0
  %2824 = vmatpush2.msra.mxu0 0.0
  %2825 = vmatprep.subr.mxu0 0.0
  %2826 = vmatpush2.msra.mxu0 0.0
  %2827 = vmatprep.subr.mxu0 0.0
  %2828 = vmatpush2.msra.mxu0 0.0
  %2829 = vmatprep.subr.mxu0 0.0
  %2830 = vmatpush2.msra.mxu0 0.0
  %2831 = vmatprep.subr.mxu0 0.0
  %2832 = vmatpush2.msra.mxu0 0.0
  %2833 = vmatprep.subr.mxu0 0.0
  %2834 = vmatpush2.msra.mxu0 0.0
  %2835 = vmatprep.subr.mxu0 0.0
  %2836 = vmatpush2.msra.mxu0 0.0
  %2837 = vmatprep.subr.mxu0 0.0
  %2838 = vmatpush2.msra.mxu0 0.0
  %2839 = vmatprep.subr.mxu0 0.0
  %2840 = vmatpush2.msra.mxu0 0.0
  %2841 = vmatprep.subr.mxu0 0.0
  %2842 = vmatpush2.msra.mxu0 0.0
  %2843 = vmatprep.subr.mxu0 0.0
  %2844 = vmatpush2.msra.mxu0 0.0
  %2845 = vmatprep.subr.mxu0 0.0
  %2846 = vmatpush2.msra.mxu0 0.0
  %2847 = vmatprep.subr.mxu0 0.0
  %2848 = vmatpush2.msra.mxu0 0.0
  %2849 = vmatprep.subr.mxu0 0.0
  %2850 = vmatpush2.msra.mxu0 0.0
  %2851 = vmatprep.subr.mxu0 0.0
  %2852 = vmatpush2.msra.mxu0 0.0
  %2853 = vmatprep.mubr.f32.mxu0 0.0
  %2854 = vmatmul.mubr.f32.gmra.mxu0 %v2000
  %v2855 = vpop.f32.mrf.mxu0
  %v2856 = vadd.f32 0.0, %v2855
  %v2857 = vpop.f32.mrf.mxu0
  %2858 = vmatprep.mubr.f32.mxu0 0.0
  %2859 = vmatmul.mubr.f32.gmra.mxu0 %v2002
  %v2860 = vpop.f32.mrf.mxu0
  %v2861 = vadd.f32 0.0, %v2860
  %v2862 = vpop.f32.mrf.mxu0
  %2863 = vmatprep.mubr.f32.mxu0 0.0
  %2864 = vmatmul.mubr.f32.gmra.mxu0 %v2004
  %v2865 = vpop.f32.mrf.mxu0
  %v2866 = vadd.f32 0.0, %v2865
  %v2867 = vpop.f32.mrf.mxu0
  %2868 = vmatprep.mubr.f32.mxu0 0.0
  %2869 = vmatmul.mubr.f32.gmra.mxu0 %v2006
  %v2870 = vpop.f32.mrf.mxu0
  %v2871 = vadd.f32 0.0, %v2870
  %v2872 = vpop.f32.mrf.mxu0
  %2873 = vmatprep.mubr.f32.mxu0 0.0
  %2874 = vmatmul.mubr.f32.gmra.mxu0 %v2008
  %v2875 = vpop.f32.mrf.mxu0
  %v2876 = vadd.f32 0.0, %v2875
  %v2877 = vpop.f32.mrf.mxu0
  %2878 = vmatprep.mubr.f32.mxu0 0.0
  %2879 = vmatmul.mubr.f32.gmra.mxu0 %v2010
  %v2880 = vpop.f32.mrf.mxu0
  %v2881 = vadd.f32 0.0, %v2880
  %v2882 = vpop.f32.mrf.mxu0
  %2883 = vmatprep.mubr.f32.mxu0 0.0
  %2884 = vmatmul.mubr.f32.gmra.mxu0 %v2012
  %v2885 = vpop.f32.mrf.mxu0
  %v2886 = vadd.f32 0.0, %v2885
  %v2887 = vpop.f32.mrf.mxu0
  %2888 = vmatprep.mubr.f32.mxu0 0.0
  %2889 = vmatmul.mubr.f32.gmra.mxu0 %v2782
  %v2890 = vpop.f32.mrf.mxu0
  %v2891 = vadd.f32 0.0, %v2890
  %v2892 = vpop.f32.mrf.mxu0
  %2893 = vmatprep.mubr.f32.mxu0 0.0
  %2894 = vmatmul.mubr.f32.gmra.mxu0 %v2016
  %v2895 = vpop.f32.mrf.mxu0
  %v2896 = vadd.f32 0.0, %v2895
  %v2897 = vpop.f32.mrf.mxu0
  %2898 = vmatprep.mubr.f32.mxu0 0.0
  %2899 = vmatmul.mubr.f32.gmra.mxu0 %v2018
  %v2900 = vpop.f32.mrf.mxu0
  %v2901 = vadd.f32 0.0, %v2900
  %v2902 = vpop.f32.mrf.mxu0
  %2903 = vmatprep.mubr.f32.mxu0 0.0
  %2904 = vmatmul.mubr.f32.gmra.mxu0 %v2020
  %v2905 = vpop.f32.mrf.mxu0
  %v2906 = vadd.f32 0.0, %v2905
  %v2907 = vpop.f32.mrf.mxu0
  %2908 = vmatprep.mubr.f32.mxu0 0.0
  %2909 = vmatmul.mubr.f32.gmra.mxu0 %v2022
  %v2910 = vpop.f32.mrf.mxu0
  %v2911 = vadd.f32 0.0, %v2910
  %v2912 = vpop.f32.mrf.mxu0
  %2913 = vmatprep.mubr.f32.mxu0 0.0
  %2914 = vmatmul.mubr.f32.gmra.mxu0 %v2024
  %v2915 = vpop.f32.mrf.mxu0
  %v2916 = vadd.f32 0.0, %v2915
  %v2917 = vpop.f32.mrf.mxu0
  %2918 = vmatprep.mubr.f32.mxu0 0.0
  %2919 = vmatmul.mubr.f32.gmra.mxu0 %v2026
  %v2920 = vpop.f32.mrf.mxu0
  %v2921 = vadd.f32 0.0, %v2920
  %v2922 = vpop.f32.mrf.mxu0
  %2923 = vmatprep.mubr.f32.mxu0 0.0
  %2924 = vmatmul.mubr.f32.gmra.mxu0 %v2028
  %v2925 = vpop.f32.mrf.mxu0
  %v2926 = vadd.f32 0.0, %v2925
  %v2927 = vpop.f32.mrf.mxu0
  %2928 = vmatprep.mubr.f32.mxu0 0.0
  %2929 = vmatmul.mubr.f32.gmra.mxu0 %v2784
  %v2930 = vpop.f32.mrf.mxu0
  %v2931 = vadd.f32 0.0, %v2930
  %v2932 = vpop.f32.mrf.mxu0
  %2933 = vdwg.mxu0
  %v2934 = vadd.f32 %v2758, %v2856
  %v2935 = vadd.f32 %v2759, %v2861
  %v2936 = vadd.f32 %v2760, %v2866
  %v2937 = vadd.f32 %v2761, %v2871
  %v2938 = vadd.f32 %v2762, %v2876
  %v2939 = vadd.f32 %v2763, %v2881
  %v2940 = vadd.f32 %v2764, %v2886
  %v2941 = vadd.f32 %v2765, %v2891
  %v2942 = vadd.f32 %v2766, %v2896
  %v2943 = vadd.f32 %v2767, %v2901
  %v2944 = vadd.f32 %v2768, %v2906
  %v2945 = vadd.f32 %v2769, %v2911
  %v2946 = vadd.f32 %v2770, %v2916
  %v2947 = vadd.f32 %v2771, %v2921
  %v2948 = vadd.f32 %v2772, %v2926
  %v2949 = vadd.f32 %v2773, %v2931
  %v2950 = vrot.slane %v1884, 2
  %v2951 = vrot.slane %v1885, 2
  %v2952 = vsel %vm2359, %v2950, %v2951
  %v2953 = vrot.slane %v1904, 2
  %v2954 = vrot.slane %v1905, 2
  %v2955 = vsel %vm2359, %v2953, %v2954
  %v2956 = vsel %vm1434, %v2952, 0
  %v2958 = vsel %vm1434, %v2955, 0
  %v2961 = vsel %vm2030, %v1913, 0
  %2963 = vmatprep.subr.mxu0 0.0
  %2964 = vmatpush1.msra.mxu0 0.0
  %2965 = vmatprep.subr.mxu0 0.0
  %2966 = vmatpush1.msra.mxu0 0.0
  %2967 = vmatprep.subr.mxu0 0.0
  %2968 = vmatpush1.msra.mxu0 0.0
  %2969 = vmatprep.subr.mxu0 0.0
  %2970 = vmatpush1.msra.mxu0 0.0
  %2971 = vmatprep.subr.mxu0 0.0
  %2972 = vmatpush1.msra.mxu0 0.0
  %2973 = vmatprep.subr.mxu0 0.0
  %2974 = vmatpush1.msra.mxu0 0.0
  %2975 = vmatprep.subr.mxu0 0.0
  %2976 = vmatpush1.msra.mxu0 0.0
  %2977 = vmatprep.subr.mxu0 0.0
  %2978 = vmatpush1.msra.mxu0 0.0
  %2979 = vmatprep.subr.mxu0 0.0
  %2980 = vmatpush1.msra.mxu0 0.0
  %2981 = vmatprep.subr.mxu0 0.0
  %2982 = vmatpush1.msra.mxu0 0.0
  %2983 = vmatprep.subr.mxu0 0.0
  %2984 = vmatpush1.msra.mxu0 0.0
  %2985 = vmatprep.subr.mxu0 0.0
  %2986 = vmatpush1.msra.mxu0 0.0
  %2987 = vmatprep.subr.mxu0 0.0
  %2988 = vmatpush1.msra.mxu0 0.0
  %2989 = vmatprep.subr.mxu0 0.0
  %2990 = vmatpush1.msra.mxu0 0.0
  %2991 = vmatprep.subr.mxu0 0.0
  %2992 = vmatpush1.msra.mxu0 0.0
  %2993 = vmatprep.subr.mxu0 0.0
  %2994 = vmatpush1.msra.mxu0 %v2961
  %2995 = vmatprep.subr.mxu0 0.0
  %2996 = vmatpush2.msra.mxu0 0.0
  %2997 = vmatprep.subr.mxu0 0.0
  %2998 = vmatpush2.msra.mxu0 0.0
  %2999 = vmatprep.subr.mxu0 0.0
  %3000 = vmatpush2.msra.mxu0 0.0
  %3001 = vmatprep.subr.mxu0 0.0
  %3002 = vmatpush2.msra.mxu0 0.0
  %3003 = vmatprep.subr.mxu0 0.0
  %3004 = vmatpush2.msra.mxu0 0.0
  %3005 = vmatprep.subr.mxu0 0.0
  %3006 = vmatpush2.msra.mxu0 0.0
  %3007 = vmatprep.subr.mxu0 0.0
  %3008 = vmatpush2.msra.mxu0 0.0
  %3009 = vmatprep.subr.mxu0 0.0
  %3010 = vmatpush2.msra.mxu0 0.0
  %3011 = vmatprep.subr.mxu0 0.0
  %3012 = vmatpush2.msra.mxu0 0.0
  %3013 = vmatprep.subr.mxu0 0.0
  %3014 = vmatpush2.msra.mxu0 0.0
  %3015 = vmatprep.subr.mxu0 0.0
  %3016 = vmatpush2.msra.mxu0 0.0
  %3017 = vmatprep.subr.mxu0 0.0
  %3018 = vmatpush2.msra.mxu0 0.0
  %3019 = vmatprep.subr.mxu0 0.0
  %3020 = vmatpush2.msra.mxu0 0.0
  %3021 = vmatprep.subr.mxu0 0.0
  %3022 = vmatpush2.msra.mxu0 0.0
  %3023 = vmatprep.subr.mxu0 0.0
  %3024 = vmatpush2.msra.mxu0 0.0
  %3025 = vmatprep.subr.mxu0 0.0
  %3026 = vmatpush2.msra.mxu0 0.0
  %3027 = vmatprep.mubr.f32.mxu0 0.0
  %3028 = vmatmul.mubr.f32.gmra.mxu0 %v2410
  %v3029 = vpop.f32.mrf.mxu0
  %v3030 = vadd.f32 0.0, %v3029
  %v3031 = vpop.f32.mrf.mxu0
  %3032 = vmatprep.mubr.f32.mxu0 0.0
  %3033 = vmatmul.mubr.f32.gmra.mxu0 %v2412
  %v3034 = vpop.f32.mrf.mxu0
  %v3035 = vadd.f32 0.0, %v3034
  %v3036 = vpop.f32.mrf.mxu0
  %3037 = vmatprep.mubr.f32.mxu0 0.0
  %3038 = vmatmul.mubr.f32.gmra.mxu0 %v2414
  %v3039 = vpop.f32.mrf.mxu0
  %v3040 = vadd.f32 0.0, %v3039
  %v3041 = vpop.f32.mrf.mxu0
  %3042 = vmatprep.mubr.f32.mxu0 0.0
  %3043 = vmatmul.mubr.f32.gmra.mxu0 %v2416
  %v3044 = vpop.f32.mrf.mxu0
  %v3045 = vadd.f32 0.0, %v3044
  %v3046 = vpop.f32.mrf.mxu0
  %3047 = vmatprep.mubr.f32.mxu0 0.0
  %3048 = vmatmul.mubr.f32.gmra.mxu0 %v2418
  %v3049 = vpop.f32.mrf.mxu0
  %v3050 = vadd.f32 0.0, %v3049
  %v3051 = vpop.f32.mrf.mxu0
  %3052 = vmatprep.mubr.f32.mxu0 0.0
  %3053 = vmatmul.mubr.f32.gmra.mxu0 %v2420
  %v3054 = vpop.f32.mrf.mxu0
  %v3055 = vadd.f32 0.0, %v3054
  %v3056 = vpop.f32.mrf.mxu0
  %3057 = vmatprep.mubr.f32.mxu0 0.0
  %3058 = vmatmul.mubr.f32.gmra.mxu0 %v2422
  %v3059 = vpop.f32.mrf.mxu0
  %v3060 = vadd.f32 0.0, %v3059
  %v3061 = vpop.f32.mrf.mxu0
  %3062 = vmatprep.mubr.f32.mxu0 0.0
  %3063 = vmatmul.mubr.f32.gmra.mxu0 %v2956
  %v3064 = vpop.f32.mrf.mxu0
  %v3065 = vadd.f32 0.0, %v3064
  %v3066 = vpop.f32.mrf.mxu0
  %3067 = vmatprep.mubr.f32.mxu0 0.0
  %3068 = vmatmul.mubr.f32.gmra.mxu0 %v2426
  %v3069 = vpop.f32.mrf.mxu0
  %v3070 = vadd.f32 0.0, %v3069
  %v3071 = vpop.f32.mrf.mxu0
  %3072 = vmatprep.mubr.f32.mxu0 0.0
  %3073 = vmatmul.mubr.f32.gmra.mxu0 %v2428
  %v3074 = vpop.f32.mrf.mxu0
  %v3075 = vadd.f32 0.0, %v3074
  %v3076 = vpop.f32.mrf.mxu0
  %3077 = vmatprep.mubr.f32.mxu0 0.0
  %3078 = vmatmul.mubr.f32.gmra.mxu0 %v2430
  %v3079 = vpop.f32.mrf.mxu0
  %v3080 = vadd.f32 0.0, %v3079
  %v3081 = vpop.f32.mrf.mxu0
  %3082 = vmatprep.mubr.f32.mxu0 0.0
  %3083 = vmatmul.mubr.f32.gmra.mxu0 %v2432
  %v3084 = vpop.f32.mrf.mxu0
  %v3085 = vadd.f32 0.0, %v3084
  %v3086 = vpop.f32.mrf.mxu0
  %3087 = vmatprep.mubr.f32.mxu0 0.0
  %3088 = vmatmul.mubr.f32.gmra.mxu0 %v2434
  %v3089 = vpop.f32.mrf.mxu0
  %v3090 = vadd.f32 0.0, %v3089
  %v3091 = vpop.f32.mrf.mxu0
  %3092 = vmatprep.mubr.f32.mxu0 0.0
  %3093 = vmatmul.mubr.f32.gmra.mxu0 %v2436
  %v3094 = vpop.f32.mrf.mxu0
  %v3095 = vadd.f32 0.0, %v3094
  %v3096 = vpop.f32.mrf.mxu0
  %3097 = vmatprep.mubr.f32.mxu0 0.0
  %3098 = vmatmul.mubr.f32.gmra.mxu0 %v2438
  %v3099 = vpop.f32.mrf.mxu0
  %v3100 = vadd.f32 0.0, %v3099
  %v3101 = vpop.f32.mrf.mxu0
  %3102 = vmatprep.mubr.f32.mxu0 0.0
  %3103 = vmatmul.mubr.f32.gmra.mxu0 %v2958
  %v3104 = vpop.f32.mrf.mxu0
  %v3105 = vadd.f32 0.0, %v3104
  %v3106 = vpop.f32.mrf.mxu0
  %3107 = vdwg.mxu0
  %v3108 = vadd.f32 %v2934, %v3030
  %v3109 = vadd.f32 %v2935, %v3035
  %v3110 = vadd.f32 %v2936, %v3040
  %v3111 = vadd.f32 %v2937, %v3045
  %v3112 = vadd.f32 %v2938, %v3050
  %v3113 = vadd.f32 %v2939, %v3055
  %v3114 = vadd.f32 %v2940, %v3060
  %v3115 = vadd.f32 %v2941, %v3065
  %v3116 = vadd.f32 %v2942, %v3070
  %v3117 = vadd.f32 %v2943, %v3075
  %v3118 = vadd.f32 %v2944, %v3080
  %v3119 = vadd.f32 %v2945, %v3085
  %v3120 = vadd.f32 %v2946, %v3090
  %v3121 = vadd.f32 %v2947, %v3095
  %v3122 = vadd.f32 %v2948, %v3100
  %v3123 = vadd.f32 %v2949, %v3105
  %v3125 = vsel %vm1434, %v1886, 0
  %v3128 = vsel %vm1434, %v1906, 0
  %v3131 = vsel %vm2030, %v1914, 0
  %3133 = vmatprep.subr.mxu0 0.0
  %3134 = vmatpush1.msra.mxu0 0.0
  %3135 = vmatprep.subr.mxu0 0.0
  %3136 = vmatpush1.msra.mxu0 0.0
  %3137 = vmatprep.subr.mxu0 0.0
  %3138 = vmatpush1.msra.mxu0 0.0
  %3139 = vmatprep.subr.mxu0 0.0
  %3140 = vmatpush1.msra.mxu0 0.0
  %3141 = vmatprep.subr.mxu0 0.0
  %3142 = vmatpush1.msra.mxu0 0.0
  %3143 = vmatprep.subr.mxu0 0.0
  %3144 = vmatpush1.msra.mxu0 0.0
  %3145 = vmatprep.subr.mxu0 0.0
  %3146 = vmatpush1.msra.mxu0 0.0
  %3147 = vmatprep.subr.mxu0 0.0
  %3148 = vmatpush1.msra.mxu0 0.0
  %3149 = vmatprep.subr.mxu0 0.0
  %3150 = vmatpush1.msra.mxu0 0.0
  %3151 = vmatprep.subr.mxu0 0.0
  %3152 = vmatpush1.msra.mxu0 0.0
  %3153 = vmatprep.subr.mxu0 0.0
  %3154 = vmatpush1.msra.mxu0 0.0
  %3155 = vmatprep.subr.mxu0 0.0
  %3156 = vmatpush1.msra.mxu0 0.0
  %3157 = vmatprep.subr.mxu0 0.0
  %3158 = vmatpush1.msra.mxu0 0.0
  %3159 = vmatprep.subr.mxu0 0.0
  %3160 = vmatpush1.msra.mxu0 0.0
  %3161 = vmatprep.subr.mxu0 0.0
  %3162 = vmatpush1.msra.mxu0 0.0
  %3163 = vmatprep.subr.mxu0 0.0
  %3164 = vmatpush1.msra.mxu0 %v3131
  %3165 = vmatprep.subr.mxu0 0.0
  %3166 = vmatpush2.msra.mxu0 0.0
  %3167 = vmatprep.subr.mxu0 0.0
  %3168 = vmatpush2.msra.mxu0 0.0
  %3169 = vmatprep.subr.mxu0 0.0
  %3170 = vmatpush2.msra.mxu0 0.0
  %3171 = vmatprep.subr.mxu0 0.0
  %3172 = vmatpush2.msra.mxu0 0.0
  %3173 = vmatprep.subr.mxu0 0.0
  %3174 = vmatpush2.msra.mxu0 0.0
  %3175 = vmatprep.subr.mxu0 0.0
  %3176 = vmatpush2.msra.mxu0 0.0
  %3177 = vmatprep.subr.mxu0 0.0
  %3178 = vmatpush2.msra.mxu0 0.0
  %3179 = vmatprep.subr.mxu0 0.0
  %3180 = vmatpush2.msra.mxu0 0.0
  %3181 = vmatprep.subr.mxu0 0.0
  %3182 = vmatpush2.msra.mxu0 0.0
  %3183 = vmatprep.subr.mxu0 0.0
  %3184 = vmatpush2.msra.mxu0 0.0
  %3185 = vmatprep.subr.mxu0 0.0
  %3186 = vmatpush2.msra.mxu0 0.0
  %3187 = vmatprep.subr.mxu0 0.0
  %3188 = vmatpush2.msra.mxu0 0.0
  %3189 = vmatprep.subr.mxu0 0.0
  %3190 = vmatpush2.msra.mxu0 0.0
  %3191 = vmatprep.subr.mxu0 0.0
  %3192 = vmatpush2.msra.mxu0 0.0
  %3193 = vmatprep.subr.mxu0 0.0
  %3194 = vmatpush2.msra.mxu0 0.0
  %3195 = vmatprep.subr.mxu0 0.0
  %3196 = vmatpush2.msra.mxu0 0.0
  %3197 = vmatprep.mubr.f32.mxu0 0.0
  %3198 = vmatmul.mubr.f32.gmra.mxu0 %v2183
  %v3199 = vpop.f32.mrf.mxu0
  %v3200 = vadd.f32 0.0, %v3199
  %v3201 = vpop.f32.mrf.mxu0
  %3202 = vmatprep.mubr.f32.mxu0 0.0
  %3203 = vmatmul.mubr.f32.gmra.mxu0 %v2185
  %v3204 = vpop.f32.mrf.mxu0
  %v3205 = vadd.f32 0.0, %v3204
  %v3206 = vpop.f32.mrf.mxu0
  %3207 = vmatprep.mubr.f32.mxu0 0.0
  %3208 = vmatmul.mubr.f32.gmra.mxu0 %v2187
  %v3209 = vpop.f32.mrf.mxu0
  %v3210 = vadd.f32 0.0, %v3209
  %v3211 = vpop.f32.mrf.mxu0
  %3212 = vmatprep.mubr.f32.mxu0 0.0
  %3213 = vmatmul.mubr.f32.gmra.mxu0 %v2189
  %v3214 = vpop.f32.mrf.mxu0
  %v3215 = vadd.f32 0.0, %v3214
  %v3216 = vpop.f32.mrf.mxu0
  %3217 = vmatprep.mubr.f32.mxu0 0.0
  %3218 = vmatmul.mubr.f32.gmra.mxu0 %v2191
  %v3219 = vpop.f32.mrf.mxu0
  %v3220 = vadd.f32 0.0, %v3219
  %v3221 = vpop.f32.mrf.mxu0
  %3222 = vmatprep.mubr.f32.mxu0 0.0
  %3223 = vmatmul.mubr.f32.gmra.mxu0 %v2193
  %v3224 = vpop.f32.mrf.mxu0
  %v3225 = vadd.f32 0.0, %v3224
  %v3226 = vpop.f32.mrf.mxu0
  %3227 = vmatprep.mubr.f32.mxu0 0.0
  %3228 = vmatmul.mubr.f32.gmra.mxu0 %v2605
  %v3229 = vpop.f32.mrf.mxu0
  %v3230 = vadd.f32 0.0, %v3229
  %v3231 = vpop.f32.mrf.mxu0
  %3232 = vmatprep.mubr.f32.mxu0 0.0
  %3233 = vmatmul.mubr.f32.gmra.mxu0 %v3125
  %v3234 = vpop.f32.mrf.mxu0
  %v3235 = vadd.f32 0.0, %v3234
  %v3236 = vpop.f32.mrf.mxu0
  %3237 = vmatprep.mubr.f32.mxu0 0.0
  %3238 = vmatmul.mubr.f32.gmra.mxu0 %v2199
  %v3239 = vpop.f32.mrf.mxu0
  %v3240 = vadd.f32 0.0, %v3239
  %v3241 = vpop.f32.mrf.mxu0
  %3242 = vmatprep.mubr.f32.mxu0 0.0
  %3243 = vmatmul.mubr.f32.gmra.mxu0 %v2201
  %v3244 = vpop.f32.mrf.mxu0
  %v3245 = vadd.f32 0.0, %v3244
  %v3246 = vpop.f32.mrf.mxu0
  %3247 = vmatprep.mubr.f32.mxu0 0.0
  %3248 = vmatmul.mubr.f32.gmra.mxu0 %v2203
  %v3249 = vpop.f32.mrf.mxu0
  %v3250 = vadd.f32 0.0, %v3249
  %v3251 = vpop.f32.mrf.mxu0
  %3252 = vmatprep.mubr.f32.mxu0 0.0
  %3253 = vmatmul.mubr.f32.gmra.mxu0 %v2205
  %v3254 = vpop.f32.mrf.mxu0
  %v3255 = vadd.f32 0.0, %v3254
  %v3256 = vpop.f32.mrf.mxu0
  %3257 = vmatprep.mubr.f32.mxu0 0.0
  %3258 = vmatmul.mubr.f32.gmra.mxu0 %v2207
  %v3259 = vpop.f32.mrf.mxu0
  %v3260 = vadd.f32 0.0, %v3259
  %v3261 = vpop.f32.mrf.mxu0
  %3262 = vmatprep.mubr.f32.mxu0 0.0
  %3263 = vmatmul.mubr.f32.gmra.mxu0 %v2209
  %v3264 = vpop.f32.mrf.mxu0
  %v3265 = vadd.f32 0.0, %v3264
  %v3266 = vpop.f32.mrf.mxu0
  %3267 = vmatprep.mubr.f32.mxu0 0.0
  %3268 = vmatmul.mubr.f32.gmra.mxu0 %v2608
  %v3269 = vpop.f32.mrf.mxu0
  %v3270 = vadd.f32 0.0, %v3269
  %v3271 = vpop.f32.mrf.mxu0
  %3272 = vmatprep.mubr.f32.mxu0 0.0
  %3273 = vmatmul.mubr.f32.gmra.mxu0 %v3128
  %v3274 = vpop.f32.mrf.mxu0
  %v3275 = vadd.f32 0.0, %v3274
  %v3276 = vpop.f32.mrf.mxu0
  %3277 = vdwg.mxu0
  %v3278 = vadd.f32 %v3108, %v3200
  %v3279 = vadd.f32 %v3109, %v3205
  %v3280 = vadd.f32 %v3110, %v3210
  %v3281 = vadd.f32 %v3111, %v3215
  %v3282 = vadd.f32 %v3112, %v3220
  %v3283 = vadd.f32 %v3113, %v3225
  %v3284 = vadd.f32 %v3114, %v3230
  %v3285 = vadd.f32 %v3115, %v3235
  %v3286 = vadd.f32 %v3116, %v3240
  %v3287 = vadd.f32 %v3117, %v3245
  %v3288 = vadd.f32 %v3118, %v3250
  %v3289 = vadd.f32 %v3119, %v3255
  %v3290 = vadd.f32 %v3120, %v3260
  %v3291 = vadd.f32 %v3121, %v3265
  %v3292 = vadd.f32 %v3122, %v3270
  %v3293 = vadd.f32 %v3123, %v3275
  %v3296 = vrot.slane %v1886, 1
  %v3297 = vrot.slane %v1887, 1
  %v3298 = vsel %vm1949, %v3296, %v3297
  %v3299 = vrot.slane %v1906, 1
  %v3300 = vrot.slane %v1907, 1
  %v3301 = vsel %vm1949, %v3299, %v3300
  %v3302 = vsel %vm1434, %v3298, 0
  %v3304 = vsel %vm1434, %v3301, 0
  %v3307 = vsel %vm2030, %v1915, 0
  %3309 = vmatprep.subr.mxu0 0.0
  %3310 = vmatpush1.msra.mxu0 0.0
  %3311 = vmatprep.subr.mxu0 0.0
  %3312 = vmatpush1.msra.mxu0 0.0
  %3313 = vmatprep.subr.mxu0 0.0
  %3314 = vmatpush1.msra.mxu0 0.0
  %3315 = vmatprep.subr.mxu0 0.0
  %3316 = vmatpush1.msra.mxu0 0.0
  %3317 = vmatprep.subr.mxu0 0.0
  %3318 = vmatpush1.msra.mxu0 0.0
  %3319 = vmatprep.subr.mxu0 0.0
  %3320 = vmatpush1.msra.mxu0 0.0
  %3321 = vmatprep.subr.mxu0 0.0
  %3322 = vmatpush1.msra.mxu0 0.0
  %3323 = vmatprep.subr.mxu0 0.0
  %3324 = vmatpush1.msra.mxu0 0.0
  %3325 = vmatprep.subr.mxu0 0.0
  %3326 = vmatpush1.msra.mxu0 0.0
  %3327 = vmatprep.subr.mxu0 0.0
  %3328 = vmatpush1.msra.mxu0 0.0
  %3329 = vmatprep.subr.mxu0 0.0
  %3330 = vmatpush1.msra.mxu0 0.0
  %3331 = vmatprep.subr.mxu0 0.0
  %3332 = vmatpush1.msra.mxu0 0.0
  %3333 = vmatprep.subr.mxu0 0.0
  %3334 = vmatpush1.msra.mxu0 0.0
  %3335 = vmatprep.subr.mxu0 0.0
  %3336 = vmatpush1.msra.mxu0 0.0
  %3337 = vmatprep.subr.mxu0 0.0
  %3338 = vmatpush1.msra.mxu0 0.0
  %3339 = vmatprep.subr.mxu0 0.0
  %3340 = vmatpush1.msra.mxu0 %v3307
  %3341 = vmatprep.subr.mxu0 0.0
  %3342 = vmatpush2.msra.mxu0 0.0
  %3343 = vmatprep.subr.mxu0 0.0
  %3344 = vmatpush2.msra.mxu0 0.0
  %3345 = vmatprep.subr.mxu0 0.0
  %3346 = vmatpush2.msra.mxu0 0.0
  %3347 = vmatprep.subr.mxu0 0.0
  %3348 = vmatpush2.msra.mxu0 0.0
  %3349 = vmatprep.subr.mxu0 0.0
  %3350 = vmatpush2.msra.mxu0 0.0
  %3351 = vmatprep.subr.mxu0 0.0
  %3352 = vmatpush2.msra.mxu0 0.0
  %3353 = vmatprep.subr.mxu0 0.0
  %3354 = vmatpush2.msra.mxu0 0.0
  %3355 = vmatprep.subr.mxu0 0.0
  %3356 = vmatpush2.msra.mxu0 0.0
  %3357 = vmatprep.subr.mxu0 0.0
  %3358 = vmatpush2.msra.mxu0 0.0
  %3359 = vmatprep.subr.mxu0 0.0
  %3360 = vmatpush2.msra.mxu0 0.0
  %3361 = vmatprep.subr.mxu0 0.0
  %3362 = vmatpush2.msra.mxu0 0.0
  %3363 = vmatprep.subr.mxu0 0.0
  %3364 = vmatpush2.msra.mxu0 0.0
  %3365 = vmatprep.subr.mxu0 0.0
  %3366 = vmatpush2.msra.mxu0 0.0
  %3367 = vmatprep.subr.mxu0 0.0
  %3368 = vmatpush2.msra.mxu0 0.0
  %3369 = vmatprep.subr.mxu0 0.0
  %3370 = vmatpush2.msra.mxu0 0.0
  %3371 = vmatprep.subr.mxu0 0.0
  %3372 = vmatpush2.msra.mxu0 0.0
  %3373 = vmatprep.mubr.f32.mxu0 0.0
  %3374 = vmatmul.mubr.f32.gmra.mxu0 %v2002
  %v3375 = vpop.f32.mrf.mxu0
  %v3376 = vadd.f32 0.0, %v3375
  %v3377 = vpop.f32.mrf.mxu0
  %3378 = vmatprep.mubr.f32.mxu0 0.0
  %3379 = vmatmul.mubr.f32.gmra.mxu0 %v2004
  %v3380 = vpop.f32.mrf.mxu0
  %v3381 = vadd.f32 0.0, %v3380
  %v3382 = vpop.f32.mrf.mxu0
  %3383 = vmatprep.mubr.f32.mxu0 0.0
  %3384 = vmatmul.mubr.f32.gmra.mxu0 %v2006
  %v3385 = vpop.f32.mrf.mxu0
  %v3386 = vadd.f32 0.0, %v3385
  %v3387 = vpop.f32.mrf.mxu0
  %3388 = vmatprep.mubr.f32.mxu0 0.0
  %3389 = vmatmul.mubr.f32.gmra.mxu0 %v2008
  %v3390 = vpop.f32.mrf.mxu0
  %v3391 = vadd.f32 0.0, %v3390
  %v3392 = vpop.f32.mrf.mxu0
  %3393 = vmatprep.mubr.f32.mxu0 0.0
  %3394 = vmatmul.mubr.f32.gmra.mxu0 %v2010
  %v3395 = vpop.f32.mrf.mxu0
  %v3396 = vadd.f32 0.0, %v3395
  %v3397 = vpop.f32.mrf.mxu0
  %3398 = vmatprep.mubr.f32.mxu0 0.0
  %3399 = vmatmul.mubr.f32.gmra.mxu0 %v2012
  %v3400 = vpop.f32.mrf.mxu0
  %v3401 = vadd.f32 0.0, %v3400
  %v3402 = vpop.f32.mrf.mxu0
  %3403 = vmatprep.mubr.f32.mxu0 0.0
  %3404 = vmatmul.mubr.f32.gmra.mxu0 %v2782
  %v3405 = vpop.f32.mrf.mxu0
  %v3406 = vadd.f32 0.0, %v3405
  %v3407 = vpop.f32.mrf.mxu0
  %3408 = vmatprep.mubr.f32.mxu0 0.0
  %3409 = vmatmul.mubr.f32.gmra.mxu0 %v3302
  %v3410 = vpop.f32.mrf.mxu0
  %v3411 = vadd.f32 0.0, %v3410
  %v3412 = vpop.f32.mrf.mxu0
  %3413 = vmatprep.mubr.f32.mxu0 0.0
  %3414 = vmatmul.mubr.f32.gmra.mxu0 %v2018
  %v3415 = vpop.f32.mrf.mxu0
  %v3416 = vadd.f32 0.0, %v3415
  %v3417 = vpop.f32.mrf.mxu0
  %3418 = vmatprep.mubr.f32.mxu0 0.0
  %3419 = vmatmul.mubr.f32.gmra.mxu0 %v2020
  %v3420 = vpop.f32.mrf.mxu0
  %v3421 = vadd.f32 0.0, %v3420
  %v3422 = vpop.f32.mrf.mxu0
  %3423 = vmatprep.mubr.f32.mxu0 0.0
  %3424 = vmatmul.mubr.f32.gmra.mxu0 %v2022
  %v3425 = vpop.f32.mrf.mxu0
  %v3426 = vadd.f32 0.0, %v3425
  %v3427 = vpop.f32.mrf.mxu0
  %3428 = vmatprep.mubr.f32.mxu0 0.0
  %3429 = vmatmul.mubr.f32.gmra.mxu0 %v2024
  %v3430 = vpop.f32.mrf.mxu0
  %v3431 = vadd.f32 0.0, %v3430
  %v3432 = vpop.f32.mrf.mxu0
  %3433 = vmatprep.mubr.f32.mxu0 0.0
  %3434 = vmatmul.mubr.f32.gmra.mxu0 %v2026
  %v3435 = vpop.f32.mrf.mxu0
  %v3436 = vadd.f32 0.0, %v3435
  %v3437 = vpop.f32.mrf.mxu0
  %3438 = vmatprep.mubr.f32.mxu0 0.0
  %3439 = vmatmul.mubr.f32.gmra.mxu0 %v2028
  %v3440 = vpop.f32.mrf.mxu0
  %v3441 = vadd.f32 0.0, %v3440
  %v3442 = vpop.f32.mrf.mxu0
  %3443 = vmatprep.mubr.f32.mxu0 0.0
  %3444 = vmatmul.mubr.f32.gmra.mxu0 %v2784
  %v3445 = vpop.f32.mrf.mxu0
  %v3446 = vadd.f32 0.0, %v3445
  %v3447 = vpop.f32.mrf.mxu0
  %3448 = vmatprep.mubr.f32.mxu0 0.0
  %3449 = vmatmul.mubr.f32.gmra.mxu0 %v3304
  %v3450 = vpop.f32.mrf.mxu0
  %v3451 = vadd.f32 0.0, %v3450
  %v3452 = vpop.f32.mrf.mxu0
  %3453 = vdwg.mxu0
  %v3454 = vadd.f32 %v3278, %v3376
  %v3455 = vadd.f32 %v3279, %v3381
  %v3456 = vadd.f32 %v3280, %v3386
  %v3457 = vadd.f32 %v3281, %v3391
  %v3458 = vadd.f32 %v3282, %v3396
  %v3459 = vadd.f32 %v3283, %v3401
  %v3460 = vadd.f32 %v3284, %v3406
  %v3461 = vadd.f32 %v3285, %v3411
  %v3462 = vadd.f32 %v3286, %v3416
  %v3463 = vadd.f32 %v3287, %v3421
  %v3464 = vadd.f32 %v3288, %v3426
  %v3465 = vadd.f32 %v3289, %v3431
  %v3466 = vadd.f32 %v3290, %v3436
  %v3467 = vadd.f32 %v3291, %v3441
  %v3468 = vadd.f32 %v3292, %v3446
  %v3469 = vadd.f32 %v3293, %v3451
  %v3470 = vrot.slane %v1886, 2
  %v3471 = vrot.slane %v1887, 2
  %v3472 = vsel %vm2359, %v3470, %v3471
  %v3473 = vrot.slane %v1906, 2
  %v3474 = vrot.slane %v1907, 2
  %v3475 = vsel %vm2359, %v3473, %v3474
  %v3476 = vsel %vm1434, %v3472, 0
  %v3478 = vsel %vm1434, %v3475, 0
  %v3481 = vsel %vm2030, %v1916, 0
  %3483 = vmatprep.subr.mxu0 0.0
  %3484 = vmatpush1.msra.mxu0 0.0
  %3485 = vmatprep.subr.mxu0 0.0
  %3486 = vmatpush1.msra.mxu0 0.0
  %3487 = vmatprep.subr.mxu0 0.0
  %3488 = vmatpush1.msra.mxu0 0.0
  %3489 = vmatprep.subr.mxu0 0.0
  %3490 = vmatpush1.msra.mxu0 0.0
  %3491 = vmatprep.subr.mxu0 0.0
  %3492 = vmatpush1.msra.mxu0 0.0
  %3493 = vmatprep.subr.mxu0 0.0
  %3494 = vmatpush1.msra.mxu0 0.0
  %3495 = vmatprep.subr.mxu0 0.0
  %3496 = vmatpush1.msra.mxu0 0.0
  %3497 = vmatprep.subr.mxu0 0.0
  %3498 = vmatpush1.msra.mxu0 0.0
  %3499 = vmatprep.subr.mxu0 0.0
  %3500 = vmatpush1.msra.mxu0 0.0
  %3501 = vmatprep.subr.mxu0 0.0
  %3502 = vmatpush1.msra.mxu0 0.0
  %3503 = vmatprep.subr.mxu0 0.0
  %3504 = vmatpush1.msra.mxu0 0.0
  %3505 = vmatprep.subr.mxu0 0.0
  %3506 = vmatpush1.msra.mxu0 0.0
  %3507 = vmatprep.subr.mxu0 0.0
  %3508 = vmatpush1.msra.mxu0 0.0
  %3509 = vmatprep.subr.mxu0 0.0
  %3510 = vmatpush1.msra.mxu0 0.0
  %3511 = vmatprep.subr.mxu0 0.0
  %3512 = vmatpush1.msra.mxu0 0.0
  %3513 = vmatprep.subr.mxu0 0.0
  %3514 = vmatpush1.msra.mxu0 %v3481
  %3515 = vmatprep.subr.mxu0 0.0
  %3516 = vmatpush2.msra.mxu0 0.0
  %3517 = vmatprep.subr.mxu0 0.0
  %3518 = vmatpush2.msra.mxu0 0.0
  %3519 = vmatprep.subr.mxu0 0.0
  %3520 = vmatpush2.msra.mxu0 0.0
  %3521 = vmatprep.subr.mxu0 0.0
  %3522 = vmatpush2.msra.mxu0 0.0
  %3523 = vmatprep.subr.mxu0 0.0
  %3524 = vmatpush2.msra.mxu0 0.0
  %3525 = vmatprep.subr.mxu0 0.0
  %3526 = vmatpush2.msra.mxu0 0.0
  %3527 = vmatprep.subr.mxu0 0.0
  %3528 = vmatpush2.msra.mxu0 0.0
  %3529 = vmatprep.subr.mxu0 0.0
  %3530 = vmatpush2.msra.mxu0 0.0
  %3531 = vmatprep.subr.mxu0 0.0
  %3532 = vmatpush2.msra.mxu0 0.0
  %3533 = vmatprep.subr.mxu0 0.0
  %3534 = vmatpush2.msra.mxu0 0.0
  %3535 = vmatprep.subr.mxu0 0.0
  %3536 = vmatpush2.msra.mxu0 0.0
  %3537 = vmatprep.subr.mxu0 0.0
  %3538 = vmatpush2.msra.mxu0 0.0
  %3539 = vmatprep.subr.mxu0 0.0
  %3540 = vmatpush2.msra.mxu0 0.0
  %3541 = vmatprep.subr.mxu0 0.0
  %3542 = vmatpush2.msra.mxu0 0.0
  %3543 = vmatprep.subr.mxu0 0.0
  %3544 = vmatpush2.msra.mxu0 0.0
  %3545 = vmatprep.subr.mxu0 0.0
  %3546 = vmatpush2.msra.mxu0 0.0
  %3547 = vmatprep.mubr.f32.mxu0 0.0
  %3548 = vmatmul.mubr.f32.gmra.mxu0 %v2412
  %v3549 = vpop.f32.mrf.mxu0
  %v3550 = vadd.f32 0.0, %v3549
  %v3551 = vpop.f32.mrf.mxu0
  %3552 = vmatprep.mubr.f32.mxu0 0.0
  %3553 = vmatmul.mubr.f32.gmra.mxu0 %v2414
  %v3554 = vpop.f32.mrf.mxu0
  %v3555 = vadd.f32 0.0, %v3554
  %v3556 = vpop.f32.mrf.mxu0
  %3557 = vmatprep.mubr.f32.mxu0 0.0
  %3558 = vmatmul.mubr.f32.gmra.mxu0 %v2416
  %v3559 = vpop.f32.mrf.mxu0
  %v3560 = vadd.f32 0.0, %v3559
  %v3561 = vpop.f32.mrf.mxu0
  %3562 = vmatprep.mubr.f32.mxu0 0.0
  %3563 = vmatmul.mubr.f32.gmra.mxu0 %v2418
  %v3564 = vpop.f32.mrf.mxu0
  %v3565 = vadd.f32 0.0, %v3564
  %v3566 = vpop.f32.mrf.mxu0
  %3567 = vmatprep.mubr.f32.mxu0 0.0
  %3568 = vmatmul.mubr.f32.gmra.mxu0 %v2420
  %v3569 = vpop.f32.mrf.mxu0
  %v3570 = vadd.f32 0.0, %v3569
  %v3571 = vpop.f32.mrf.mxu0
  %3572 = vmatprep.mubr.f32.mxu0 0.0
  %3573 = vmatmul.mubr.f32.gmra.mxu0 %v2422
  %v3574 = vpop.f32.mrf.mxu0
  %v3575 = vadd.f32 0.0, %v3574
  %v3576 = vpop.f32.mrf.mxu0
  %3577 = vmatprep.mubr.f32.mxu0 0.0
  %3578 = vmatmul.mubr.f32.gmra.mxu0 %v2956
  %v3579 = vpop.f32.mrf.mxu0
  %v3580 = vadd.f32 0.0, %v3579
  %v3581 = vpop.f32.mrf.mxu0
  %3582 = vmatprep.mubr.f32.mxu0 0.0
  %3583 = vmatmul.mubr.f32.gmra.mxu0 %v3476
  %v3584 = vpop.f32.mrf.mxu0
  %v3585 = vadd.f32 0.0, %v3584
  %v3586 = vpop.f32.mrf.mxu0
  %3587 = vmatprep.mubr.f32.mxu0 0.0
  %3588 = vmatmul.mubr.f32.gmra.mxu0 %v2428
  %v3589 = vpop.f32.mrf.mxu0
  %v3590 = vadd.f32 0.0, %v3589
  %v3591 = vpop.f32.mrf.mxu0
  %3592 = vmatprep.mubr.f32.mxu0 0.0
  %3593 = vmatmul.mubr.f32.gmra.mxu0 %v2430
  %v3594 = vpop.f32.mrf.mxu0
  %v3595 = vadd.f32 0.0, %v3594
  %v3596 = vpop.f32.mrf.mxu0
  %3597 = vmatprep.mubr.f32.mxu0 0.0
  %3598 = vmatmul.mubr.f32.gmra.mxu0 %v2432
  %v3599 = vpop.f32.mrf.mxu0
  %v3600 = vadd.f32 0.0, %v3599
  %v3601 = vpop.f32.mrf.mxu0
  %3602 = vmatprep.mubr.f32.mxu0 0.0
  %3603 = vmatmul.mubr.f32.gmra.mxu0 %v2434
  %v3604 = vpop.f32.mrf.mxu0
  %v3605 = vadd.f32 0.0, %v3604
  %v3606 = vpop.f32.mrf.mxu0
  %3607 = vmatprep.mubr.f32.mxu0 0.0
  %3608 = vmatmul.mubr.f32.gmra.mxu0 %v2436
  %v3609 = vpop.f32.mrf.mxu0
  %v3610 = vadd.f32 0.0, %v3609
  %v3611 = vpop.f32.mrf.mxu0
  %3612 = vmatprep.mubr.f32.mxu0 0.0
  %3613 = vmatmul.mubr.f32.gmra.mxu0 %v2438
  %v3614 = vpop.f32.mrf.mxu0
  %v3615 = vadd.f32 0.0, %v3614
  %v3616 = vpop.f32.mrf.mxu0
  %3617 = vmatprep.mubr.f32.mxu0 0.0
  %3618 = vmatmul.mubr.f32.gmra.mxu0 %v2958
  %v3619 = vpop.f32.mrf.mxu0
  %v3620 = vadd.f32 0.0, %v3619
  %v3621 = vpop.f32.mrf.mxu0
  %3622 = vmatprep.mubr.f32.mxu0 0.0
  %3623 = vmatmul.mubr.f32.gmra.mxu0 %v3478
  %v3624 = vpop.f32.mrf.mxu0
  %v3625 = vadd.f32 0.0, %v3624
  %v3626 = vpop.f32.mrf.mxu0
  %3627 = vdwg.mxu0
  %v3628 = vadd.f32 %v3454, %v3550
  %v3629 = vadd.f32 %v3455, %v3555
  %v3630 = vadd.f32 %v3456, %v3560
  %v3631 = vadd.f32 %v3457, %v3565
  %v3632 = vadd.f32 %v3458, %v3570
  %v3633 = vadd.f32 %v3459, %v3575
  %v3634 = vadd.f32 %v3460, %v3580
  %v3635 = vadd.f32 %v3461, %v3585
  %v3636 = vadd.f32 %v3462, %v3590
  %v3637 = vadd.f32 %v3463, %v3595
  %v3638 = vadd.f32 %v3464, %v3600
  %v3639 = vadd.f32 %v3465, %v3605
  %v3640 = vadd.f32 %v3466, %v3610
  %v3641 = vadd.f32 %v3467, %v3615
  %v3642 = vadd.f32 %v3468, %v3620
  %v3643 = vadd.f32 %v3469, %v3625
  %vm3644 = vcmask 64512
  %v3645 = vsel %vm3644, %v3628, 0.0
  %v3646 = vsel %vm3644, %v3629, 0.0
  %v3647 = vadd.f32 %v3645, %v3646
  %v3648 = vsel %vm3644, %v3630, 0.0
  %v3649 = vadd.f32 %v3647, %v3648
  %v3650 = vsel %vm3644, %v3631, 0.0
  %v3651 = vadd.f32 %v3649, %v3650
  %v3652 = vsel %vm3644, %v3632, 0.0
  %v3653 = vadd.f32 %v3651, %v3652
  %v3654 = vsel %vm3644, %v3633, 0.0
  %v3655 = vadd.f32 %v3653, %v3654
  %v3656 = vsel %vm3644, %v3634, 0.0
  %v3657 = vadd.f32 %v3655, %v3656
  %v3658 = vsel %vm3644, %v3635, 0.0
  %v3659 = vadd.f32 %v3657, %v3658
  %v3660 = vsel %vm3644, %v3636, 0.0
  %v3661 = vadd.f32 %v3659, %v3660
  %v3662 = vsel %vm3644, %v3637, 0.0
  %v3663 = vadd.f32 %v3661, %v3662
  %v3664 = vsel %vm3644, %v3638, 0.0
  %v3665 = vadd.f32 %v3663, %v3664
  %v3666 = vsel %vm3644, %v3639, 0.0
  %v3667 = vadd.f32 %v3665, %v3666
  %v3668 = vsel %vm3644, %v3640, 0.0
  %v3669 = vadd.f32 %v3667, %v3668
  %v3670 = vsel %vm3644, %v3641, 0.0
  %v3671 = vadd.f32 %v3669, %v3670
  %v3672 = vsel %vm3644, %v3642, 0.0
  %v3673 = vadd.f32 %v3671, %v3672
  %v3674 = vsel %vm3644, %v3643, 0.0
  %v3675 = vadd.f32 %v3673, %v3674
  %v3676 = vrot.slane %v3675, 4
  %v3677 = vadd.f32 %v3675, %v3676
  %v3678 = vrot.slane %v3677, 2
  %v3679 = vadd.f32 %v3677, %v3678
  %v3680 = vrot.slane %v3679, 1
  %v3681 = vadd.f32 %v3679, %v3680
  %v3682 = vmul.f32 %v3681, 0.0078125
  %v3683 = vmul.f32 %v3628, %v3628
  %v3684 = vmul.f32 %v3629, %v3629
  %v3685 = vmul.f32 %v3630, %v3630
  %v3686 = vmul.f32 %v3631, %v3631
  %v3687 = vmul.f32 %v3632, %v3632
  %v3688 = vmul.f32 %v3633, %v3633
  %v3689 = vmul.f32 %v3634, %v3634
  %v3690 = vmul.f32 %v3635, %v3635
  %v3691 = vmul.f32 %v3636, %v3636
  %v3692 = vmul.f32 %v3637, %v3637
  %v3693 = vmul.f32 %v3638, %v3638
  %v3694 = vmul.f32 %v3639, %v3639
  %v3695 = vmul.f32 %v3640, %v3640
  %v3696 = vmul.f32 %v3641, %v3641
  %v3697 = vmul.f32 %v3642, %v3642
  %v3698 = vmul.f32 %v3643, %v3643
  %v3699 = vsel %vm3644, %v3683, 0.0
  %v3700 = vsel %vm3644, %v3684, 0.0
  %v3701 = vadd.f32 %v3699, %v3700
  %v3702 = vsel %vm3644, %v3685, 0.0
  %v3703 = vadd.f32 %v3701, %v3702
  %v3704 = vsel %vm3644, %v3686, 0.0
  %v3705 = vadd.f32 %v3703, %v3704
  %v3706 = vsel %vm3644, %v3687, 0.0
  %v3707 = vadd.f32 %v3705, %v3706
  %v3708 = vsel %vm3644, %v3688, 0.0
  %v3709 = vadd.f32 %v3707, %v3708
  %v3710 = vsel %vm3644, %v3689, 0.0
  %v3711 = vadd.f32 %v3709, %v3710
  %v3712 = vsel %vm3644, %v3690, 0.0
  %v3713 = vadd.f32 %v3711, %v3712
  %v3714 = vsel %vm3644, %v3691, 0.0
  %v3715 = vadd.f32 %v3713, %v3714
  %v3716 = vsel %vm3644, %v3692, 0.0
  %v3717 = vadd.f32 %v3715, %v3716
  %v3718 = vsel %vm3644, %v3693, 0.0
  %v3719 = vadd.f32 %v3717, %v3718
  %v3720 = vsel %vm3644, %v3694, 0.0
  %v3721 = vadd.f32 %v3719, %v3720
  %v3722 = vsel %vm3644, %v3695, 0.0
  %v3723 = vadd.f32 %v3721, %v3722
  %v3724 = vsel %vm3644, %v3696, 0.0
  %v3725 = vadd.f32 %v3723, %v3724
  %v3726 = vsel %vm3644, %v3697, 0.0
  %v3727 = vadd.f32 %v3725, %v3726
  %v3728 = vsel %vm3644, %v3698, 0.0
  %v3729 = vadd.f32 %v3727, %v3728
  %v3730 = vrot.slane %v3729, 4
  %v3731 = vadd.f32 %v3729, %v3730
  %v3732 = vrot.slane %v3731, 2
  %v3733 = vadd.f32 %v3731, %v3732
  %v3734 = vrot.slane %v3733, 1
  %v3735 = vadd.f32 %v3733, %v3734
  %v3736 = vmul.f32 %v3735, 0.0078125
  %v3737 = vmul.f32 %v3682, %v3682
  %v3738 = vsub.f32 %v3736, %v3737
  %v3739 = vsub.f32 %v3628, %v3682
  %v3740 = vsub.f32 %v3629, %v3682
  %v3741 = vsub.f32 %v3630, %v3682
  %v3742 = vsub.f32 %v3631, %v3682
  %v3743 = vsub.f32 %v3632, %v3682
  %v3744 = vsub.f32 %v3633, %v3682
  %v3745 = vsub.f32 %v3634, %v3682
  %v3746 = vsub.f32 %v3635, %v3682
  %v3747 = vsub.f32 %v3636, %v3682
  %v3748 = vsub.f32 %v3637, %v3682
  %v3749 = vsub.f32 %v3638, %v3682
  %v3750 = vsub.f32 %v3639, %v3682
  %v3751 = vsub.f32 %v3640, %v3682
  %v3752 = vsub.f32 %v3641, %v3682
  %v3753 = vsub.f32 %v3642, %v3682
  %v3754 = vsub.f32 %v3643, %v3682
  %v3755 = vadd.f32 %v3738, 1e-05
  %v3756 = vrsqrt.pop %v3755
  %v3757 = vmul.f32 %v3739, %v3756
  %v3758 = vmul.f32 %v3740, %v3756
  %v3759 = vmul.f32 %v3741, %v3756
  %v3760 = vmul.f32 %v3742, %v3756
  %v3761 = vmul.f32 %v3743, %v3756
  %v3762 = vmul.f32 %v3744, %v3756
  %v3763 = vmul.f32 %v3745, %v3756
  %v3764 = vmul.f32 %v3746, %v3756
  %v3765 = vmul.f32 %v3747, %v3756
  %v3766 = vmul.f32 %v3748, %v3756
  %v3767 = vmul.f32 %v3749, %v3756
  %v3768 = vmul.f32 %v3750, %v3756
  %v3769 = vmul.f32 %v3751, %v3756
  %v3770 = vmul.f32 %v3752, %v3756
  %v3771 = vmul.f32 %v3753, %v3756
  %v3772 = vmul.f32 %v3754, %v3756
  %v3773 = vld [vmem:[%s3] sm:$0x1]
  %v3775 = vlaneseq
  %v3776 = vshrl.u32 %v3775, 7
  %v3777 = vsub.s32 0, %v3776
  %v3778 = vrot.slane %v3773, %v3777
  %v3780 = vmul.f32 %v3757, %v3778
  %v3781 = vmul.f32 %v3758, %v3778
  %v3782 = vmul.f32 %v3759, %v3778
  %v3783 = vmul.f32 %v3760, %v3778
  %v3784 = vmul.f32 %v3761, %v3778
  %v3785 = vmul.f32 %v3762, %v3778
  %v3786 = vmul.f32 %v3763, %v3778
  %v3787 = vmul.f32 %v3764, %v3778
  %v3788 = vmul.f32 %v3765, %v3778
  %v3789 = vmul.f32 %v3766, %v3778
  %v3790 = vmul.f32 %v3767, %v3778
  %v3791 = vmul.f32 %v3768, %v3778
  %v3792 = vmul.f32 %v3769, %v3778
  %v3793 = vmul.f32 %v3770, %v3778
  %v3794 = vmul.f32 %v3771, %v3778
  %v3795 = vmul.f32 %v3772, %v3778
  %v3796 = vld [vmem:[%s4] sm:$0x1]
  %v3798 = vlaneseq
  %v3799 = vshrl.u32 %v3798, 7
  %v3800 = vsub.s32 0, %v3799
  %v3801 = vrot.slane %v3796, %v3800
  %v3803 = vadd.f32 %v3780, %v3801
  %v3804 = vadd.f32 %v3781, %v3801
  %v3805 = vadd.f32 %v3782, %v3801
  %v3806 = vadd.f32 %v3783, %v3801
  %v3807 = vadd.f32 %v3784, %v3801
  %v3808 = vadd.f32 %v3785, %v3801
  %v3809 = vadd.f32 %v3786, %v3801
  %v3810 = vadd.f32 %v3787, %v3801
  %v3811 = vadd.f32 %v3788, %v3801
  %v3812 = vadd.f32 %v3789, %v3801
  %v3813 = vadd.f32 %v3790, %v3801
  %v3814 = vadd.f32 %v3791, %v3801
  %v3815 = vadd.f32 %v3792, %v3801
  %v3816 = vadd.f32 %v3793, %v3801
  %v3817 = vadd.f32 %v3794, %v3801
  %v3818 = vadd.f32 %v3795, %v3801
  %v3819 = vmax.f32 %v3803, 0.0
  %v3820 = vmax.f32 %v3804, 0.0
  %v3821 = vmax.f32 %v3805, 0.0
  %v3822 = vmax.f32 %v3806, 0.0
  %v3823 = vmax.f32 %v3807, 0.0
  %v3824 = vmax.f32 %v3808, 0.0
  %v3825 = vmax.f32 %v3809, 0.0
  %v3826 = vmax.f32 %v3810, 0.0
  %v3827 = vmax.f32 %v3811, 0.0
  %v3828 = vmax.f32 %v3812, 0.0
  %v3829 = vmax.f32 %v3813, 0.0
  %v3830 = vmax.f32 %v3814, 0.0
  %v3831 = vmax.f32 %v3815, 0.0
  %v3832 = vmax.f32 %v3816, 0.0
  %v3833 = vmax.f32 %v3817, 0.0
  %v3834 = vmax.f32 %v3818, 0.0
  %3835 = vst.msk [vmem:[#allocation3] sm:$0xff] %vm3644, 0.0
  %vm3836 = vcmask 58368
  %3837 = vst.msk [vmem:[#allocation3 + $0x8] sm:$0x3] %vm3836, 0.0
  %3838 = vst.msk [vmem:[#allocation3 + $0x10] sm:$0xff] %vm3644, 0.0
  %3839 = vst.msk [vmem:[#allocation3 + $0x18] sm:$0x3] %vm3836, 0.0
  %3840 = vst.msk [vmem:[#allocation3 + $0x20] sm:$0xff] %vm3644, 0.0
  %3841 = vst.msk [vmem:[#allocation3 + $0x28] sm:$0x3] %vm3836, 0.0
  %3842 = vst.msk [vmem:[#allocation3 + $0x30] sm:$0xff] %vm3644, 0.0
  %3843 = vst.msk [vmem:[#allocation3 + $0x38] sm:$0x3] %vm3836, 0.0
  %3844 = vst.msk [vmem:[#allocation3 + $0x40] sm:$0xff] %vm3644, 0.0
  %3845 = vst.msk [vmem:[#allocation3 + $0x48] sm:$0x3] %vm3836, 0.0
  %3846 = vst.msk [vmem:[#allocation3 + $0x50] sm:$0xff] %vm3644, 0.0
  %3847 = vst.msk [vmem:[#allocation3 + $0x58] sm:$0x3] %vm3836, 0.0
  %3848 = vst.msk [vmem:[#allocation3 + $0x60] sm:$0xff] %vm3644, 0.0
  %3849 = vst.msk [vmem:[#allocation3 + $0x68] sm:$0x3] %vm3836, 0.0
  %3850 = vst.msk [vmem:[#allocation3 + $0x70] sm:$0xff] %vm3644, 0.0
  %3851 = vst.msk [vmem:[#allocation3 + $0x78] sm:$0x3] %vm3836, 0.0
  %3852 = vst.msk [vmem:[#allocation3 + $0x80] sm:$0xff] %vm3644, 0.0
  %3853 = vst.msk [vmem:[#allocation3 + $0x88] sm:$0x3] %vm3836, 0.0
  %3854 = vst.msk [vmem:[#allocation3 + $0x90] sm:$0xff] %vm3644, 0.0
  %3855 = vst.msk [vmem:[#allocation3 + $0x98] sm:$0x3] %vm3836, 0.0
  %3856 = vst.msk [vmem:[#allocation3 + $0xa0] sm:$0xff] %vm3644, 0.0
  %3857 = vst.msk [vmem:[#allocation3 + $0xa8] sm:$0x3] %vm3836, 0.0
  %3858 = vst.msk [vmem:[#allocation3 + $0xb0] sm:$0xff] %vm3644, 0.0
  %3859 = vst.msk [vmem:[#allocation3 + $0xb8] sm:$0x3] %vm3836, 0.0
  %3860 = vst.msk [vmem:[#allocation3 + $0xc0] sm:$0xff] %vm3644, 0.0
  %3861 = vst.msk [vmem:[#allocation3 + $0xc8] sm:$0x3] %vm3836, 0.0
  %3862 = vst.msk [vmem:[#allocation3 + $0xd0] sm:$0xff] %vm3644, 0.0
  %3863 = vst.msk [vmem:[#allocation3 + $0xd8] sm:$0x3] %vm3836, 0.0
  %3864 = vst.msk [vmem:[#allocation3 + $0xe0] sm:$0xff] %vm3644, 0.0
  %3865 = vst.msk [vmem:[#allocation3 + $0xe8] sm:$0x3] %vm3836, 0.0
  %3866 = vst.msk [vmem:[#allocation3 + $0xf0] sm:$0xff] %vm3644, 0.0
  %3867 = vst.msk [vmem:[#allocation3 + $0xf8] sm:$0x3] %vm3836, 0.0
  %3868 = vst.msk [vmem:[#allocation3 + $0x100] sm:$0xff] %vm3644, 0.0
  %3869 = vst.msk [vmem:[#allocation3 + $0x108] sm:$0x3] %vm3836, 0.0
  %3870 = vst.msk [vmem:[#allocation3 + $0x110] sm:$0xff] %vm3644, 0.0
  %3871 = vst.msk [vmem:[#allocation3 + $0x118] sm:$0x3] %vm3836, 0.0
  %3872 = vst.msk [vmem:[#allocation3 + $0x120] sm:$0xff] %vm3644, 0.0
  %3873 = vst.msk [vmem:[#allocation3 + $0x128] sm:$0x3] %vm3836, 0.0
  %3874 = vst.msk [vmem:[#allocation3 + $0x130] sm:$0xff] %vm3644, 0.0
  %3875 = vst.msk [vmem:[#allocation3 + $0x138] sm:$0x3] %vm3836, 0.0
  %s3876 = scalar_lea.vmem [#allocation3], 16
  %3877 = vst.msk [vmem:[%s3876 + $0x1] sm:$0xff] %vm3644, %v3819
  %3878 = vst.msk [vmem:[%s3876 + $0x11] sm:$0xff] %vm3644, %v3820
  %3879 = vst.msk [vmem:[%s3876 + $0x21] sm:$0xff] %vm3644, %v3821
  %3880 = vst.msk [vmem:[%s3876 + $0x31] sm:$0xff] %vm3644, %v3822
  %3881 = vst.msk [vmem:[%s3876 + $0x41] sm:$0xff] %vm3644, %v3823
  %3882 = vst.msk [vmem:[%s3876 + $0x51] sm:$0xff] %vm3644, %v3824
  %3883 = vst.msk [vmem:[%s3876 + $0x61] sm:$0xff] %vm3644, %v3825
  %3884 = vst.msk [vmem:[%s3876 + $0x71] sm:$0xff] %vm3644, %v3826
  %3885 = vst.msk [vmem:[%s3876 + $0xa1] sm:$0xff] %vm3644, %v3827
  %3886 = vst.msk [vmem:[%s3876 + $0xb1] sm:$0xff] %vm3644, %v3828
  %3887 = vst.msk [vmem:[%s3876 + $0xc1] sm:$0xff] %vm3644, %v3829
  %3888 = vst.msk [vmem:[%s3876 + $0xd1] sm:$0xff] %vm3644, %v3830
  %3889 = vst.msk [vmem:[%s3876 + $0xe1] sm:$0xff] %vm3644, %v3831
  %3890 = vst.msk [vmem:[%s3876 + $0xf1] sm:$0xff] %vm3644, %v3832
  %3891 = vst.msk [vmem:[%s3876 + $0x101] sm:$0xff] %vm3644, %v3833
  %3892 = vst.msk [vmem:[%s3876 + $0x111] sm:$0xff] %vm3644, %v3834
  %v3893 = vld [vmem:[#allocation3] sm:$0xff]
  %v3894 = vld [vmem:[#allocation3 + $0x8] sm:$0x3]
  %v3895 = vld [vmem:[#allocation3 + $0x10] sm:$0xff]
  %v3896 = vld [vmem:[#allocation3 + $0x18] sm:$0x3]
  %v3897 = vld [vmem:[#allocation3 + $0x20] sm:$0xff]
  %v3898 = vld [vmem:[#allocation3 + $0x28] sm:$0x3]
  %v3899 = vld [vmem:[#allocation3 + $0x30] sm:$0xff]
  %v3900 = vld [vmem:[#allocation3 + $0x38] sm:$0x3]
  %v3901 = vld [vmem:[#allocation3 + $0x40] sm:$0xff]
  %v3902 = vld [vmem:[#allocation3 + $0x48] sm:$0x3]
  %v3903 = vld [vmem:[#allocation3 + $0x50] sm:$0xff]
  %v3904 = vld [vmem:[#allocation3 + $0x58] sm:$0x3]
  %v3905 = vld [vmem:[#allocation3 + $0x60] sm:$0xff]
  %v3906 = vld [vmem:[#allocation3 + $0x68] sm:$0x3]
  %v3907 = vld [vmem:[#allocation3 + $0x70] sm:$0xff]
  %v3908 = vld [vmem:[#allocation3 + $0x78] sm:$0x3]
  %v3909 = vld [vmem:[#allocation3 + $0x80] sm:$0xff]
  %v3910 = vld [vmem:[#allocation3 + $0x88] sm:$0x3]
  %v3911 = vld [vmem:[#allocation3 + $0x90] sm:$0xff]
  %v3912 = vld [vmem:[#allocation3 + $0x98] sm:$0x3]
  %v3913 = vld [vmem:[#allocation3 + $0xa0] sm:$0xff]
  %v3914 = vld [vmem:[#allocation3 + $0xa8] sm:$0x3]
  %v3915 = vld [vmem:[#allocation3 + $0xb0] sm:$0xff]
  %v3916 = vld [vmem:[#allocation3 + $0xb8] sm:$0x3]
  %v3917 = vld [vmem:[#allocation3 + $0xc0] sm:$0xff]
  %v3918 = vld [vmem:[#allocation3 + $0xc8] sm:$0x3]
  %v3919 = vld [vmem:[#allocation3 + $0xd0] sm:$0xff]
  %v3920 = vld [vmem:[#allocation3 + $0xd8] sm:$0x3]
  %v3921 = vld [vmem:[#allocation3 + $0xe0] sm:$0xff]
  %v3922 = vld [vmem:[#allocation3 + $0xe8] sm:$0x3]
  %v3923 = vld [vmem:[#allocation3 + $0xf0] sm:$0xff]
  %v3924 = vld [vmem:[#allocation3 + $0xf8] sm:$0x3]
  %v3925 = vld [vmem:[#allocation3 + $0x100] sm:$0xff]
  %v3926 = vld [vmem:[#allocation3 + $0x108] sm:$0x3]
  %v3927 = vld [vmem:[#allocation3 + $0x110] sm:$0xff]
  %v3928 = vld [vmem:[#allocation3 + $0x118] sm:$0x3]
  %v3929 = vld [vmem:[#allocation3 + $0x120] sm:$0xff]
  %v3930 = vld [vmem:[#allocation3 + $0x128] sm:$0x3]
  %v3931 = vld [vmem:[#allocation3 + $0x130] sm:$0xff]
  %v3932 = vld [vmem:[#allocation3 + $0x138] sm:$0x3]
  %v3933 = vld [vmem:[%s2] sm:$0xff]
  %v3934 = vld [vmem:[%s2 + $0x8] sm:$0xff]
  %v3935 = vld [vmem:[%s2 + $0x10] sm:$0xff]
  %v3936 = vld [vmem:[%s2 + $0x18] sm:$0xff]
  %v3937 = vld [vmem:[%s2 + $0x20] sm:$0xff]
  %v3938 = vld [vmem:[%s2 + $0x28] sm:$0xff]
  %v3939 = vld [vmem:[%s2 + $0x30] sm:$0xff]
  %v3940 = vld [vmem:[%s2 + $0x38] sm:$0xff]
  %v3941 = vld [vmem:[%s2 + $0x40] sm:$0xff]
  %v3974 = vrot.slane %v3893, 1
  %v3975 = vrot.slane %v3894, 1
  %v3976 = vsel %vm1949, %v3974, %v3975
  %v3977 = vrot.slane %v3895, 1
  %v3978 = vrot.slane %v3896, 1
  %v3979 = vsel %vm1949, %v3977, %v3978
  %v3980 = vrot.slane %v3897, 1
  %v3981 = vrot.slane %v3898, 1
  %v3982 = vsel %vm1949, %v3980, %v3981
  %v3983 = vrot.slane %v3899, 1
  %v3984 = vrot.slane %v3900, 1
  %v3985 = vsel %vm1949, %v3983, %v3984
  %v3986 = vrot.slane %v3901, 1
  %v3987 = vrot.slane %v3902, 1
  %v3988 = vsel %vm1949, %v3986, %v3987
  %v3989 = vrot.slane %v3903, 1
  %v3990 = vrot.slane %v3904, 1
  %v3991 = vsel %vm1949, %v3989, %v3990
  %v3992 = vrot.slane %v3905, 1
  %v3993 = vrot.slane %v3906, 1
  %v3994 = vsel %vm1949, %v3992, %v3993
  %v3995 = vrot.slane %v3907, 1
  %v3996 = vrot.slane %v3908, 1
  %v3997 = vsel %vm1949, %v3995, %v3996
  %v3998 = vrot.slane %v3913, 1
  %v3999 = vrot.slane %v3914, 1
  %v4000 = vsel %vm1949, %v3998, %v3999
  %v4001 = vrot.slane %v3915, 1
  %v4002 = vrot.slane %v3916, 1
  %v4003 = vsel %vm1949, %v4001, %v4002
  %v4004 = vrot.slane %v3917, 1
  %v4005 = vrot.slane %v3918, 1
  %v4006 = vsel %vm1949, %v4004, %v4005
  %v4007 = vrot.slane %v3919, 1
  %v4008 = vrot.slane %v3920, 1
  %v4009 = vsel %vm1949, %v4007, %v4008
  %v4010 = vrot.slane %v3921, 1
  %v4011 = vrot.slane %v3922, 1
  %v4012 = vsel %vm1949, %v4010, %v4011
  %v4013 = vrot.slane %v3923, 1
  %v4014 = vrot.slane %v3924, 1
  %v4015 = vsel %vm1949, %v4013, %v4014
  %v4016 = vrot.slane %v3925, 1
  %v4017 = vrot.slane %v3926, 1
  %v4018 = vsel %vm1949, %v4016, %v4017
  %v4019 = vrot.slane %v3927, 1
  %v4020 = vrot.slane %v3928, 1
  %v4021 = vsel %vm1949, %v4019, %v4020
  %v4023 = vsel %vm3644, %v3934, 0
  %v4025 = vsel %vm3644, %v3976, 0
  %v4027 = vsel %vm3644, %v3979, 0
  %v4029 = vsel %vm3644, %v3982, 0
  %v4031 = vsel %vm3644, %v3985, 0
  %v4033 = vsel %vm3644, %v3988, 0
  %v4035 = vsel %vm3644, %v3991, 0
  %v4037 = vsel %vm3644, %v3994, 0
  %v4039 = vsel %vm3644, %v3997, 0
  %v4041 = vsel %vm3644, %v4000, 0
  %v4043 = vsel %vm3644, %v4003, 0
  %v4045 = vsel %vm3644, %v4006, 0
  %v4047 = vsel %vm3644, %v4009, 0
  %v4049 = vsel %vm3644, %v4012, 0
  %v4051 = vsel %vm3644, %v4015, 0
  %v4053 = vsel %vm3644, %v4018, 0
  %v4055 = vsel %vm3644, %v4021, 0
  %4057 = vmatprep.subr.mxu0 0.0
  %4058 = vmatpush1.xpose.msra.mxu0 %v4055
  %4059 = vmatprep.subr.mxu0 0.0
  %4060 = vmatpush1.xpose.msra.mxu0 %v4053
  %4061 = vmatprep.subr.mxu0 0.0
  %4062 = vmatpush1.xpose.msra.mxu0 %v4051
  %4063 = vmatprep.subr.mxu0 0.0
  %4064 = vmatpush1.xpose.msra.mxu0 %v4049
  %4065 = vmatprep.subr.mxu0 0.0
  %4066 = vmatpush1.xpose.msra.mxu0 %v4047
  %4067 = vmatprep.subr.mxu0 0.0
  %4068 = vmatpush1.xpose.msra.mxu0 %v4045
  %4069 = vmatprep.subr.mxu0 0.0
  %4070 = vmatpush1.xpose.msra.mxu0 %v4043
  %4071 = vmatprep.subr.mxu0 0.0
  %4072 = vmatpush1.xpose.msra.mxu0 %v4041
  %4073 = vmatprep.subr.mxu0 0.0
  %4074 = vmatpush1.xpose.msra.mxu0 %v4039
  %4075 = vmatprep.subr.mxu0 0.0
  %4076 = vmatpush1.xpose.msra.mxu0 %v4037
  %4077 = vmatprep.subr.mxu0 0.0
  %4078 = vmatpush1.xpose.msra.mxu0 %v4035
  %4079 = vmatprep.subr.mxu0 0.0
  %4080 = vmatpush1.xpose.msra.mxu0 %v4033
  %4081 = vmatprep.subr.mxu0 0.0
  %4082 = vmatpush1.xpose.msra.mxu0 %v4031
  %4083 = vmatprep.subr.mxu0 0.0
  %4084 = vmatpush1.xpose.msra.mxu0 %v4029
  %4085 = vmatprep.subr.mxu0 0.0
  %4086 = vmatpush1.xpose.msra.mxu0 %v4027
  %4087 = vmatprep.subr.mxu0 0.0
  %4088 = vmatpush1.xpose.msra.mxu0 %v4025
  %4089 = vmatprep.subr.mxu0 0.0
  %4090 = vmatpush2.xpose.msra.mxu0 0.0
  %4091 = vmatprep.subr.mxu0 0.0
  %4092 = vmatpush2.xpose.msra.mxu0 0.0
  %4093 = vmatprep.subr.mxu0 0.0
  %4094 = vmatpush2.xpose.msra.mxu0 0.0
  %4095 = vmatprep.subr.mxu0 0.0
  %4096 = vmatpush2.xpose.msra.mxu0 0.0
  %4097 = vmatprep.subr.mxu0 0.0
  %4098 = vmatpush2.xpose.msra.mxu0 0.0
  %4099 = vmatprep.subr.mxu0 0.0
  %4100 = vmatpush2.xpose.msra.mxu0 0.0
  %4101 = vmatprep.subr.mxu0 0.0
  %4102 = vmatpush2.xpose.msra.mxu0 0.0
  %4103 = vmatprep.subr.mxu0 0.0
  %4104 = vmatpush2.xpose.msra.mxu0 0.0
  %4105 = vmatprep.subr.mxu0 0.0
  %4106 = vmatpush2.xpose.msra.mxu0 0.0
  %4107 = vmatprep.subr.mxu0 0.0
  %4108 = vmatpush2.xpose.msra.mxu0 0.0
  %4109 = vmatprep.subr.mxu0 0.0
  %4110 = vmatpush2.xpose.msra.mxu0 0.0
  %4111 = vmatprep.subr.mxu0 0.0
  %4112 = vmatpush2.xpose.msra.mxu0 0.0
  %4113 = vmatprep.subr.mxu0 0.0
  %4114 = vmatpush2.xpose.msra.mxu0 0.0
  %4115 = vmatprep.subr.mxu0 0.0
  %4116 = vmatpush2.xpose.msra.mxu0 0.0
  %4117 = vmatprep.subr.mxu0 0.0
  %4118 = vmatpush2.xpose.msra.mxu0 0.0
  %4119 = vmatprep.subr.mxu0 0.0
  %4120 = vmatpush2.xpose.msra.mxu0 0.0
  %4121 = vmatprep.mubr.f32.mxu0 0.0
  %4122 = vmatmul.mubr.f32.gmra.mxu0 %v4023
  %v4123 = vpop.f32.mrf.mxu0
  %v4124 = vadd.f32 0.0, %v4123
  %v4125 = vpop.f32.mrf.mxu0
  %4126 = vdwg.mxu0
  %v4128 = vsel %vm3644, %v3933, 0
  %v4130 = vsel %vm3644, %v3893, 0
  %v4132 = vsel %vm3644, %v3895, 0
  %v4134 = vsel %vm3644, %v3897, 0
  %v4136 = vsel %vm3644, %v3899, 0
  %v4138 = vsel %vm3644, %v3901, 0
  %v4140 = vsel %vm3644, %v3903, 0
  %v4142 = vsel %vm3644, %v3905, 0
  %v4144 = vsel %vm3644, %v3907, 0
  %v4146 = vsel %vm3644, %v3913, 0
  %v4148 = vsel %vm3644, %v3915, 0
  %v4150 = vsel %vm3644, %v3917, 0
  %v4152 = vsel %vm3644, %v3919, 0
  %v4154 = vsel %vm3644, %v3921, 0
  %v4156 = vsel %vm3644, %v3923, 0
  %v4158 = vsel %vm3644, %v3925, 0
  %v4160 = vsel %vm3644, %v3927, 0
  %4162 = vmatprep.subr.mxu0 0.0
  %4163 = vmatpush1.xpose.msra.mxu0 %v4160
  %4164 = vmatprep.subr.mxu0 0.0
  %4165 = vmatpush1.xpose.msra.mxu0 %v4158
  %4166 = vmatprep.subr.mxu0 0.0
  %4167 = vmatpush1.xpose.msra.mxu0 %v4156
  %4168 = vmatprep.subr.mxu0 0.0
  %4169 = vmatpush1.xpose.msra.mxu0 %v4154
  %4170 = vmatprep.subr.mxu0 0.0
  %4171 = vmatpush1.xpose.msra.mxu0 %v4152
  %4172 = vmatprep.subr.mxu0 0.0
  %4173 = vmatpush1.xpose.msra.mxu0 %v4150
  %4174 = vmatprep.subr.mxu0 0.0
  %4175 = vmatpush1.xpose.msra.mxu0 %v4148
  %4176 = vmatprep.subr.mxu0 0.0
  %4177 = vmatpush1.xpose.msra.mxu0 %v4146
  %4178 = vmatprep.subr.mxu0 0.0
  %4179 = vmatpush1.xpose.msra.mxu0 %v4144
  %4180 = vmatprep.subr.mxu0 0.0
  %4181 = vmatpush1.xpose.msra.mxu0 %v4142
  %4182 = vmatprep.subr.mxu0 0.0
  %4183 = vmatpush1.xpose.msra.mxu0 %v4140
  %4184 = vmatprep.subr.mxu0 0.0
  %4185 = vmatpush1.xpose.msra.mxu0 %v4138
  %4186 = vmatprep.subr.mxu0 0.0
  %4187 = vmatpush1.xpose.msra.mxu0 %v4136
  %4188 = vmatprep.subr.mxu0 0.0
  %4189 = vmatpush1.xpose.msra.mxu0 %v4134
  %4190 = vmatprep.subr.mxu0 0.0
  %4191 = vmatpush1.xpose.msra.mxu0 %v4132
  %4192 = vmatprep.subr.mxu0 0.0
  %4193 = vmatpush1.xpose.msra.mxu0 %v4130
  %4194 = vmatprep.subr.mxu0 0.0
  %4195 = vmatpush2.xpose.msra.mxu0 0.0
  %4196 = vmatprep.subr.mxu0 0.0
  %4197 = vmatpush2.xpose.msra.mxu0 0.0
  %4198 = vmatprep.subr.mxu0 0.0
  %4199 = vmatpush2.xpose.msra.mxu0 0.0
  %4200 = vmatprep.subr.mxu0 0.0
  %4201 = vmatpush2.xpose.msra.mxu0 0.0
  %4202 = vmatprep.subr.mxu0 0.0
  %4203 = vmatpush2.xpose.msra.mxu0 0.0
  %4204 = vmatprep.subr.mxu0 0.0
  %4205 = vmatpush2.xpose.msra.mxu0 0.0
  %4206 = vmatprep.subr.mxu0 0.0
  %4207 = vmatpush2.xpose.msra.mxu0 0.0
  %4208 = vmatprep.subr.mxu0 0.0
  %4209 = vmatpush2.xpose.msra.mxu0 0.0
  %4210 = vmatprep.subr.mxu0 0.0
  %4211 = vmatpush2.xpose.msra.mxu0 0.0
  %4212 = vmatprep.subr.mxu0 0.0
  %4213 = vmatpush2.xpose.msra.mxu0 0.0
  %4214 = vmatprep.subr.mxu0 0.0
  %4215 = vmatpush2.xpose.msra.mxu0 0.0
  %4216 = vmatprep.subr.mxu0 0.0
  %4217 = vmatpush2.xpose.msra.mxu0 0.0
  %4218 = vmatprep.subr.mxu0 0.0
  %4219 = vmatpush2.xpose.msra.mxu0 0.0
  %4220 = vmatprep.subr.mxu0 0.0
  %4221 = vmatpush2.xpose.msra.mxu0 0.0
  %4222 = vmatprep.subr.mxu0 0.0
  %4223 = vmatpush2.xpose.msra.mxu0 0.0
  %4224 = vmatprep.subr.mxu0 0.0
  %4225 = vmatpush2.xpose.msra.mxu0 0.0
  %4226 = vmatprep.mubr.f32.mxu0 0.0
  %4227 = vmatmul.mubr.f32.gmra.mxu0 %v4128
  %v4228 = vpop.f32.mrf.mxu0
  %v4229 = vadd.f32 %v4124, %v4228
  %v4230 = vpop.f32.mrf.mxu0
  %4231 = vdwg.mxu0
  %v4232 = vrot.slane %v3893, 2
  %v4233 = vrot.slane %v3894, 2
  %v4234 = vsel %vm2359, %v4232, %v4233
  %v4235 = vrot.slane %v3895, 2
  %v4236 = vrot.slane %v3896, 2
  %v4237 = vsel %vm2359, %v4235, %v4236
  %v4238 = vrot.slane %v3897, 2
  %v4239 = vrot.slane %v3898, 2
  %v4240 = vsel %vm2359, %v4238, %v4239
  %v4241 = vrot.slane %v3899, 2
  %v4242 = vrot.slane %v3900, 2
  %v4243 = vsel %vm2359, %v4241, %v4242
  %v4244 = vrot.slane %v3901, 2
  %v4245 = vrot.slane %v3902, 2
  %v4246 = vsel %vm2359, %v4244, %v4245
  %v4247 = vrot.slane %v3903, 2
  %v4248 = vrot.slane %v3904, 2
  %v4249 = vsel %vm2359, %v4247, %v4248
  %v4250 = vrot.slane %v3905, 2
  %v4251 = vrot.slane %v3906, 2
  %v4252 = vsel %vm2359, %v4250, %v4251
  %v4253 = vrot.slane %v3907, 2
  %v4254 = vrot.slane %v3908, 2
  %v4255 = vsel %vm2359, %v4253, %v4254
  %v4256 = vrot.slane %v3913, 2
  %v4257 = vrot.slane %v3914, 2
  %v4258 = vsel %vm2359, %v4256, %v4257
  %v4259 = vrot.slane %v3915, 2
  %v4260 = vrot.slane %v3916, 2
  %v4261 = vsel %vm2359, %v4259, %v4260
  %v4262 = vrot.slane %v3917, 2
  %v4263 = vrot.slane %v3918, 2
  %v4264 = vsel %vm2359, %v4262, %v4263
  %v4265 = vrot.slane %v3919, 2
  %v4266 = vrot.slane %v3920, 2
  %v4267 = vsel %vm2359, %v4265, %v4266
  %v4268 = vrot.slane %v3921, 2
  %v4269 = vrot.slane %v3922, 2
  %v4270 = vsel %vm2359, %v4268, %v4269
  %v4271 = vrot.slane %v3923, 2
  %v4272 = vrot.slane %v3924, 2
  %v4273 = vsel %vm2359, %v4271, %v4272
  %v4274 = vrot.slane %v3925, 2
  %v4275 = vrot.slane %v3926, 2
  %v4276 = vsel %vm2359, %v4274, %v4275
  %v4277 = vrot.slane %v3927, 2
  %v4278 = vrot.slane %v3928, 2
  %v4279 = vsel %vm2359, %v4277, %v4278
  %v4281 = vsel %vm3644, %v3935, 0
  %v4283 = vsel %vm3644, %v4234, 0
  %v4285 = vsel %vm3644, %v4237, 0
  %v4287 = vsel %vm3644, %v4240, 0
  %v4289 = vsel %vm3644, %v4243, 0
  %v4291 = vsel %vm3644, %v4246, 0
  %v4293 = vsel %vm3644, %v4249, 0
  %v4295 = vsel %vm3644, %v4252, 0
  %v4297 = vsel %vm3644, %v4255, 0
  %v4299 = vsel %vm3644, %v4258, 0
  %v4301 = vsel %vm3644, %v4261, 0
  %v4303 = vsel %vm3644, %v4264, 0
  %v4305 = vsel %vm3644, %v4267, 0
  %v4307 = vsel %vm3644, %v4270, 0
  %v4309 = vsel %vm3644, %v4273, 0
  %v4311 = vsel %vm3644, %v4276, 0
  %v4313 = vsel %vm3644, %v4279, 0
  %4315 = vmatprep.subr.mxu0 0.0
  %4316 = vmatpush1.xpose.msra.mxu0 %v4313
  %4317 = vmatprep.subr.mxu0 0.0
  %4318 = vmatpush1.xpose.msra.mxu0 %v4311
  %4319 = vmatprep.subr.mxu0 0.0
  %4320 = vmatpush1.xpose.msra.mxu0 %v4309
  %4321 = vmatprep.subr.mxu0 0.0
  %4322 = vmatpush1.xpose.msra.mxu0 %v4307
  %4323 = vmatprep.subr.mxu0 0.0
  %4324 = vmatpush1.xpose.msra.mxu0 %v4305
  %4325 = vmatprep.subr.mxu0 0.0
  %4326 = vmatpush1.xpose.msra.mxu0 %v4303
  %4327 = vmatprep.subr.mxu0 0.0
  %4328 = vmatpush1.xpose.msra.mxu0 %v4301
  %4329 = vmatprep.subr.mxu0 0.0
  %4330 = vmatpush1.xpose.msra.mxu0 %v4299
  %4331 = vmatprep.subr.mxu0 0.0
  %4332 = vmatpush1.xpose.msra.mxu0 %v4297
  %4333 = vmatprep.subr.mxu0 0.0
  %4334 = vmatpush1.xpose.msra.mxu0 %v4295
  %4335 = vmatprep.subr.mxu0 0.0
  %4336 = vmatpush1.xpose.msra.mxu0 %v4293
  %4337 = vmatprep.subr.mxu0 0.0
  %4338 = vmatpush1.xpose.msra.mxu0 %v4291
  %4339 = vmatprep.subr.mxu0 0.0
  %4340 = vmatpush1.xpose.msra.mxu0 %v4289
  %4341 = vmatprep.subr.mxu0 0.0
  %4342 = vmatpush1.xpose.msra.mxu0 %v4287
  %4343 = vmatprep.subr.mxu0 0.0
  %4344 = vmatpush1.xpose.msra.mxu0 %v4285
  %4345 = vmatprep.subr.mxu0 0.0
  %4346 = vmatpush1.xpose.msra.mxu0 %v4283
  %4347 = vmatprep.subr.mxu0 0.0
  %4348 = vmatpush2.xpose.msra.mxu0 0.0
  %4349 = vmatprep.subr.mxu0 0.0
  %4350 = vmatpush2.xpose.msra.mxu0 0.0
  %4351 = vmatprep.subr.mxu0 0.0
  %4352 = vmatpush2.xpose.msra.mxu0 0.0
  %4353 = vmatprep.subr.mxu0 0.0
  %4354 = vmatpush2.xpose.msra.mxu0 0.0
  %4355 = vmatprep.subr.mxu0 0.0
  %4356 = vmatpush2.xpose.msra.mxu0 0.0
  %4357 = vmatprep.subr.mxu0 0.0
  %4358 = vmatpush2.xpose.msra.mxu0 0.0
  %4359 = vmatprep.subr.mxu0 0.0
  %4360 = vmatpush2.xpose.msra.mxu0 0.0
  %4361 = vmatprep.subr.mxu0 0.0
  %4362 = vmatpush2.xpose.msra.mxu0 0.0
  %4363 = vmatprep.subr.mxu0 0.0
  %4364 = vmatpush2.xpose.msra.mxu0 0.0
  %4365 = vmatprep.subr.mxu0 0.0
  %4366 = vmatpush2.xpose.msra.mxu0 0.0
  %4367 = vmatprep.subr.mxu0 0.0
  %4368 = vmatpush2.xpose.msra.mxu0 0.0
  %4369 = vmatprep.subr.mxu0 0.0
  %4370 = vmatpush2.xpose.msra.mxu0 0.0
  %4371 = vmatprep.subr.mxu0 0.0
  %4372 = vmatpush2.xpose.msra.mxu0 0.0
  %4373 = vmatprep.subr.mxu0 0.0
  %4374 = vmatpush2.xpose.msra.mxu0 0.0
  %4375 = vmatprep.subr.mxu0 0.0
  %4376 = vmatpush2.xpose.msra.mxu0 0.0
  %4377 = vmatprep.subr.mxu0 0.0
  %4378 = vmatpush2.xpose.msra.mxu0 0.0
  %4379 = vmatprep.mubr.f32.mxu0 0.0
  %4380 = vmatmul.mubr.f32.gmra.mxu0 %v4281
  %v4381 = vpop.f32.mrf.mxu0
  %v4382 = vadd.f32 0.0, %v4381
  %v4383 = vpop.f32.mrf.mxu0
  %4384 = vdwg.mxu0
  %v4385 = vadd.f32 %v4229, %v4382
  %v4387 = vsel %vm3644, %v3936, 0
  %v4390 = vsel %vm3644, %v3909, 0
  %v4393 = vsel %vm3644, %v3929, 0
  %4395 = vmatprep.subr.mxu0 0.0
  %4396 = vmatpush1.xpose.msra.mxu0 %v4393
  %4397 = vmatprep.subr.mxu0 0.0
  %4398 = vmatpush1.xpose.msra.mxu0 %v4160
  %4399 = vmatprep.subr.mxu0 0.0
  %4400 = vmatpush1.xpose.msra.mxu0 %v4158
  %4401 = vmatprep.subr.mxu0 0.0
  %4402 = vmatpush1.xpose.msra.mxu0 %v4156
  %4403 = vmatprep.subr.mxu0 0.0
  %4404 = vmatpush1.xpose.msra.mxu0 %v4154
  %4405 = vmatprep.subr.mxu0 0.0
  %4406 = vmatpush1.xpose.msra.mxu0 %v4152
  %4407 = vmatprep.subr.mxu0 0.0
  %4408 = vmatpush1.xpose.msra.mxu0 %v4150
  %4409 = vmatprep.subr.mxu0 0.0
  %4410 = vmatpush1.xpose.msra.mxu0 %v4148
  %4411 = vmatprep.subr.mxu0 0.0
  %4412 = vmatpush1.xpose.msra.mxu0 %v4390
  %4413 = vmatprep.subr.mxu0 0.0
  %4414 = vmatpush1.xpose.msra.mxu0 %v4144
  %4415 = vmatprep.subr.mxu0 0.0
  %4416 = vmatpush1.xpose.msra.mxu0 %v4142
  %4417 = vmatprep.subr.mxu0 0.0
  %4418 = vmatpush1.xpose.msra.mxu0 %v4140
  %4419 = vmatprep.subr.mxu0 0.0
  %4420 = vmatpush1.xpose.msra.mxu0 %v4138
  %4421 = vmatprep.subr.mxu0 0.0
  %4422 = vmatpush1.xpose.msra.mxu0 %v4136
  %4423 = vmatprep.subr.mxu0 0.0
  %4424 = vmatpush1.xpose.msra.mxu0 %v4134
  %4425 = vmatprep.subr.mxu0 0.0
  %4426 = vmatpush1.xpose.msra.mxu0 %v4132
  %4427 = vmatprep.subr.mxu0 0.0
  %4428 = vmatpush2.xpose.msra.mxu0 0.0
  %4429 = vmatprep.subr.mxu0 0.0
  %4430 = vmatpush2.xpose.msra.mxu0 0.0
  %4431 = vmatprep.subr.mxu0 0.0
  %4432 = vmatpush2.xpose.msra.mxu0 0.0
  %4433 = vmatprep.subr.mxu0 0.0
  %4434 = vmatpush2.xpose.msra.mxu0 0.0
  %4435 = vmatprep.subr.mxu0 0.0
  %4436 = vmatpush2.xpose.msra.mxu0 0.0
  %4437 = vmatprep.subr.mxu0 0.0
  %4438 = vmatpush2.xpose.msra.mxu0 0.0
  %4439 = vmatprep.subr.mxu0 0.0
  %4440 = vmatpush2.xpose.msra.mxu0 0.0
  %4441 = vmatprep.subr.mxu0 0.0
  %4442 = vmatpush2.xpose.msra.mxu0 0.0
  %4443 = vmatprep.subr.mxu0 0.0
  %4444 = vmatpush2.xpose.msra.mxu0 0.0
  %4445 = vmatprep.subr.mxu0 0.0
  %4446 = vmatpush2.xpose.msra.mxu0 0.0
  %4447 = vmatprep.subr.mxu0 0.0
  %4448 = vmatpush2.xpose.msra.mxu0 0.0
  %4449 = vmatprep.subr.mxu0 0.0
  %4450 = vmatpush2.xpose.msra.mxu0 0.0
  %4451 = vmatprep.subr.mxu0 0.0
  %4452 = vmatpush2.xpose.msra.mxu0 0.0
  %4453 = vmatprep.subr.mxu0 0.0
  %4454 = vmatpush2.xpose.msra.mxu0 0.0
  %4455 = vmatprep.subr.mxu0 0.0
  %4456 = vmatpush2.xpose.msra.mxu0 0.0
  %4457 = vmatprep.subr.mxu0 0.0
  %4458 = vmatpush2.xpose.msra.mxu0 0.0
  %4459 = vmatprep.mubr.f32.mxu0 0.0
  %4460 = vmatmul.mubr.f32.gmra.mxu0 %v4387
  %v4461 = vpop.f32.mrf.mxu0
  %v4462 = vadd.f32 0.0, %v4461
  %v4463 = vpop.f32.mrf.mxu0
  %4464 = vdwg.mxu0
  %v4465 = vadd.f32 %v4385, %v4462
  %v4468 = vrot.slane %v3909, 1
  %v4469 = vrot.slane %v3910, 1
  %v4470 = vsel %vm1949, %v4468, %v4469
  %v4471 = vrot.slane %v3929, 1
  %v4472 = vrot.slane %v3930, 1
  %v4473 = vsel %vm1949, %v4471, %v4472
  %v4475 = vsel %vm3644, %v3937, 0
  %v4477 = vsel %vm3644, %v4470, 0
  %v4479 = vsel %vm3644, %v4473, 0
  %4481 = vmatprep.subr.mxu0 0.0
  %4482 = vmatpush1.xpose.msra.mxu0 %v4479
  %4483 = vmatprep.subr.mxu0 0.0
  %4484 = vmatpush1.xpose.msra.mxu0 %v4055
  %4485 = vmatprep.subr.mxu0 0.0
  %4486 = vmatpush1.xpose.msra.mxu0 %v4053
  %4487 = vmatprep.subr.mxu0 0.0
  %4488 = vmatpush1.xpose.msra.mxu0 %v4051
  %4489 = vmatprep.subr.mxu0 0.0
  %4490 = vmatpush1.xpose.msra.mxu0 %v4049
  %4491 = vmatprep.subr.mxu0 0.0
  %4492 = vmatpush1.xpose.msra.mxu0 %v4047
  %4493 = vmatprep.subr.mxu0 0.0
  %4494 = vmatpush1.xpose.msra.mxu0 %v4045
  %4495 = vmatprep.subr.mxu0 0.0
  %4496 = vmatpush1.xpose.msra.mxu0 %v4043
  %4497 = vmatprep.subr.mxu0 0.0
  %4498 = vmatpush1.xpose.msra.mxu0 %v4477
  %4499 = vmatprep.subr.mxu0 0.0
  %4500 = vmatpush1.xpose.msra.mxu0 %v4039
  %4501 = vmatprep.subr.mxu0 0.0
  %4502 = vmatpush1.xpose.msra.mxu0 %v4037
  %4503 = vmatprep.subr.mxu0 0.0
  %4504 = vmatpush1.xpose.msra.mxu0 %v4035
  %4505 = vmatprep.subr.mxu0 0.0
  %4506 = vmatpush1.xpose.msra.mxu0 %v4033
  %4507 = vmatprep.subr.mxu0 0.0
  %4508 = vmatpush1.xpose.msra.mxu0 %v4031
  %4509 = vmatprep.subr.mxu0 0.0
  %4510 = vmatpush1.xpose.msra.mxu0 %v4029
  %4511 = vmatprep.subr.mxu0 0.0
  %4512 = vmatpush1.xpose.msra.mxu0 %v4027
  %4513 = vmatprep.subr.mxu0 0.0
  %4514 = vmatpush2.xpose.msra.mxu0 0.0
  %4515 = vmatprep.subr.mxu0 0.0
  %4516 = vmatpush2.xpose.msra.mxu0 0.0
  %4517 = vmatprep.subr.mxu0 0.0
  %4518 = vmatpush2.xpose.msra.mxu0 0.0
  %4519 = vmatprep.subr.mxu0 0.0
  %4520 = vmatpush2.xpose.msra.mxu0 0.0
  %4521 = vmatprep.subr.mxu0 0.0
  %4522 = vmatpush2.xpose.msra.mxu0 0.0
  %4523 = vmatprep.subr.mxu0 0.0
  %4524 = vmatpush2.xpose.msra.mxu0 0.0
  %4525 = vmatprep.subr.mxu0 0.0
  %4526 = vmatpush2.xpose.msra.mxu0 0.0
  %4527 = vmatprep.subr.mxu0 0.0
  %4528 = vmatpush2.xpose.msra.mxu0 0.0
  %4529 = vmatprep.subr.mxu0 0.0
  %4530 = vmatpush2.xpose.msra.mxu0 0.0
  %4531 = vmatprep.subr.mxu0 0.0
  %4532 = vmatpush2.xpose.msra.mxu0 0.0
  %4533 = vmatprep.subr.mxu0 0.0
  %4534 = vmatpush2.xpose.msra.mxu0 0.0
  %4535 = vmatprep.subr.mxu0 0.0
  %4536 = vmatpush2.xpose.msra.mxu0 0.0
  %4537 = vmatprep.subr.mxu0 0.0
  %4538 = vmatpush2.xpose.msra.mxu0 0.0
  %4539 = vmatprep.subr.mxu0 0.0
  %4540 = vmatpush2.xpose.msra.mxu0 0.0
  %4541 = vmatprep.subr.mxu0 0.0
  %4542 = vmatpush2.xpose.msra.mxu0 0.0
  %4543 = vmatprep.subr.mxu0 0.0
  %4544 = vmatpush2.xpose.msra.mxu0 0.0
  %4545 = vmatprep.mubr.f32.mxu0 0.0
  %4546 = vmatmul.mubr.f32.gmra.mxu0 %v4475
  %v4547 = vpop.f32.mrf.mxu0
  %v4548 = vadd.f32 0.0, %v4547
  %v4549 = vpop.f32.mrf.mxu0
  %4550 = vdwg.mxu0
  %v4551 = vadd.f32 %v4465, %v4548
  %v4552 = vrot.slane %v3909, 2
  %v4553 = vrot.slane %v3910, 2
  %v4554 = vsel %vm2359, %v4552, %v4553
  %v4555 = vrot.slane %v3929, 2
  %v4556 = vrot.slane %v3930, 2
  %v4557 = vsel %vm2359, %v4555, %v4556
  %v4559 = vsel %vm3644, %v3938, 0
  %v4561 = vsel %vm3644, %v4554, 0
  %v4563 = vsel %vm3644, %v4557, 0
  %4565 = vmatprep.subr.mxu0 0.0
  %4566 = vmatpush1.xpose.msra.mxu0 %v4563
  %4567 = vmatprep.subr.mxu0 0.0
  %4568 = vmatpush1.xpose.msra.mxu0 %v4313
  %4569 = vmatprep.subr.mxu0 0.0
  %4570 = vmatpush1.xpose.msra.mxu0 %v4311
  %4571 = vmatprep.subr.mxu0 0.0
  %4572 = vmatpush1.xpose.msra.mxu0 %v4309
  %4573 = vmatprep.subr.mxu0 0.0
  %4574 = vmatpush1.xpose.msra.mxu0 %v4307
  %4575 = vmatprep.subr.mxu0 0.0
  %4576 = vmatpush1.xpose.msra.mxu0 %v4305
  %4577 = vmatprep.subr.mxu0 0.0
  %4578 = vmatpush1.xpose.msra.mxu0 %v4303
  %4579 = vmatprep.subr.mxu0 0.0
  %4580 = vmatpush1.xpose.msra.mxu0 %v4301
  %4581 = vmatprep.subr.mxu0 0.0
  %4582 = vmatpush1.xpose.msra.mxu0 %v4561
  %4583 = vmatprep.subr.mxu0 0.0
  %4584 = vmatpush1.xpose.msra.mxu0 %v4297
  %4585 = vmatprep.subr.mxu0 0.0
  %4586 = vmatpush1.xpose.msra.mxu0 %v4295
  %4587 = vmatprep.subr.mxu0 0.0
  %4588 = vmatpush1.xpose.msra.mxu0 %v4293
  %4589 = vmatprep.subr.mxu0 0.0
  %4590 = vmatpush1.xpose.msra.mxu0 %v4291
  %4591 = vmatprep.subr.mxu0 0.0
  %4592 = vmatpush1.xpose.msra.mxu0 %v4289
  %4593 = vmatprep.subr.mxu0 0.0
  %4594 = vmatpush1.xpose.msra.mxu0 %v4287
  %4595 = vmatprep.subr.mxu0 0.0
  %4596 = vmatpush1.xpose.msra.mxu0 %v4285
  %4597 = vmatprep.subr.mxu0 0.0
  %4598 = vmatpush2.xpose.msra.mxu0 0.0
  %4599 = vmatprep.subr.mxu0 0.0
  %4600 = vmatpush2.xpose.msra.mxu0 0.0
  %4601 = vmatprep.subr.mxu0 0.0
  %4602 = vmatpush2.xpose.msra.mxu0 0.0
  %4603 = vmatprep.subr.mxu0 0.0
  %4604 = vmatpush2.xpose.msra.mxu0 0.0
  %4605 = vmatprep.subr.mxu0 0.0
  %4606 = vmatpush2.xpose.msra.mxu0 0.0
  %4607 = vmatprep.subr.mxu0 0.0
  %4608 = vmatpush2.xpose.msra.mxu0 0.0
  %4609 = vmatprep.subr.mxu0 0.0
  %4610 = vmatpush2.xpose.msra.mxu0 0.0
  %4611 = vmatprep.subr.mxu0 0.0
  %4612 = vmatpush2.xpose.msra.mxu0 0.0
  %4613 = vmatprep.subr.mxu0 0.0
  %4614 = vmatpush2.xpose.msra.mxu0 0.0
  %4615 = vmatprep.subr.mxu0 0.0
  %4616 = vmatpush2.xpose.msra.mxu0 0.0
  %4617 = vmatprep.subr.mxu0 0.0
  %4618 = vmatpush2.xpose.msra.mxu0 0.0
  %4619 = vmatprep.subr.mxu0 0.0
  %4620 = vmatpush2.xpose.msra.mxu0 0.0
  %4621 = vmatprep.subr.mxu0 0.0
  %4622 = vmatpush2.xpose.msra.mxu0 0.0
  %4623 = vmatprep.subr.mxu0 0.0
  %4624 = vmatpush2.xpose.msra.mxu0 0.0
  %4625 = vmatprep.subr.mxu0 0.0
  %4626 = vmatpush2.xpose.msra.mxu0 0.0
  %4627 = vmatprep.subr.mxu0 0.0
  %4628 = vmatpush2.xpose.msra.mxu0 0.0
  %4629 = vmatprep.mubr.f32.mxu0 0.0
  %4630 = vmatmul.mubr.f32.gmra.mxu0 %v4559
  %v4631 = vpop.f32.mrf.mxu0
  %v4632 = vadd.f32 0.0, %v4631
  %v4633 = vpop.f32.mrf.mxu0
  %4634 = vdwg.mxu0
  %v4635 = vadd.f32 %v4551, %v4632
  %v4637 = vsel %vm3644, %v3939, 0
  %v4640 = vsel %vm3644, %v3911, 0
  %v4643 = vsel %vm3644, %v3931, 0
  %4645 = vmatprep.subr.mxu0 0.0
  %4646 = vmatpush1.xpose.msra.mxu0 %v4643
  %4647 = vmatprep.subr.mxu0 0.0
  %4648 = vmatpush1.xpose.msra.mxu0 %v4393
  %4649 = vmatprep.subr.mxu0 0.0
  %4650 = vmatpush1.xpose.msra.mxu0 %v4160
  %4651 = vmatprep.subr.mxu0 0.0
  %4652 = vmatpush1.xpose.msra.mxu0 %v4158
  %4653 = vmatprep.subr.mxu0 0.0
  %4654 = vmatpush1.xpose.msra.mxu0 %v4156
  %4655 = vmatprep.subr.mxu0 0.0
  %4656 = vmatpush1.xpose.msra.mxu0 %v4154
  %4657 = vmatprep.subr.mxu0 0.0
  %4658 = vmatpush1.xpose.msra.mxu0 %v4152
  %4659 = vmatprep.subr.mxu0 0.0
  %4660 = vmatpush1.xpose.msra.mxu0 %v4150
  %4661 = vmatprep.subr.mxu0 0.0
  %4662 = vmatpush1.xpose.msra.mxu0 %v4640
  %4663 = vmatprep.subr.mxu0 0.0
  %4664 = vmatpush1.xpose.msra.mxu0 %v4390
  %4665 = vmatprep.subr.mxu0 0.0
  %4666 = vmatpush1.xpose.msra.mxu0 %v4144
  %4667 = vmatprep.subr.mxu0 0.0
  %4668 = vmatpush1.xpose.msra.mxu0 %v4142
  %4669 = vmatprep.subr.mxu0 0.0
  %4670 = vmatpush1.xpose.msra.mxu0 %v4140
  %4671 = vmatprep.subr.mxu0 0.0
  %4672 = vmatpush1.xpose.msra.mxu0 %v4138
  %4673 = vmatprep.subr.mxu0 0.0
  %4674 = vmatpush1.xpose.msra.mxu0 %v4136
  %4675 = vmatprep.subr.mxu0 0.0
  %4676 = vmatpush1.xpose.msra.mxu0 %v4134
  %4677 = vmatprep.subr.mxu0 0.0
  %4678 = vmatpush2.xpose.msra.mxu0 0.0
  %4679 = vmatprep.subr.mxu0 0.0
  %4680 = vmatpush2.xpose.msra.mxu0 0.0
  %4681 = vmatprep.subr.mxu0 0.0
  %4682 = vmatpush2.xpose.msra.mxu0 0.0
  %4683 = vmatprep.subr.mxu0 0.0
  %4684 = vmatpush2.xpose.msra.mxu0 0.0
  %4685 = vmatprep.subr.mxu0 0.0
  %4686 = vmatpush2.xpose.msra.mxu0 0.0
  %4687 = vmatprep.subr.mxu0 0.0
  %4688 = vmatpush2.xpose.msra.mxu0 0.0
  %4689 = vmatprep.subr.mxu0 0.0
  %4690 = vmatpush2.xpose.msra.mxu0 0.0
  %4691 = vmatprep.subr.mxu0 0.0
  %4692 = vmatpush2.xpose.msra.mxu0 0.0
  %4693 = vmatprep.subr.mxu0 0.0
  %4694 = vmatpush2.xpose.msra.mxu0 0.0
  %4695 = vmatprep.subr.mxu0 0.0
  %4696 = vmatpush2.xpose.msra.mxu0 0.0
  %4697 = vmatprep.subr.mxu0 0.0
  %4698 = vmatpush2.xpose.msra.mxu0 0.0
  %4699 = vmatprep.subr.mxu0 0.0
  %4700 = vmatpush2.xpose.msra.mxu0 0.0
  %4701 = vmatprep.subr.mxu0 0.0
  %4702 = vmatpush2.xpose.msra.mxu0 0.0
  %4703 = vmatprep.subr.mxu0 0.0
  %4704 = vmatpush2.xpose.msra.mxu0 0.0
  %4705 = vmatprep.subr.mxu0 0.0
  %4706 = vmatpush2.xpose.msra.mxu0 0.0
  %4707 = vmatprep.subr.mxu0 0.0
  %4708 = vmatpush2.xpose.msra.mxu0 0.0
  %4709 = vmatprep.mubr.f32.mxu0 0.0
  %4710 = vmatmul.mubr.f32.gmra.mxu0 %v4637
  %v4711 = vpop.f32.mrf.mxu0
  %v4712 = vadd.f32 0.0, %v4711
  %v4713 = vpop.f32.mrf.mxu0
  %4714 = vdwg.mxu0
  %v4715 = vadd.f32 %v4635, %v4712
  %v4718 = vrot.slane %v3911, 1
  %v4719 = vrot.slane %v3912, 1
  %v4720 = vsel %vm1949, %v4718, %v4719
  %v4721 = vrot.slane %v3931, 1
  %v4722 = vrot.slane %v3932, 1
  %v4723 = vsel %vm1949, %v4721, %v4722
  %v4725 = vsel %vm3644, %v3940, 0
  %v4727 = vsel %vm3644, %v4720, 0
  %v4729 = vsel %vm3644, %v4723, 0
  %4731 = vmatprep.subr.mxu0 0.0
  %4732 = vmatpush1.xpose.msra.mxu0 %v4729
  %4733 = vmatprep.subr.mxu0 0.0
  %4734 = vmatpush1.xpose.msra.mxu0 %v4479
  %4735 = vmatprep.subr.mxu0 0.0
  %4736 = vmatpush1.xpose.msra.mxu0 %v4055
  %4737 = vmatprep.subr.mxu0 0.0
  %4738 = vmatpush1.xpose.msra.mxu0 %v4053
  %4739 = vmatprep.subr.mxu0 0.0
  %4740 = vmatpush1.xpose.msra.mxu0 %v4051
  %4741 = vmatprep.subr.mxu0 0.0
  %4742 = vmatpush1.xpose.msra.mxu0 %v4049
  %4743 = vmatprep.subr.mxu0 0.0
  %4744 = vmatpush1.xpose.msra.mxu0 %v4047
  %4745 = vmatprep.subr.mxu0 0.0
  %4746 = vmatpush1.xpose.msra.mxu0 %v4045
  %4747 = vmatprep.subr.mxu0 0.0
  %4748 = vmatpush1.xpose.msra.mxu0 %v4727
  %4749 = vmatprep.subr.mxu0 0.0
  %4750 = vmatpush1.xpose.msra.mxu0 %v4477
  %4751 = vmatprep.subr.mxu0 0.0
  %4752 = vmatpush1.xpose.msra.mxu0 %v4039
  %4753 = vmatprep.subr.mxu0 0.0
  %4754 = vmatpush1.xpose.msra.mxu0 %v4037
  %4755 = vmatprep.subr.mxu0 0.0
  %4756 = vmatpush1.xpose.msra.mxu0 %v4035
  %4757 = vmatprep.subr.mxu0 0.0
  %4758 = vmatpush1.xpose.msra.mxu0 %v4033
  %4759 = vmatprep.subr.mxu0 0.0
  %4760 = vmatpush1.xpose.msra.mxu0 %v4031
  %4761 = vmatprep.subr.mxu0 0.0
  %4762 = vmatpush1.xpose.msra.mxu0 %v4029
  %4763 = vmatprep.subr.mxu0 0.0
  %4764 = vmatpush2.xpose.msra.mxu0 0.0
  %4765 = vmatprep.subr.mxu0 0.0
  %4766 = vmatpush2.xpose.msra.mxu0 0.0
  %4767 = vmatprep.subr.mxu0 0.0
  %4768 = vmatpush2.xpose.msra.mxu0 0.0
  %4769 = vmatprep.subr.mxu0 0.0
  %4770 = vmatpush2.xpose.msra.mxu0 0.0
  %4771 = vmatprep.subr.mxu0 0.0
  %4772 = vmatpush2.xpose.msra.mxu0 0.0
  %4773 = vmatprep.subr.mxu0 0.0
  %4774 = vmatpush2.xpose.msra.mxu0 0.0
  %4775 = vmatprep.subr.mxu0 0.0
  %4776 = vmatpush2.xpose.msra.mxu0 0.0
  %4777 = vmatprep.subr.mxu0 0.0
  %4778 = vmatpush2.xpose.msra.mxu0 0.0
  %4779 = vmatprep.subr.mxu0 0.0
  %4780 = vmatpush2.xpose.msra.mxu0 0.0
  %4781 = vmatprep.subr.mxu0 0.0
  %4782 = vmatpush2.xpose.msra.mxu0 0.0
  %4783 = vmatprep.subr.mxu0 0.0
  %4784 = vmatpush2.xpose.msra.mxu0 0.0
  %4785 = vmatprep.subr.mxu0 0.0
  %4786 = vmatpush2.xpose.msra.mxu0 0.0
  %4787 = vmatprep.subr.mxu0 0.0
  %4788 = vmatpush2.xpose.msra.mxu0 0.0
  %4789 = vmatprep.subr.mxu0 0.0
  %4790 = vmatpush2.xpose.msra.mxu0 0.0
  %4791 = vmatprep.subr.mxu0 0.0
  %4792 = vmatpush2.xpose.msra.mxu0 0.0
  %4793 = vmatprep.subr.mxu0 0.0
  %4794 = vmatpush2.xpose.msra.mxu0 0.0
  %4795 = vmatprep.mubr.f32.mxu0 0.0
  %4796 = vmatmul.mubr.f32.gmra.mxu0 %v4725
  %v4797 = vpop.f32.mrf.mxu0
  %v4798 = vadd.f32 0.0, %v4797
  %v4799 = vpop.f32.mrf.mxu0
  %4800 = vdwg.mxu0
  %v4801 = vadd.f32 %v4715, %v4798
  %v4802 = vrot.slane %v3911, 2
  %v4803 = vrot.slane %v3912, 2
  %v4804 = vsel %vm2359, %v4802, %v4803
  %v4805 = vrot.slane %v3931, 2
  %v4806 = vrot.slane %v3932, 2
  %v4807 = vsel %vm2359, %v4805, %v4806
  %v4809 = vsel %vm3644, %v3941, 0
  %v4811 = vsel %vm3644, %v4804, 0
  %v4813 = vsel %vm3644, %v4807, 0
  %4815 = vmatprep.subr.mxu0 0.0
  %4816 = vmatpush1.xpose.msra.mxu0 %v4813
  %4817 = vmatprep.subr.mxu0 0.0
  %4818 = vmatpush1.xpose.msra.mxu0 %v4563
  %4819 = vmatprep.subr.mxu0 0.0
  %4820 = vmatpush1.xpose.msra.mxu0 %v4313
  %4821 = vmatprep.subr.mxu0 0.0
  %4822 = vmatpush1.xpose.msra.mxu0 %v4311
  %4823 = vmatprep.subr.mxu0 0.0
  %4824 = vmatpush1.xpose.msra.mxu0 %v4309
  %4825 = vmatprep.subr.mxu0 0.0
  %4826 = vmatpush1.xpose.msra.mxu0 %v4307
  %4827 = vmatprep.subr.mxu0 0.0
  %4828 = vmatpush1.xpose.msra.mxu0 %v4305
  %4829 = vmatprep.subr.mxu0 0.0
  %4830 = vmatpush1.xpose.msra.mxu0 %v4303
  %4831 = vmatprep.subr.mxu0 0.0
  %4832 = vmatpush1.xpose.msra.mxu0 %v4811
  %4833 = vmatprep.subr.mxu0 0.0
  %4834 = vmatpush1.xpose.msra.mxu0 %v4561
  %4835 = vmatprep.subr.mxu0 0.0
  %4836 = vmatpush1.xpose.msra.mxu0 %v4297
  %4837 = vmatprep.subr.mxu0 0.0
  %4838 = vmatpush1.xpose.msra.mxu0 %v4295
  %4839 = vmatprep.subr.mxu0 0.0
  %4840 = vmatpush1.xpose.msra.mxu0 %v4293
  %4841 = vmatprep.subr.mxu0 0.0
  %4842 = vmatpush1.xpose.msra.mxu0 %v4291
  %4843 = vmatprep.subr.mxu0 0.0
  %4844 = vmatpush1.xpose.msra.mxu0 %v4289
  %4845 = vmatprep.subr.mxu0 0.0
  %4846 = vmatpush1.xpose.msra.mxu0 %v4287
  %4847 = vmatprep.subr.mxu0 0.0
  %4848 = vmatpush2.xpose.msra.mxu0 0.0
  %4849 = vmatprep.subr.mxu0 0.0
  %4850 = vmatpush2.xpose.msra.mxu0 0.0
  %4851 = vmatprep.subr.mxu0 0.0
  %4852 = vmatpush2.xpose.msra.mxu0 0.0
  %4853 = vmatprep.subr.mxu0 0.0
  %4854 = vmatpush2.xpose.msra.mxu0 0.0
  %4855 = vmatprep.subr.mxu0 0.0
  %4856 = vmatpush2.xpose.msra.mxu0 0.0
  %4857 = vmatprep.subr.mxu0 0.0
  %4858 = vmatpush2.xpose.msra.mxu0 0.0
  %4859 = vmatprep.subr.mxu0 0.0
  %4860 = vmatpush2.xpose.msra.mxu0 0.0
  %4861 = vmatprep.subr.mxu0 0.0
  %4862 = vmatpush2.xpose.msra.mxu0 0.0
  %4863 = vmatprep.subr.mxu0 0.0
  %4864 = vmatpush2.xpose.msra.mxu0 0.0
  %4865 = vmatprep.subr.mxu0 0.0
  %4866 = vmatpush2.xpose.msra.mxu0 0.0
  %4867 = vmatprep.subr.mxu0 0.0
  %4868 = vmatpush2.xpose.msra.mxu0 0.0
  %4869 = vmatprep.subr.mxu0 0.0
  %4870 = vmatpush2.xpose.msra.mxu0 0.0
  %4871 = vmatprep.subr.mxu0 0.0
  %4872 = vmatpush2.xpose.msra.mxu0 0.0
  %4873 = vmatprep.subr.mxu0 0.0
  %4874 = vmatpush2.xpose.msra.mxu0 0.0
  %4875 = vmatprep.subr.mxu0 0.0
  %4876 = vmatpush2.xpose.msra.mxu0 0.0
  %4877 = vmatprep.subr.mxu0 0.0
  %4878 = vmatpush2.xpose.msra.mxu0 0.0
  %4879 = vmatprep.mubr.f32.mxu0 0.0
  %4880 = vmatmul.mubr.f32.gmra.mxu0 %v4809
  %v4881 = vpop.f32.mrf.mxu0
  %v4882 = vadd.f32 0.0, %v4881
  %v4883 = vpop.f32.mrf.mxu0
  %4884 = vdwg.mxu0
  %v4885 = vadd.f32 %v4801, %v4882
  %4886 = vadd.xlane.f32.xlu0 %v4885
  %v4887 = vpop.xlane.xlu0 %4886
  %v4888 = vmul.f32 %v4887, 0.0078125
  %v4889 = vmul.f32 %v4885, %v4885
  %4890 = vadd.xlane.f32.xlu0 %v4889
  %v4891 = vpop.xlane.xlu0 %4890
  %v4892 = vmul.f32 %v4891, 0.0078125
  %v4893 = vmul.f32 %v4888, %v4888
  %v4894 = vsub.f32 %v4892, %v4893
  %v4895 = vsub.f32 %v4885, %v4888
  %v4896 = vadd.f32 %v4894, 1e-05
  %v4897 = vrsqrt.pop %v4896
  %v4898 = vmul.f32 %v4895, %v4897
  %v4899 = vld [vmem:[%s5] sm:$0xff]
  %4901 = vset.pattern.permute.xlu0 0
  %4902 = vperm.xlu0 %4901, %v4899
  %v4903 = vpop.permute.xlu0 %4902
  %v4905 = vmul.f32 %v4898, %v4903
  %v4906 = vld [vmem:[%s6] sm:$0xff]
  %4908 = vset.pattern.permute.xlu0 0
  %4909 = vperm.xlu0 %4908, %v4906
  %v4910 = vpop.permute.xlu0 %4909
  %v4912 = vadd.f32 %v4905, %v4910
  %v4913 = vmax.f32 %v4912, 0.0
  %4914 = vst [vmem:[%s7] sm:$0xff] %v4913
  // Predicated region
  $region30: #{down_forward.1} parent=0 // pred_check
    _
  $region31: #{down_forward.1} parent=0 // pred_check_branch
    %4916 = sbr.rel (0) target = $region33
  $region32: #{down_forward.1} parent=0 // pred_region
    _
  $region33: #{down_forward.1} parent=0 // pred_fallthru
    _
  // Predicated region
  $region34: #{down_forward.1} parent=0 // pred_check
    _
  $region35: #{down_forward.1} parent=0 // pred_check_branch
    %4918 = sbr.rel (0) target = $region37
  $region36: #{down_forward.1} parent=0 // pred_region
    _
  $region37: #{down_forward.1} parent=0 // pred_fallthru
    _

</llo_original>
